<compile_context>
chip_gen: v6e
topology: v6e:2x2x1
jax: 0.10.0
libtpu: 0.0.40
codegen_flags: <defaults>
</compile_context>

<pallas_src>
import math
from functools import partial

import jax
import jax.numpy as jnp
from jax.experimental import pallas as pl
from jax.experimental.pallas import tpu as pltpu

# ----------------------------- encoder config (PositionalEncoderGrid) ----------
N_LEVELS = 16            # L
N_FEATS = 2              # F  -> encoded_dim = 32
LOG2_T = 14
TABLE_SIZE = 1 << LOG2_T
BASE_RES = 16
FINEST_RES = 128
ENC_DIM = N_LEVELS * N_FEATS        # 32  (= input_ch = input_ch_views)

GEO_FEAT_DIM = 15
HIDDEN = 64
NUM_LAYERS = 3
NUM_LAYERS_COLOR = 4

_B = math.exp((math.log(FINEST_RES) - math.log(BASE_RES)) / (N_LEVELS - 1))
RESOLUTIONS = [int(math.floor(BASE_RES * (_B ** l))) for l in range(N_LEVELS)]


def _round_up(a, b):
    return -(-a // b) * b


# ----------------------------- hash-grid encoder (feature-major) ----------------
def grid_encode_fm(x, emb):
    """Multi-resolution hash-grid encoding, emitted feature-major.

    x:   (N, 3) in [0,1]
    emb: (N_FEATS, N_LEVELS * TABLE_SIZE) f32 embedding table
    returns (ENC_DIM, N) f32, row index = f * N_LEVELS + l  (no HBM transpose).
    """
    n = x.shape[0]
    primes = jnp.array([1, 2654435761, 805459861], dtype=jnp.uint32)
    corners = jnp.array(
        [[(c >> k) & 1 for k in range(3)] for c in range(8)], dtype=jnp.int32
    )  # (8, 3)
    res = jnp.array(RESOLUTIONS, dtype=x.dtype)                     # (L,)

    xt = x.T                                                        # (3, N)   tiny
    xs = res[:, None, None] * xt[None, :, :]                        # (L, 3, N)
    x0 = jnp.floor(xs)
    frac = xs - x0                                                  # (L, 3, N)
    x0i = x0.astype(jnp.int32)

    idx = x0i[:, None, :, :] + corners[None, :, :, None]            # (L, 8, 3, N)
    hv = idx.astype(jnp.uint32) * primes[None, None, :, None]       # (L, 8, 3, N)
    h = (hv[:, :, 0] ^ hv[:, :, 1] ^ hv[:, :, 2]) & jnp.uint32(TABLE_SIZE - 1)
    gidx = h.astype(jnp.int32) + (
        jnp.arange(N_LEVELS, dtype=jnp.int32) * TABLE_SIZE)[:, None, None]  # (L, 8, N)

    feat = jnp.take(emb, gidx, axis=1)                              # (F, L, 8, N)

    cw = jnp.where(corners[None, :, :, None] == 1,
                   frac[:, None, :, :], 1.0 - frac[:, None, :, :])  # (L, 8, 3, N)
    w = jnp.prod(cw, axis=2)                                        # (L, 8, N)

    out = jnp.sum(w[None, :, :, :] * feat, axis=2)                  # (F, L, N)
    return out.reshape(ENC_DIM, n)


# ----------------------------- Pallas MLP kernel --------------------------------
def _mlp_kernel(
    xd_ref,                                     # (64, tm) bf16: rows 0:32 pos enc, 32:64 dir enc
    w0_ref,                                     # (128, 64) bf16 block-diag [s0^T|0 ; 0|c0d^T]
    s1_ref, s2_ref,                             # (64,64), (16,64) bf16
    c0g_ref,                                    # (64, 16) bf16 (zero column for sigma lane)
    c1_ref, c2_ref, c3_ref,                     # (64,64), (64,64), (3,64) bf16
    out_ref,                                    # (4, tm) f32: rows 0..2 color, 3 sigma
    *, bf16_act,
):
    f32, bf16 = jnp.float32, jnp.bfloat16

    def act(v):  # ReLU + downcast for the next matmul; relu∘cast == cast∘relu
        if bf16_act:
            return jnp.maximum(v.astype(bf16), 0.0)     # bf16 VPU (v6e/v7x)
        return jnp.maximum(v, 0.0).astype(bf16)         # f32 VPU (v5e and older)

    # Fused layer 0: block-diagonal matmul over the stacked [pos_enc; dir_enc].
    h01 = jnp.dot(w0_ref[...], xd_ref[...], preferred_element_type=f32)   # (128, tm)
    h0 = act(h01[:HIDDEN])            # sigma net layer 0 (post-ReLU), (64, tm) bf16
    cpart = h01[HIDDEN:]              # color layer 0 direction partial (pre-act), f32

    # Remaining sigma net: Linear -> ReLU (after every layer, incl. the last).
    h1 = act(jnp.dot(s1_ref[...], h0, preferred_element_type=f32))
    h2 = jnp.maximum(jnp.dot(s2_ref[...], h1, preferred_element_type=f32), 0.0)  # (16, tm) f32
    # row 0 of h2 = sigma; rows 1..15 = geo features.

    # Color net. c0g has a zero column for the sigma row, so the full 16-row h2
    # is fed (aligned K=16, no cross-lane slice).
    hc = act(cpart + jnp.dot(c0g_ref[...], h2.astype(bf16), preferred_element_type=f32))
    hc = act(jnp.dot(c1_ref[...], hc, preferred_element_type=f32))
    hc = act(jnp.dot(c2_ref[...], hc, preferred_element_type=f32))
    logits = jnp.dot(c3_ref[...], hc, preferred_element_type=f32)   # (3, tm), no ReLU

    # sigmoid(x) = 1 / (1 + exp(-x)): exp on EUP, reciprocal on EUP (approx).
    color = pl.reciprocal(1.0 + jnp.exp(-logits), approx=True)

    # Single packed store: rows 0..2 color, row 3 sigma (post-ReLU).
    out_ref[...] = jnp.concatenate([color, h2[0:1, :]], axis=0)


def mlp_pallas(xd, params, tm, bf16_act):
    """xd: (2*ENC_DIM, n_pad) bf16 stacked feature-major encodings.
    Returns (4, n_pad) f32 (rows 0..2 color, row 3 sigma)."""
    two_enc, n_pad = xd.shape
    bf16, f32 = jnp.bfloat16, jnp.float32

    s0, s1, s2 = params["sigma"]
    c0, c1, c2, c3 = params["color"]
    c0d = c0[:ENC_DIM]                                              # (32, 64)
    c0g = jnp.concatenate(                                          # zero row for sigma lane
        [jnp.zeros((1, HIDDEN), c0.dtype), c0[ENC_DIM:]], axis=0)   # (16, 64)

    # Block-diagonal fused layer-0 weight: one MXU push for sigma-l0 + color-l0(dir).
    w0 = jnp.zeros((2 * HIDDEN, 2 * ENC_DIM), f32)                  # (128, 64)
    w0 = w0.at[:HIDDEN, :ENC_DIM].set(s0.T)
    w0 = w0.at[HIDDEN:, ENC_DIM:].set(c0d.T)

    # (in, out) -> (out, in): kernel computes h_T = W @ x_T; bf16 operands,
    # f32 MXU accumulation via preferred_element_type inside the kernel.
    ws = [w0.astype(bf16)] + [w.T.astype(bf16) for w in (s1, s2, c0g, c1, c2, c3)]

    row_spec = pl.BlockSpec((two_enc, tm), lambda i: (0, i))
    w_spec = lambda w: pl.BlockSpec(w.shape, lambda i: (0, 0))      # resident weights

    kernel = partial(_mlp_kernel, bf16_act=bf16_act)
    out = pl.pallas_call(
        kernel,
        out_shape=jax.ShapeDtypeStruct((4, n_pad), jnp.float32),
        grid_spec=pltpu.PrefetchScalarGridSpec(
            num_scalar_prefetch=0,
            grid=(n_pad // tm,),
            in_specs=[row_spec] + [w_spec(w) for w in ws],
            out_specs=pl.BlockSpec((4, tm), lambda i: (0, i)),
        ),
        compiler_params=pltpu.CompilerParams(
            dimension_semantics=("parallel",)),
    )(xd, *ws)
    return out


# ----------------------------- parameter init -----------------------------------
def init_params(key):
    keys = jax.random.split(key, 2 + NUM_LAYERS + NUM_LAYERS_COLOR)
    # Tables stored feature-major (F, L*T) so the encoder needs no layout passes.
    pos_emb = jax.random.uniform(
        keys[0], (N_FEATS, N_LEVELS * TABLE_SIZE), jnp.float32, -1e-4, 1e-4)
    dir_emb = jax.random.uniform(
        keys[1], (N_FEATS, N_LEVELS * TABLE_SIZE), jnp.float32, -1e-4, 1e-4)

    def linear(k, in_dim, out_dim):
        bound = 1.0 / math.sqrt(in_dim)
        return jax.random.uniform(k, (in_dim, out_dim), jnp.float32, -bound, bound)

    sigma_dims = []
    for l in range(NUM_LAYERS):
        in_d = ENC_DIM if l == 0 else HIDDEN
        out_d = (1 + GEO_FEAT_DIM) if l == NUM_LAYERS - 1 else HIDDEN
        sigma_dims.append((in_d, out_d))
    color_dims = []
    for l in range(NUM_LAYERS_COLOR):
        in_d = (ENC_DIM + GEO_FEAT_DIM) if l == 0 else HIDDEN
        out_d = 3 if l == NUM_LAYERS_COLOR - 1 else HIDDEN
        color_dims.append((in_d, out_d))

    sigma_w = [linear(keys[2 + i], *d) for i, d in enumerate(sigma_dims)]
    color_w = [linear(keys[2 + NUM_LAYERS + i], *d) for i, d in enumerate(color_dims)]
    return {"pos_emb": pos_emb, "dir_emb": dir_emb,
            "sigma": sigma_w, "color": color_w}


def _use_bf16_act():
    """bf16 VPU ReLU only on chips that have a bf16 VPU (v6e / v7x)."""
    try:
        kind = jax.devices()[0].device_kind.lower()
    except Exception:
        return True
    return not any(t in kind for t in ("v2", "v3", "v4", "v5"))


# ----------------------------- full forward --------------------------------------
@partial(jax.jit, static_argnames=("tm", "bf16_act"))
def radiance_field_forward(x, d, params, tm=2048, bf16_act=True):
    # tm is sweepable (2048-8192 all fit comfortably in scoped VMEM on every
    # generation). On v7x prefer an even number of grid steps to fill both TCs.
    n = x.shape[0]
    tm = max(128, min(tm, _round_up(n, 128)))
    n_pad = _round_up(n, tm)
    if n_pad != n:
        # Pad the tiny (N,3) inputs instead of the encoded features.
        x = jnp.pad(x, ((0, n_pad - n), (0, 0)))
        d = jnp.pad(d, ((0, n_pad - n), (0, 0)))

    # Feature-major encodings (no HBM transposes), stacked into one bf16 stream.
    xe_t = grid_encode_fm(x, params["pos_emb"])                     # (32, n_pad) f32
    de_t = grid_encode_fm(d, params["dir_emb"])                     # (32, n_pad) f32
    xd = jnp.concatenate(
        [xe_t.astype(jnp.bfloat16), de_t.astype(jnp.bfloat16)], axis=0)  # (64, n_pad)

    out = mlp_pallas(xd, params, tm, bf16_act)                      # (4, n_pad)
    color = out[:3, :n].T          # (n, 3)
    sigma = out[3, :n]             # (n,)
    return color, sigma


def reference_forward(x, d, params):
    xe = grid_encode_fm(x, params["pos_emb"]).T                     # (N, 32)
    de = grid_encode_fm(d, params["dir_emb"]).T                     # (N, 32)
    h = xe
    for w in params["sigma"]:
        h = jax.nn.relu(h @ w)
    sigma, geo = h[:, 0], h[:, 1:]
    h = jnp.concatenate([de, geo], axis=-1)
    for l, w in enumerate(params["color"]):
        h = h @ w
        if l != NUM_LAYERS_COLOR - 1:
            h = jax.nn.relu(h)
    return jax.nn.sigmoid(h), sigma


if __name__ == "__main__":
    key = jax.random.PRNGKey(0)
    pkey, xkey, dkey = jax.random.split(key, 3)
    params = init_params(pkey)

    N = 4000  # -> n_pad = 4096, grid = 2 blocks at tm=2048 (keeps both v7x TCs busy)
    x = jax.random.uniform(xkey, (N, 3), jnp.float32)     # positions in [0,1]^3
    dirs = jax.random.uniform(dkey, (N, 3), jnp.float32)  # dirs mapped to [0,1]^3

    bf16_act = _use_bf16_act()
    color, sigma = radiance_field_forward(x, dirs, params, bf16_act=bf16_act)
    jax.block_until_ready((color, sigma))

    ref_color, ref_sigma = reference_forward(x, dirs, params)
    assert color.shape == (N, 3) and sigma.shape == (N,)
    # Tolerance loosened vs. the pure-f32 reference: bf16 matmul operands plus
    # the approximate EUP reciprocal in the sigmoid.
    assert jnp.allclose(color, ref_color, atol=3e-3), "color mismatch"
    assert jnp.allclose(sigma, ref_sigma, atol=3e-3), "sigma mismatch"

    print("KERNEL_OK")
</pallas_src>

<mosaic_0001>
module attributes {stable_mosaic.version = 11 : i64} {
  func.func @_mlp_kernel(%arg0: i32, %arg1: memref<64x2048xbf16, #tpu.memory_space<vmem>>, %arg2: memref<128x64xbf16, #tpu.memory_space<vmem>>, %arg3: memref<64x64xbf16, #tpu.memory_space<vmem>>, %arg4: memref<16x64xbf16, #tpu.memory_space<vmem>>, %arg5: memref<64x16xbf16, #tpu.memory_space<vmem>>, %arg6: memref<64x64xbf16, #tpu.memory_space<vmem>>, %arg7: memref<64x64xbf16, #tpu.memory_space<vmem>>, %arg8: memref<3x64xbf16, #tpu.memory_space<vmem>>, %arg9: memref<4x2048xf32, #tpu.memory_space<vmem>>) attributes {dimension_semantics = [#tpu.dimension_semantics<parallel>], iteration_bounds = array<i64: 2>, scalar_prefetch = 0 : i64, scratch_operands = 0 : i64, tpu.core_type = #tpu.core_type<tc>, window_params = [{transform_indices = @transform_0, window_bounds = array<i64: 64, 2048>}, {pipeline_mode = #tpu.pipeline_mode<synchronous>, transform_indices = @transform_1, window_bounds = array<i64: 128, 64>}, {pipeline_mode = #tpu.pipeline_mode<synchronous>, transform_indices = @transform_2, window_bounds = array<i64: 64, 64>}, {pipeline_mode = #tpu.pipeline_mode<synchronous>, transform_indices = @transform_3, window_bounds = array<i64: 16, 64>}, {pipeline_mode = #tpu.pipeline_mode<synchronous>, transform_indices = @transform_4, window_bounds = array<i64: 64, 16>}, {pipeline_mode = #tpu.pipeline_mode<synchronous>, transform_indices = @transform_5, window_bounds = array<i64: 64, 64>}, {pipeline_mode = #tpu.pipeline_mode<synchronous>, transform_indices = @transform_6, window_bounds = array<i64: 64, 64>}, {pipeline_mode = #tpu.pipeline_mode<synchronous>, transform_indices = @transform_7, window_bounds = array<i64: 3, 64>}, {transform_indices = @transform_8, window_bounds = array<i64: 4, 2048>}]} {
    %c0 = arith.constant 0 : index
    %c0_0 = arith.constant 0 : index
    %0 = vector.load %arg2[%c0, %c0_0] : memref<128x64xbf16, #tpu.memory_space<vmem>>, vector<128x64xbf16>
    %c0_1 = arith.constant 0 : index
    %c0_2 = arith.constant 0 : index
    %1 = vector.load %arg1[%c0_1, %c0_2] : memref<64x2048xbf16, #tpu.memory_space<vmem>>, vector<64x2048xbf16>
    %cst = arith.constant dense<0.000000e+00> : vector<128x2048xf32>
    %2 = tpu.matmul %0, %1, %cst {dimension_numbers = #tpu.dot_dimension_numbers<[1], [0], [0], [1], [0, 0, 1, 1], [], []>} : vector<128x64xbf16>, vector<64x2048xbf16>, vector<128x2048xf32> -> vector<128x2048xf32>
    %3 = vector.extract_strided_slice %2 {offsets = [0, 0], sizes = [64, 2048], strides = [1, 1]} : vector<128x2048xf32> to vector<64x2048xf32>
    %4 = arith.truncf %3 : vector<64x2048xf32> to vector<64x2048xbf16>
    %cst_3 = arith.constant 0.000000e+00 : bf16
    %5 = vector.broadcast %cst_3 : bf16 to vector<64x2048xbf16>
    %6 = arith.maximumf %4, %5 : vector<64x2048xbf16>
    %7 = vector.extract_strided_slice %2 {offsets = [64, 0], sizes = [64, 2048], strides = [1, 1]} : vector<128x2048xf32> to vector<64x2048xf32>
    %c0_4 = arith.constant 0 : index
    %c0_5 = arith.constant 0 : index
    %8 = vector.load %arg3[%c0_4, %c0_5] : memref<64x64xbf16, #tpu.memory_space<vmem>>, vector<64x64xbf16>
    %cst_6 = arith.constant dense<0.000000e+00> : vector<64x2048xf32>
    %9 = tpu.matmul %8, %6, %cst_6 {dimension_numbers = #tpu.dot_dimension_numbers<[1], [0], [0], [1], [0, 0, 1, 1], [], []>} : vector<64x64xbf16>, vector<64x2048xbf16>, vector<64x2048xf32> -> vector<64x2048xf32>
    %10 = arith.truncf %9 : vector<64x2048xf32> to vector<64x2048xbf16>
    %cst_7 = arith.constant 0.000000e+00 : bf16
    %11 = vector.broadcast %cst_7 : bf16 to vector<64x2048xbf16>
    %12 = arith.maximumf %10, %11 : vector<64x2048xbf16>
    %c0_8 = arith.constant 0 : index
    %c0_9 = arith.constant 0 : index
    %13 = vector.load %arg4[%c0_8, %c0_9] : memref<16x64xbf16, #tpu.memory_space<vmem>>, vector<16x64xbf16>
    %cst_10 = arith.constant dense<0.000000e+00> : vector<16x2048xf32>
    %14 = tpu.matmul %13, %12, %cst_10 {dimension_numbers = #tpu.dot_dimension_numbers<[1], [0], [0], [1], [0, 0, 1, 1], [], []>} : vector<16x64xbf16>, vector<64x2048xbf16>, vector<16x2048xf32> -> vector<16x2048xf32>
    %cst_11 = arith.constant 0.000000e+00 : f32
    %15 = vector.broadcast %cst_11 : f32 to vector<16x2048xf32>
    %16 = arith.maximumf %14, %15 : vector<16x2048xf32>
    %c0_12 = arith.constant 0 : index
    %c0_13 = arith.constant 0 : index
    %17 = vector.load %arg5[%c0_12, %c0_13] : memref<64x16xbf16, #tpu.memory_space<vmem>>, vector<64x16xbf16>
    %18 = arith.truncf %16 : vector<16x2048xf32> to vector<16x2048xbf16>
    %cst_14 = arith.constant dense<0.000000e+00> : vector<64x2048xf32>
    %19 = tpu.matmul %17, %18, %cst_14 {dimension_numbers = #tpu.dot_dimension_numbers<[1], [0], [0], [1], [0, 0, 1, 1], [], []>} : vector<64x16xbf16>, vector<16x2048xbf16>, vector<64x2048xf32> -> vector<64x2048xf32>
    %20 = arith.addf %7, %19 : vector<64x2048xf32>
    %21 = arith.truncf %20 : vector<64x2048xf32> to vector<64x2048xbf16>
    %cst_15 = arith.constant 0.000000e+00 : bf16
    %22 = vector.broadcast %cst_15 : bf16 to vector<64x2048xbf16>
    %23 = arith.maximumf %21, %22 : vector<64x2048xbf16>
    %c0_16 = arith.constant 0 : index
    %c0_17 = arith.constant 0 : index
    %24 = vector.load %arg6[%c0_16, %c0_17] : memref<64x64xbf16, #tpu.memory_space<vmem>>, vector<64x64xbf16>
    %cst_18 = arith.constant dense<0.000000e+00> : vector<64x2048xf32>
    %25 = tpu.matmul %24, %23, %cst_18 {dimension_numbers = #tpu.dot_dimension_numbers<[1], [0], [0], [1], [0, 0, 1, 1], [], []>} : vector<64x64xbf16>, vector<64x2048xbf16>, vector<64x2048xf32> -> vector<64x2048xf32>
    %26 = arith.truncf %25 : vector<64x2048xf32> to vector<64x2048xbf16>
    %cst_19 = arith.constant 0.000000e+00 : bf16
    %27 = vector.broadcast %cst_19 : bf16 to vector<64x2048xbf16>
    %28 = arith.maximumf %26, %27 : vector<64x2048xbf16>
    %c0_20 = arith.constant 0 : index
    %c0_21 = arith.constant 0 : index
    %29 = vector.load %arg7[%c0_20, %c0_21] : memref<64x64xbf16, #tpu.memory_space<vmem>>, vector<64x64xbf16>
    %cst_22 = arith.constant dense<0.000000e+00> : vector<64x2048xf32>
    %30 = tpu.matmul %29, %28, %cst_22 {dimension_numbers = #tpu.dot_dimension_numbers<[1], [0], [0], [1], [0, 0, 1, 1], [], []>} : vector<64x64xbf16>, vector<64x2048xbf16>, vector<64x2048xf32> -> vector<64x2048xf32>
    %31 = arith.truncf %30 : vector<64x2048xf32> to vector<64x2048xbf16>
    %cst_23 = arith.constant 0.000000e+00 : bf16
    %32 = vector.broadcast %cst_23 : bf16 to vector<64x2048xbf16>
    %33 = arith.maximumf %31, %32 : vector<64x2048xbf16>
    %c0_24 = arith.constant 0 : index
    %c0_25 = arith.constant 0 : index
    %34 = vector.load %arg8[%c0_24, %c0_25] : memref<3x64xbf16, #tpu.memory_space<vmem>>, vector<3x64xbf16>
    %cst_26 = arith.constant dense<0.000000e+00> : vector<3x2048xf32>
    %35 = tpu.matmul %34, %33, %cst_26 {dimension_numbers = #tpu.dot_dimension_numbers<[1], [0], [0], [1], [0, 0, 1, 1], [], []>} : vector<3x64xbf16>, vector<64x2048xbf16>, vector<3x2048xf32> -> vector<3x2048xf32>
    %cst_27 = arith.constant 0.000000e+00 : f32
    %36 = vector.broadcast %cst_27 : f32 to vector<3x2048xf32>
    %37 = arith.subf %36, %35 : vector<3x2048xf32>
    %38 = math.exp %37 : vector<3x2048xf32>
    %cst_28 = arith.constant 1.000000e+00 : f32
    %39 = vector.broadcast %cst_28 : f32 to vector<3x2048xf32>
    %40 = arith.addf %39, %38 : vector<3x2048xf32>
    %41 = tpu.reciprocal %40 {approx = true} : vector<3x2048xf32> -> vector<3x2048xf32>
    %42 = vector.extract_strided_slice %16 {offsets = [0, 0], sizes = [1, 2048], strides = [1, 1]} : vector<16x2048xf32> to vector<1x2048xf32>
    %43 = tpu.concatenate %41, %42 in 0 : vector<3x2048xf32>, vector<1x2048xf32> -> vector<4x2048xf32>
    %c0_29 = arith.constant 0 : index
    %c0_30 = arith.constant 0 : index
    %44 = vector.load %arg9[%c0_29, %c0_30] : memref<4x2048xf32, #tpu.memory_space<vmem>>, vector<4x2048xf32>
    tpu.vector_store %arg9[%c0_29, %c0_30], %43 {strides = array<i32>} : memref<4x2048xf32, #tpu.memory_space<vmem>>, vector<4x2048xf32>,
    return
  }
  func.func @transform_0(%arg0: i32) -> (i32, i32) {
    %c0_i32 = arith.constant 0 : i32
    %c0_i32_0 = arith.constant 0 : i32
    return %c0_i32, %arg0 : i32, i32
  }
  func.func @transform_1(%arg0: i32) -> (i32, i32) {
    %c0_i32 = arith.constant 0 : i32
    %c0_i32_0 = arith.constant 0 : i32
    %c0_i32_1 = arith.constant 0 : i32
    return %c0_i32, %c0_i32_0 : i32, i32
  }
  func.func @transform_2(%arg0: i32) -> (i32, i32) {
    %c0_i32 = arith.constant 0 : i32
    %c0_i32_0 = arith.constant 0 : i32
    %c0_i32_1 = arith.constant 0 : i32
    return %c0_i32, %c0_i32_0 : i32, i32
  }
  func.func @transform_3(%arg0: i32) -> (i32, i32) {
    %c0_i32 = arith.constant 0 : i32
    %c0_i32_0 = arith.constant 0 : i32
    %c0_i32_1 = arith.constant 0 : i32
    return %c0_i32, %c0_i32_0 : i32, i32
  }
  func.func @transform_4(%arg0: i32) -> (i32, i32) {
    %c0_i32 = arith.constant 0 : i32
    %c0_i32_0 = arith.constant 0 : i32
    %c0_i32_1 = arith.constant 0 : i32
    return %c0_i32, %c0_i32_0 : i32, i32
  }
  func.func @transform_5(%arg0: i32) -> (i32, i32) {
    %c0_i32 = arith.constant 0 : i32
    %c0_i32_0 = arith.constant 0 : i32
    %c0_i32_1 = arith.constant 0 : i32
    return %c0_i32, %c0_i32_0 : i32, i32
  }
  func.func @transform_6(%arg0: i32) -> (i32, i32) {
    %c0_i32 = arith.constant 0 : i32
    %c0_i32_0 = arith.constant 0 : i32
    %c0_i32_1 = arith.constant 0 : i32
    return %c0_i32, %c0_i32_0 : i32, i32
  }
  func.func @transform_7(%arg0: i32) -> (i32, i32) {
    %c0_i32 = arith.constant 0 : i32
    %c0_i32_0 = arith.constant 0 : i32
    %c0_i32_1 = arith.constant 0 : i32
    return %c0_i32, %c0_i32_0 : i32, i32
  }
  func.func @transform_8(%arg0: i32) -> (i32, i32) {
    %c0_i32 = arith.constant 0 : i32
    %c0_i32_0 = arith.constant 0 : i32
    return %c0_i32, %arg0 : i32, i32
  }
}

</mosaic_0001>

<llo_original>
// kernel: radiance_field_forward.1
$region0: #{radiance_field_forward.1}
  #allocation0 [shape = 'u32[]', space=smem, size = 0x4, offset = 0x4, fixed_abs, tag = 'smem constant byte address 0x4 - core index']
  #allocation1 [shape = 'u32[144,128]{1,0:T(1,128)}', space=vmem, size = 0x12000, scoped, tag = 'internal scratch']
  %s0 = inlined_call_operand.vmem [shape: bf16[64,4096], index: 0, kind: input, shape index: {}]
  %s1 = inlined_call_operand.vmem [shape: bf16[128,64], index: 1, kind: input, shape index: {}]
  %s2 = inlined_call_operand.vmem [shape: bf16[64,64], index: 2, kind: input, shape index: {}]
  %s3 = inlined_call_operand.vmem [shape: bf16[16,64], index: 3, kind: input, shape index: {}]
  %s4 = inlined_call_operand.vmem [shape: bf16[64,16], index: 4, kind: input, shape index: {}]
  %s5 = inlined_call_operand.vmem [shape: bf16[64,64], index: 5, kind: input, shape index: {}]
  %s6 = inlined_call_operand.vmem [shape: bf16[64,64], index: 6, kind: input, shape index: {}]
  %s7 = inlined_call_operand.vmem [shape: bf16[3,64], index: 7, kind: input, shape index: {}]
  %s8 = inlined_call_operand.vmem [shape: f32[4,4096], index: 8, kind: output, shape index: {}]
  %s9 = sld [smem:[#allocation0]]
  $region88: #{radiance_field_forward.1} parent=0
    _
  %s11 = ssub.s32 1, %s9
  %s12 = scalar_select 0, %s11, %s9
  $region1: #{radiance_field_forward.1} parent=0
    #allocation2 [shape = 'u8[524288]{0}', space=vmem, size = 0x80000, scoped, tag = 'input window, operand 0']
    loop: start=0, step=1, limit=4
    $region2: #{radiance_field_forward.1} parent=1 // loop_pre_header
      _
    $region3: #{radiance_field_forward.1} parent=1 // loop_header
      %s14 = sphi 0, %s18
      %p15 = scmp.ge.s32.totalorder %s14, 4
      %s24 = sphi 0, %s26
      %s27 = sphi 0, %s24
      %s28 = sphi 0, %s27
      %s44 = sphi 0, %s28
      %s48 = sphi 0, %s48
      %s50 = sphi 0, %s48
      %s51 = sphi 0, %s50
      %s65 = sphi 0, %s51
      %s69 = sphi 0, %s69
      %s71 = sphi 0, %s69
      %s72 = sphi 0, %s71
      %s86 = sphi 0, %s72
      %s90 = sphi 0, %s90
      %s92 = sphi 0, %s90
      %s93 = sphi 0, %s92
      %s107 = sphi 0, %s93
      %s111 = sphi 0, %s111
      %s113 = sphi 0, %s111
      %s114 = sphi 0, %s113
      %s128 = sphi 0, %s114
      %s132 = sphi 0, %s132
      %s134 = sphi 0, %s132
      %s135 = sphi 0, %s134
      %s149 = sphi 0, %s135
      %s153 = sphi 0, %s153
      %s155 = sphi 0, %s153
      %s156 = sphi 0, %s155
      %s170 = sphi 0, %s156
      %s174 = sphi 0, %s174
      %s176 = sphi 0, %s174
      %s177 = sphi 0, %s176
      %s191 = sphi 0, %s177
      %s197 = sphi 0, %s199
      %s200 = sphi 0, %s197
      %s201 = sphi 0, %s200
      %s217 = sphi 0, %s201
    $region4: #{radiance_field_forward.1} parent=1 // loop_header_branch
      %17 = sbr.rel (%p15) target = $region8
    $region5: #{radiance_field_forward.1} parent=1 // loop_body
      %s19 = ssub.s32 %s14, 1
      %s20 = ssub.s32 %s14, 2
      %s21 = sadd.s32 %s14, 1
      %s22 = ssub.s32 %s14, %s21
      %p23 = scmp.eq.s32.totalorder %s22, 0
      %s25 = sadd.s32 %s24, 1
      %s26 = scalar_select %p23, %s24, %s25
      %p29 = pneg %p23
      %p30 = scmp.eq.s32.totalorder %s14, 1
      %p31 = por %p29, %p30
      %p32 = scmp.ne.s32.totalorder %s24, %s27
      %p33 = scmp.eq.s32.totalorder %s14, 0
      %p34 = por %p32, %p33
      %p35 = scmp.ne.s32.totalorder %s24, %s27
      %p36 = scmp.eq.s32.totalorder %s19, 1
      %p37 = por %p35, %p36
      %p38 = scmp.ne.s32.totalorder %s27, %s28
      %p39 = scmp.eq.s32.totalorder %s19, 0
      %p40 = por %p38, %p39
      %p41 = scmp.ne.s32.totalorder %s27, %s28
      %p42 = scmp.eq.s32.totalorder %s20, 1
      %p43 = por %p41, %p42
      %p45 = scmp.ne.s32.totalorder %s28, %s44
      %p46 = scmp.eq.s32.totalorder %s20, 0
      %p47 = por %p45, %p46
      %s49 = sadd.s32 %s48, 1
      %p52 = scmp.eq.s32.totalorder %s14, 1
      %p53 = scmp.ne.s32.totalorder %s48, %s50
      %p54 = scmp.eq.s32.totalorder %s14, 0
      %p55 = por %p53, %p54
      %p56 = scmp.ne.s32.totalorder %s48, %s50
      %p57 = scmp.eq.s32.totalorder %s19, 1
      %p58 = por %p56, %p57
      %p59 = scmp.ne.s32.totalorder %s50, %s51
      %p60 = scmp.eq.s32.totalorder %s19, 0
      %p61 = por %p59, %p60
      %p62 = scmp.ne.s32.totalorder %s50, %s51
      %p63 = scmp.eq.s32.totalorder %s20, 1
      %p64 = por %p62, %p63
      %p66 = scmp.ne.s32.totalorder %s51, %s65
      %p67 = scmp.eq.s32.totalorder %s20, 0
      %p68 = por %p66, %p67
      %s70 = sadd.s32 %s69, 1
      %p73 = scmp.eq.s32.totalorder %s14, 1
      %p74 = scmp.ne.s32.totalorder %s69, %s71
      %p75 = scmp.eq.s32.totalorder %s14, 0
      %p76 = por %p74, %p75
      %p77 = scmp.ne.s32.totalorder %s69, %s71
      %p78 = scmp.eq.s32.totalorder %s19, 1
      %p79 = por %p77, %p78
      %p80 = scmp.ne.s32.totalorder %s71, %s72
      %p81 = scmp.eq.s32.totalorder %s19, 0
      %p82 = por %p80, %p81
      %p83 = scmp.ne.s32.totalorder %s71, %s72
      %p84 = scmp.eq.s32.totalorder %s20, 1
      %p85 = por %p83, %p84
      %p87 = scmp.ne.s32.totalorder %s72, %s86
      %p88 = scmp.eq.s32.totalorder %s20, 0
      %p89 = por %p87, %p88
      %s91 = sadd.s32 %s90, 1
      %p94 = scmp.eq.s32.totalorder %s14, 1
      %p95 = scmp.ne.s32.totalorder %s90, %s92
      %p96 = scmp.eq.s32.totalorder %s14, 0
      %p97 = por %p95, %p96
      %p98 = scmp.ne.s32.totalorder %s90, %s92
      %p99 = scmp.eq.s32.totalorder %s19, 1
      %p100 = por %p98, %p99
      %p101 = scmp.ne.s32.totalorder %s92, %s93
      %p102 = scmp.eq.s32.totalorder %s19, 0
      %p103 = por %p101, %p102
      %p104 = scmp.ne.s32.totalorder %s92, %s93
      %p105 = scmp.eq.s32.totalorder %s20, 1
      %p106 = por %p104, %p105
      %p108 = scmp.ne.s32.totalorder %s93, %s107
      %p109 = scmp.eq.s32.totalorder %s20, 0
      %p110 = por %p108, %p109
      %s112 = sadd.s32 %s111, 1
      %p115 = scmp.eq.s32.totalorder %s14, 1
      %p116 = scmp.ne.s32.totalorder %s111, %s113
      %p117 = scmp.eq.s32.totalorder %s14, 0
      %p118 = por %p116, %p117
      %p119 = scmp.ne.s32.totalorder %s111, %s113
      %p120 = scmp.eq.s32.totalorder %s19, 1
      %p121 = por %p119, %p120
      %p122 = scmp.ne.s32.totalorder %s113, %s114
      %p123 = scmp.eq.s32.totalorder %s19, 0
      %p124 = por %p122, %p123
      %p125 = scmp.ne.s32.totalorder %s113, %s114
      %p126 = scmp.eq.s32.totalorder %s20, 1
      %p127 = por %p125, %p126
      %p129 = scmp.ne.s32.totalorder %s114, %s128
      %p130 = scmp.eq.s32.totalorder %s20, 0
      %p131 = por %p129, %p130
      %s133 = sadd.s32 %s132, 1
      %p136 = scmp.eq.s32.totalorder %s14, 1
      %p137 = scmp.ne.s32.totalorder %s132, %s134
      %p138 = scmp.eq.s32.totalorder %s14, 0
      %p139 = por %p137, %p138
      %p140 = scmp.ne.s32.totalorder %s132, %s134
      %p141 = scmp.eq.s32.totalorder %s19, 1
      %p142 = por %p140, %p141
      %p143 = scmp.ne.s32.totalorder %s134, %s135
      %p144 = scmp.eq.s32.totalorder %s19, 0
      %p145 = por %p143, %p144
      %p146 = scmp.ne.s32.totalorder %s134, %s135
      %p147 = scmp.eq.s32.totalorder %s20, 1
      %p148 = por %p146, %p147
      %p150 = scmp.ne.s32.totalorder %s135, %s149
      %p151 = scmp.eq.s32.totalorder %s20, 0
      %p152 = por %p150, %p151
      %s154 = sadd.s32 %s153, 1
      %p157 = scmp.eq.s32.totalorder %s14, 1
      %p158 = scmp.ne.s32.totalorder %s153, %s155
      %p159 = scmp.eq.s32.totalorder %s14, 0
      %p160 = por %p158, %p159
      %p161 = scmp.ne.s32.totalorder %s153, %s155
      %p162 = scmp.eq.s32.totalorder %s19, 1
      %p163 = por %p161, %p162
      %p164 = scmp.ne.s32.totalorder %s155, %s156
      %p165 = scmp.eq.s32.totalorder %s19, 0
      %p166 = por %p164, %p165
      %p167 = scmp.ne.s32.totalorder %s155, %s156
      %p168 = scmp.eq.s32.totalorder %s20, 1
      %p169 = por %p167, %p168
      %p171 = scmp.ne.s32.totalorder %s156, %s170
      %p172 = scmp.eq.s32.totalorder %s20, 0
      %p173 = por %p171, %p172
      %s175 = sadd.s32 %s174, 1
      %p178 = scmp.eq.s32.totalorder %s14, 1
      %p179 = scmp.ne.s32.totalorder %s174, %s176
      %p180 = scmp.eq.s32.totalorder %s14, 0
      %p181 = por %p179, %p180
      %p182 = scmp.ne.s32.totalorder %s174, %s176
      %p183 = scmp.eq.s32.totalorder %s19, 1
      %p184 = por %p182, %p183
      %p185 = scmp.ne.s32.totalorder %s176, %s177
      %p186 = scmp.eq.s32.totalorder %s19, 0
      %p187 = por %p185, %p186
      %p188 = scmp.ne.s32.totalorder %s176, %s177
      %p189 = scmp.eq.s32.totalorder %s20, 1
      %p190 = por %p188, %p189
      %p192 = scmp.ne.s32.totalorder %s177, %s191
      %p193 = scmp.eq.s32.totalorder %s20, 0
      %p194 = por %p192, %p193
      %s195 = ssub.s32 %s14, %s21
      %p196 = scmp.eq.s32.totalorder %s195, 0
      %s198 = sadd.s32 %s197, 1
      %s199 = scalar_select %p196, %s197, %s198
      %p202 = pneg %p196
      %p203 = scmp.eq.s32.totalorder %s14, 1
      %p204 = por %p202, %p203
      %p205 = scmp.ne.s32.totalorder %s197, %s200
      %p206 = scmp.eq.s32.totalorder %s14, 0
      %p207 = por %p205, %p206
      %p208 = scmp.ne.s32.totalorder %s197, %s200
      %p209 = scmp.eq.s32.totalorder %s19, 1
      %p210 = por %p208, %p209
      %p211 = scmp.ne.s32.totalorder %s200, %s201
      %p212 = scmp.eq.s32.totalorder %s19, 0
      %p213 = por %p211, %p212
      %p214 = scmp.ne.s32.totalorder %s200, %s201
      %p215 = scmp.eq.s32.totalorder %s20, 1
      %p216 = por %p214, %p215
      %p218 = scmp.ne.s32.totalorder %s201, %s217
      %p219 = scmp.eq.s32.totalorder %s20, 0
      %p220 = por %p218, %p219
      %p221 = scmp.le.s32.totalorder 1, %s14
      %p222 = scmp.lt.s32.totalorder %s14, 3
      %p223 = pnand %p221, %p222
      %p224 = pneg %p223
      // Predicated region
      $region9: #{radiance_field_forward.1} parent=5 // pred_check
        _
      $region10: #{radiance_field_forward.1} parent=5 // pred_check_branch
        %226 = sbr.rel (%p223) target = $region12
      $region11: #{radiance_field_forward.1} parent=5 // pred_region
        %s227 = ssub.s32 %s14, 1
        // Predicated region
        $region13: #{radiance_field_forward.1} parent=11 // pred_check
          %p228 = pneg %p61
        $region14: #{radiance_field_forward.1} parent=11 // pred_check_branch
          %230 = sbr.rel (%p228) target = $region16
        $region15: #{radiance_field_forward.1} parent=11 // pred_region
          _
        $region16: #{radiance_field_forward.1} parent=11 // pred_fallthru
          _
        // Predicated region
        $region17: #{radiance_field_forward.1} parent=11 // pred_check
          %p231 = pneg %p82
        $region18: #{radiance_field_forward.1} parent=11 // pred_check_branch
          %233 = sbr.rel (%p231) target = $region20
        $region19: #{radiance_field_forward.1} parent=11 // pred_region
          _
        $region20: #{radiance_field_forward.1} parent=11 // pred_fallthru
          _
        // Predicated region
        $region21: #{radiance_field_forward.1} parent=11 // pred_check
          %p234 = pneg %p103
        $region22: #{radiance_field_forward.1} parent=11 // pred_check_branch
          %236 = sbr.rel (%p234) target = $region24
        $region23: #{radiance_field_forward.1} parent=11 // pred_region
          _
        $region24: #{radiance_field_forward.1} parent=11 // pred_fallthru
          _
        // Predicated region
        $region25: #{radiance_field_forward.1} parent=11 // pred_check
          %p237 = pneg %p124
        $region26: #{radiance_field_forward.1} parent=11 // pred_check_branch
          %239 = sbr.rel (%p237) target = $region28
        $region27: #{radiance_field_forward.1} parent=11 // pred_region
          _
        $region28: #{radiance_field_forward.1} parent=11 // pred_fallthru
          _
        // Predicated region
        $region29: #{radiance_field_forward.1} parent=11 // pred_check
          %p240 = pneg %p145
        $region30: #{radiance_field_forward.1} parent=11 // pred_check_branch
          %242 = sbr.rel (%p240) target = $region32
        $region31: #{radiance_field_forward.1} parent=11 // pred_region
          _
        $region32: #{radiance_field_forward.1} parent=11 // pred_fallthru
          _
        // Predicated region
        $region33: #{radiance_field_forward.1} parent=11 // pred_check
          %p243 = pneg %p166
        $region34: #{radiance_field_forward.1} parent=11 // pred_check_branch
          %245 = sbr.rel (%p243) target = $region36
        $region35: #{radiance_field_forward.1} parent=11 // pred_region
          _
        $region36: #{radiance_field_forward.1} parent=11 // pred_fallthru
          _
        // Predicated region
        $region37: #{radiance_field_forward.1} parent=11 // pred_check
          %p246 = pneg %p187
        $region38: #{radiance_field_forward.1} parent=11 // pred_check_branch
          %248 = sbr.rel (%p246) target = $region40
        $region39: #{radiance_field_forward.1} parent=11 // pred_region
          _
        $region40: #{radiance_field_forward.1} parent=11 // pred_fallthru
          _
      $region12: #{radiance_field_forward.1} parent=5 // pred_fallthru
        _
      %p249 = scmp.lt.s32.totalorder %s14, 2
      // Predicated region
      $region41: #{radiance_field_forward.1} parent=5 // pred_check
        %p250 = pneg %p249
      $region42: #{radiance_field_forward.1} parent=5 // pred_check_branch
        %252 = sbr.rel (%p250) target = $region44
      $region43: #{radiance_field_forward.1} parent=5 // pred_region
        // Predicated region
        $region45: #{radiance_field_forward.1} parent=43 // pred_check
          %p253 = pneg %p34
        $region46: #{radiance_field_forward.1} parent=43 // pred_check_branch
          %255 = sbr.rel (%p253) target = $region48
        $region47: #{radiance_field_forward.1} parent=43 // pred_region
          %s256 = sand.u32 %s24, 1
          %s257 = sand.u32 %s24, 1
          %s258 = smul.addr %s257, 512
          %s259 = scalar_lea.vmem [#allocation2], %s258
          %s260 = smul.u32 16, %s14
          %s261 = smul.addr %s260, 4
          %s262 = scalar_lea.vmem %s0, %s261
          // Predicated region
          $region49: #{radiance_field_forward.1} parent=47 // pred_check
            _
          $region50: #{radiance_field_forward.1} parent=47 // pred_check_branch
            %264 = sbr.rel (0) target = $region52
          $region51: #{radiance_field_forward.1} parent=47 // pred_region
            // Predicated region
            $region53: #{radiance_field_forward.1} parent=51 // pred_check
              _
            $region54: #{radiance_field_forward.1} parent=51 // pred_check_branch
              %266 = sbr.rel (0) target = $region56
            $region55: #{radiance_field_forward.1} parent=51 // pred_region
              loop: start=0, step=1, limit=1
              $region57: #{radiance_field_forward.1} parent=55 // loop_pre_header
                _
              $region58: #{radiance_field_forward.1} parent=55 // loop_header
                %s268 = sphi 0, %s272
                %p269 = scmp.ge.s32.totalorder %s268, 1
                %s273 = sphi %s262, %s262
                %s274 = sphi %s259, %s259
              $region59: #{radiance_field_forward.1} parent=55 // loop_header_branch
                %271 = sbr.rel (%p269) target = $region63
              $region60: #{radiance_field_forward.1} parent=55 // loop_body
                %v275 = vld [vmem:[%s273] sm:$0xff]
                %276 = vst [vmem:[%s274] sm:$0xff] %v275
                %v277 = vld [vmem:[%s273 + $0x8] sm:$0xff]
                %278 = vst [vmem:[%s274 + $0x8] sm:$0xff] %v277
                %v279 = vld [vmem:[%s273 + $0x10] sm:$0xff]
                %280 = vst [vmem:[%s274 + $0x10] sm:$0xff] %v279
                %v281 = vld [vmem:[%s273 + $0x18] sm:$0xff]
                %282 = vst [vmem:[%s274 + $0x18] sm:$0xff] %v281
                %v283 = vld [vmem:[%s273 + $0x20] sm:$0xff]
                %284 = vst [vmem:[%s274 + $0x20] sm:$0xff] %v283
                %v285 = vld [vmem:[%s273 + $0x28] sm:$0xff]
                %286 = vst [vmem:[%s274 + $0x28] sm:$0xff] %v285
                %v287 = vld [vmem:[%s273 + $0x30] sm:$0xff]
                %288 = vst [vmem:[%s274 + $0x30] sm:$0xff] %v287
                %v289 = vld [vmem:[%s273 + $0x38] sm:$0xff]
                %290 = vst [vmem:[%s274 + $0x38] sm:$0xff] %v289
                %v291 = vld [vmem:[%s273 + $0x80] sm:$0xff]
                %292 = vst [vmem:[%s274 + $0x40] sm:$0xff] %v291
                %v293 = vld [vmem:[%s273 + $0x88] sm:$0xff]
                %294 = vst [vmem:[%s274 + $0x48] sm:$0xff] %v293
                %v295 = vld [vmem:[%s273 + $0x90] sm:$0xff]
                %296 = vst [vmem:[%s274 + $0x50] sm:$0xff] %v295
                %v297 = vld [vmem:[%s273 + $0x98] sm:$0xff]
                %298 = vst [vmem:[%s274 + $0x58] sm:$0xff] %v297
                %v299 = vld [vmem:[%s273 + $0xa0] sm:$0xff]
                %300 = vst [vmem:[%s274 + $0x60] sm:$0xff] %v299
                %v301 = vld [vmem:[%s273 + $0xa8] sm:$0xff]
                %302 = vst [vmem:[%s274 + $0x68] sm:$0xff] %v301
                %v303 = vld [vmem:[%s273 + $0xb0] sm:$0xff]
                %304 = vst [vmem:[%s274 + $0x70] sm:$0xff] %v303
                %v305 = vld [vmem:[%s273 + $0xb8] sm:$0xff]
                %306 = vst [vmem:[%s274 + $0x78] sm:$0xff] %v305
                %v307 = vld [vmem:[%s273 + $0x100] sm:$0xff]
                %308 = vst [vmem:[%s274 + $0x80] sm:$0xff] %v307
                %v309 = vld [vmem:[%s273 + $0x108] sm:$0xff]
                %310 = vst [vmem:[%s274 + $0x88] sm:$0xff] %v309
                %v311 = vld [vmem:[%s273 + $0x110] sm:$0xff]
                %312 = vst [vmem:[%s274 + $0x90] sm:$0xff] %v311
                %v313 = vld [vmem:[%s273 + $0x118] sm:$0xff]
                %314 = vst [vmem:[%s274 + $0x98] sm:$0xff] %v313
                %v315 = vld [vmem:[%s273 + $0x120] sm:$0xff]
                %316 = vst [vmem:[%s274 + $0xa0] sm:$0xff] %v315
                %v317 = vld [vmem:[%s273 + $0x128] sm:$0xff]
                %318 = vst [vmem:[%s274 + $0xa8] sm:$0xff] %v317
                %v319 = vld [vmem:[%s273 + $0x130] sm:$0xff]
                %320 = vst [vmem:[%s274 + $0xb0] sm:$0xff] %v319
                %v321 = vld [vmem:[%s273 + $0x138] sm:$0xff]
                %322 = vst [vmem:[%s274 + $0xb8] sm:$0xff] %v321
                %v323 = vld [vmem:[%s273 + $0x180] sm:$0xff]
                %324 = vst [vmem:[%s274 + $0xc0] sm:$0xff] %v323
                %v325 = vld [vmem:[%s273 + $0x188] sm:$0xff]
                %326 = vst [vmem:[%s274 + $0xc8] sm:$0xff] %v325
                %v327 = vld [vmem:[%s273 + $0x190] sm:$0xff]
                %328 = vst [vmem:[%s274 + $0xd0] sm:$0xff] %v327
                %v329 = vld [vmem:[%s273 + $0x198] sm:$0xff]
                %330 = vst [vmem:[%s274 + $0xd8] sm:$0xff] %v329
                %v331 = vld [vmem:[%s273 + $0x1a0] sm:$0xff]
                %332 = vst [vmem:[%s274 + $0xe0] sm:$0xff] %v331
                %v333 = vld [vmem:[%s273 + $0x1a8] sm:$0xff]
                %334 = vst [vmem:[%s274 + $0xe8] sm:$0xff] %v333
                %v335 = vld [vmem:[%s273 + $0x1b0] sm:$0xff]
                %336 = vst [vmem:[%s274 + $0xf0] sm:$0xff] %v335
                %v337 = vld [vmem:[%s273 + $0x1b8] sm:$0xff]
                %338 = vst [vmem:[%s274 + $0xf8] sm:$0xff] %v337
                %v339 = vld [vmem:[%s273 + $0x200] sm:$0xff]
                %340 = vst [vmem:[%s274 + $0x100] sm:$0xff] %v339
                %v341 = vld [vmem:[%s273 + $0x208] sm:$0xff]
                %342 = vst [vmem:[%s274 + $0x108] sm:$0xff] %v341
                %v343 = vld [vmem:[%s273 + $0x210] sm:$0xff]
                %344 = vst [vmem:[%s274 + $0x110] sm:$0xff] %v343
                %v345 = vld [vmem:[%s273 + $0x218] sm:$0xff]
                %346 = vst [vmem:[%s274 + $0x118] sm:$0xff] %v345
                %v347 = vld [vmem:[%s273 + $0x220] sm:$0xff]
                %348 = vst [vmem:[%s274 + $0x120] sm:$0xff] %v347
                %v349 = vld [vmem:[%s273 + $0x228] sm:$0xff]
                %350 = vst [vmem:[%s274 + $0x128] sm:$0xff] %v349
                %v351 = vld [vmem:[%s273 + $0x230] sm:$0xff]
                %352 = vst [vmem:[%s274 + $0x130] sm:$0xff] %v351
                %v353 = vld [vmem:[%s273 + $0x238] sm:$0xff]
                %354 = vst [vmem:[%s274 + $0x138] sm:$0xff] %v353
                %v355 = vld [vmem:[%s273 + $0x280] sm:$0xff]
                %356 = vst [vmem:[%s274 + $0x140] sm:$0xff] %v355
                %v357 = vld [vmem:[%s273 + $0x288] sm:$0xff]
                %358 = vst [vmem:[%s274 + $0x148] sm:$0xff] %v357
                %v359 = vld [vmem:[%s273 + $0x290] sm:$0xff]
                %360 = vst [vmem:[%s274 + $0x150] sm:$0xff] %v359
                %v361 = vld [vmem:[%s273 + $0x298] sm:$0xff]
                %362 = vst [vmem:[%s274 + $0x158] sm:$0xff] %v361
                %v363 = vld [vmem:[%s273 + $0x2a0] sm:$0xff]
                %364 = vst [vmem:[%s274 + $0x160] sm:$0xff] %v363
                %v365 = vld [vmem:[%s273 + $0x2a8] sm:$0xff]
                %366 = vst [vmem:[%s274 + $0x168] sm:$0xff] %v365
                %v367 = vld [vmem:[%s273 + $0x2b0] sm:$0xff]
                %368 = vst [vmem:[%s274 + $0x170] sm:$0xff] %v367
                %v369 = vld [vmem:[%s273 + $0x2b8] sm:$0xff]
                %370 = vst [vmem:[%s274 + $0x178] sm:$0xff] %v369
                %v371 = vld [vmem:[%s273 + $0x300] sm:$0xff]
                %372 = vst [vmem:[%s274 + $0x180] sm:$0xff] %v371
                %v373 = vld [vmem:[%s273 + $0x308] sm:$0xff]
                %374 = vst [vmem:[%s274 + $0x188] sm:$0xff] %v373
                %v375 = vld [vmem:[%s273 + $0x310] sm:$0xff]
                %376 = vst [vmem:[%s274 + $0x190] sm:$0xff] %v375
                %v377 = vld [vmem:[%s273 + $0x318] sm:$0xff]
                %378 = vst [vmem:[%s274 + $0x198] sm:$0xff] %v377
                %v379 = vld [vmem:[%s273 + $0x320] sm:$0xff]
                %380 = vst [vmem:[%s274 + $0x1a0] sm:$0xff] %v379
                %v381 = vld [vmem:[%s273 + $0x328] sm:$0xff]
                %382 = vst [vmem:[%s274 + $0x1a8] sm:$0xff] %v381
                %v383 = vld [vmem:[%s273 + $0x330] sm:$0xff]
                %384 = vst [vmem:[%s274 + $0x1b0] sm:$0xff] %v383
                %v385 = vld [vmem:[%s273 + $0x338] sm:$0xff]
                %386 = vst [vmem:[%s274 + $0x1b8] sm:$0xff] %v385
                %v387 = vld [vmem:[%s273 + $0x380] sm:$0xff]
                %388 = vst [vmem:[%s274 + $0x1c0] sm:$0xff] %v387
                %v389 = vld [vmem:[%s273 + $0x388] sm:$0xff]
                %390 = vst [vmem:[%s274 + $0x1c8] sm:$0xff] %v389
                %v391 = vld [vmem:[%s273 + $0x390] sm:$0xff]
                %392 = vst [vmem:[%s274 + $0x1d0] sm:$0xff] %v391
                %v393 = vld [vmem:[%s273 + $0x398] sm:$0xff]
                %394 = vst [vmem:[%s274 + $0x1d8] sm:$0xff] %v393
                %v395 = vld [vmem:[%s273 + $0x3a0] sm:$0xff]
                %396 = vst [vmem:[%s274 + $0x1e0] sm:$0xff] %v395
                %v397 = vld [vmem:[%s273 + $0x3a8] sm:$0xff]
                %398 = vst [vmem:[%s274 + $0x1e8] sm:$0xff] %v397
                %v399 = vld [vmem:[%s273 + $0x3b0] sm:$0xff]
                %400 = vst [vmem:[%s274 + $0x1f0] sm:$0xff] %v399
                %v401 = vld [vmem:[%s273 + $0x3b8] sm:$0xff]
                %402 = vst [vmem:[%s274 + $0x1f8] sm:$0xff] %v401
              $region61: #{radiance_field_forward.1} parent=55 // loop_footer
                %s272 = sadd.s32 1, %s268
              $region62: #{radiance_field_forward.1} parent=55 // loop_footer_branch
                %267 = sbr.rel target = $region58
              $region63: #{radiance_field_forward.1} parent=55 // loop_exit
                _
            $region56: #{radiance_field_forward.1} parent=51 // pred_fallthru
              _
            // Predicated region
            $region64: #{radiance_field_forward.1} parent=51 // pred_check
              _
            $region65: #{radiance_field_forward.1} parent=51 // pred_check_branch
              %404 = sbr.rel target = $region67
            $region66: #{radiance_field_forward.1} parent=51 // pred_region
              _
            $region67: #{radiance_field_forward.1} parent=51 // pred_fallthru
              _
          $region52: #{radiance_field_forward.1} parent=47 // pred_fallthru
            _
          %405 = vnop
        $region48: #{radiance_field_forward.1} parent=43 // pred_fallthru
          _
      $region44: #{radiance_field_forward.1} parent=5 // pred_fallthru
        _
      %p406 = scmp.le.s32.totalorder 1, %s14
      %p407 = scmp.lt.s32.totalorder %s14, 3
      %p408 = pnand %p406, %p407
      %p409 = pneg %p408
      // Predicated region
      $region68: #{radiance_field_forward.1} parent=5 // pred_check
        _
      $region69: #{radiance_field_forward.1} parent=5 // pred_check_branch
        %411 = sbr.rel (%p408) target = $region71
      $region70: #{radiance_field_forward.1} parent=5 // pred_region
        %s412 = ssub.s32 %s14, 1
        %s413 = sand.u32 %s27, 1
        %s414 = sand.u32 %s27, 1
        %s415 = smul.addr %s414, 512
        %s416 = scalar_lea.vmem [#allocation2], %s415
        // Predicated region
        $region72: #{radiance_field_forward.1} parent=70 // pred_check
          %p417 = pneg %p40
        $region73: #{radiance_field_forward.1} parent=70 // pred_check_branch
          %419 = sbr.rel (%p417) target = $region75
        $region74: #{radiance_field_forward.1} parent=70 // pred_region
          _
        $region75: #{radiance_field_forward.1} parent=70 // pred_fallthru
          _
        %s420 = sand.u32 %s27, 1
        %s421 = sand.u32 %s27, 1
        %s422 = smul.addr %s421, 512
        %s423 = scalar_lea.vmem [#allocation2], %s422
        %p424 = pneg %p40
        %p425 = pneg %p37
        %p426 = pneg %p61
        %p427 = pneg %p58
        %p428 = pneg %p82
        %p429 = pneg %p79
        %p430 = pneg %p103
        %p431 = pneg %p100
        %p432 = pneg %p124
        %p433 = pneg %p121
        %p434 = pneg %p145
        %p435 = pneg %p142
        %p436 = pneg %p166
        %p437 = pneg %p163
        %p438 = pneg %p187
        %p439 = pneg %p184
        %p440 = pneg %p213
        %p441 = pneg %p210
        %s442 = smul.u32 16, %s19
        %p443 = scmp.lt.s32.totalorder %s442, 31
        %s444 = scalar_select %p443, %s442, 31
        %s445 = smul.addr %s444, 4
        %s446 = scalar_lea.vmem %s8, %s445
        %s447 = smul.u32 16, %s19
        %s448 = smul.u32 16, %s19
        %p449 = scmp.lt.s32.totalorder %s448, 31
        %s450 = scalar_select %p449, %s448, 31
        %s451 = smul.addr %s450, 4
        %s452 = scalar_lea.vmem %s8, %s451
        %s453 = smul.u32 16, %s19
        %v455 = vld [vmem:[%s1] sm:$0xf]
        %v456 = vld [vmem:[%s1 + $0x4] sm:$0xf]
        %v457 = vld [vmem:[%s1 + $0x8] sm:$0xf]
        %v458 = vld [vmem:[%s1 + $0xc] sm:$0xf]
        %v459 = vld [vmem:[%s1 + $0x10] sm:$0xf]
        %v460 = vld [vmem:[%s1 + $0x14] sm:$0xf]
        %v461 = vld [vmem:[%s1 + $0x18] sm:$0xf]
        %v462 = vld [vmem:[%s1 + $0x1c] sm:$0xf]
        %v463 = vld [vmem:[%s1 + $0x20] sm:$0xf]
        %v464 = vld [vmem:[%s1 + $0x24] sm:$0xf]
        %v465 = vld [vmem:[%s1 + $0x28] sm:$0xf]
        %v466 = vld [vmem:[%s1 + $0x2c] sm:$0xf]
        %v467 = vld [vmem:[%s1 + $0x30] sm:$0xf]
        %v468 = vld [vmem:[%s1 + $0x34] sm:$0xf]
        %v469 = vld [vmem:[%s1 + $0x38] sm:$0xf]
        %v470 = vld [vmem:[%s1 + $0x3c] sm:$0xf]
        %v471 = vld [vmem:[%s416] sm:$0xff]
        %v472 = vld [vmem:[%s416 + $0x8] sm:$0xff]
        %v473 = vld [vmem:[%s416 + $0x10] sm:$0xff]
        %v474 = vld [vmem:[%s416 + $0x18] sm:$0xff]
        %v475 = vld [vmem:[%s416 + $0x20] sm:$0xff]
        %v476 = vld [vmem:[%s416 + $0x28] sm:$0xff]
        %v477 = vld [vmem:[%s416 + $0x30] sm:$0xff]
        %v478 = vld [vmem:[%s416 + $0x38] sm:$0xff]
        %v479 = vld [vmem:[%s416 + $0x40] sm:$0xff]
        %v480 = vld [vmem:[%s416 + $0x48] sm:$0xff]
        %v481 = vld [vmem:[%s416 + $0x50] sm:$0xff]
        %v482 = vld [vmem:[%s416 + $0x58] sm:$0xff]
        %v483 = vld [vmem:[%s416 + $0x60] sm:$0xff]
        %v484 = vld [vmem:[%s416 + $0x68] sm:$0xff]
        %v485 = vld [vmem:[%s416 + $0x70] sm:$0xff]
        %v486 = vld [vmem:[%s416 + $0x78] sm:$0xff]
        %v487 = vld [vmem:[%s416 + $0x80] sm:$0xff]
        %v488 = vld [vmem:[%s416 + $0x88] sm:$0xff]
        %v489 = vld [vmem:[%s416 + $0x90] sm:$0xff]
        %v490 = vld [vmem:[%s416 + $0x98] sm:$0xff]
        %v491 = vld [vmem:[%s416 + $0xa0] sm:$0xff]
        %v492 = vld [vmem:[%s416 + $0xa8] sm:$0xff]
        %v493 = vld [vmem:[%s416 + $0xb0] sm:$0xff]
        %v494 = vld [vmem:[%s416 + $0xb8] sm:$0xff]
        %v495 = vld [vmem:[%s416 + $0xc0] sm:$0xff]
        %v496 = vld [vmem:[%s416 + $0xc8] sm:$0xff]
        %v497 = vld [vmem:[%s416 + $0xd0] sm:$0xff]
        %v498 = vld [vmem:[%s416 + $0xd8] sm:$0xff]
        %v499 = vld [vmem:[%s416 + $0xe0] sm:$0xff]
        %v500 = vld [vmem:[%s416 + $0xe8] sm:$0xff]
        %v501 = vld [vmem:[%s416 + $0xf0] sm:$0xff]
        %v502 = vld [vmem:[%s416 + $0xf8] sm:$0xff]
        %v503 = vld [vmem:[%s416 + $0x100] sm:$0xff]
        %v504 = vld [vmem:[%s416 + $0x108] sm:$0xff]
        %v505 = vld [vmem:[%s416 + $0x110] sm:$0xff]
        %v506 = vld [vmem:[%s416 + $0x118] sm:$0xff]
        %v507 = vld [vmem:[%s416 + $0x120] sm:$0xff]
        %v508 = vld [vmem:[%s416 + $0x128] sm:$0xff]
        %v509 = vld [vmem:[%s416 + $0x130] sm:$0xff]
        %v510 = vld [vmem:[%s416 + $0x138] sm:$0xff]
        %v511 = vld [vmem:[%s416 + $0x140] sm:$0xff]
        %v512 = vld [vmem:[%s416 + $0x148] sm:$0xff]
        %v513 = vld [vmem:[%s416 + $0x150] sm:$0xff]
        %v514 = vld [vmem:[%s416 + $0x158] sm:$0xff]
        %v515 = vld [vmem:[%s416 + $0x160] sm:$0xff]
        %v516 = vld [vmem:[%s416 + $0x168] sm:$0xff]
        %v517 = vld [vmem:[%s416 + $0x170] sm:$0xff]
        %v518 = vld [vmem:[%s416 + $0x178] sm:$0xff]
        %v519 = vld [vmem:[%s416 + $0x180] sm:$0xff]
        %v520 = vld [vmem:[%s416 + $0x188] sm:$0xff]
        %v521 = vld [vmem:[%s416 + $0x190] sm:$0xff]
        %v522 = vld [vmem:[%s416 + $0x198] sm:$0xff]
        %v523 = vld [vmem:[%s416 + $0x1a0] sm:$0xff]
        %v524 = vld [vmem:[%s416 + $0x1a8] sm:$0xff]
        %v525 = vld [vmem:[%s416 + $0x1b0] sm:$0xff]
        %v526 = vld [vmem:[%s416 + $0x1b8] sm:$0xff]
        %v527 = vld [vmem:[%s416 + $0x1c0] sm:$0xff]
        %v528 = vld [vmem:[%s416 + $0x1c8] sm:$0xff]
        %v529 = vld [vmem:[%s416 + $0x1d0] sm:$0xff]
        %v530 = vld [vmem:[%s416 + $0x1d8] sm:$0xff]
        %v531 = vld [vmem:[%s416 + $0x1e0] sm:$0xff]
        %v532 = vld [vmem:[%s416 + $0x1e8] sm:$0xff]
        %v533 = vld [vmem:[%s416 + $0x1f0] sm:$0xff]
        %v534 = vld [vmem:[%s416 + $0x1f8] sm:$0xff]
        %v551 = vunpack.c.l.b16 %v455
        %v552 = vunpack.c.l.b16 %v456
        %v553 = vunpack.c.l.b16 %v457
        %v554 = vunpack.c.l.b16 %v458
        %v555 = vunpack.c.l.b16 %v459
        %v556 = vunpack.c.l.b16 %v460
        %v557 = vunpack.c.l.b16 %v461
        %v558 = vunpack.c.l.b16 %v462
        %v559 = vunpack.c.l.b16 %v463
        %v560 = vunpack.c.l.b16 %v464
        %v561 = vunpack.c.l.b16 %v465
        %v562 = vunpack.c.l.b16 %v466
        %v563 = vunpack.c.l.b16 %v467
        %v564 = vunpack.c.l.b16 %v468
        %v565 = vunpack.c.l.b16 %v469
        %v566 = vunpack.c.l.b16 %v470
        %v567 = vpack.c.b16 %v552, %v551
        %v568 = vpack.c.b16 %v554, %v553
        %v569 = vpack.c.b16 %v556, %v555
        %v570 = vpack.c.b16 %v558, %v557
        %v571 = vpack.c.b16 %v560, %v559
        %v572 = vpack.c.b16 %v562, %v561
        %v573 = vpack.c.b16 %v564, %v563
        %v574 = vpack.c.b16 %v566, %v565
        %v639 = vunpack.c.l.b16 %v471
        %v640 = vunpack.c.h.b16 %v471
        %v641 = vunpack.c.l.b16 %v472
        %v642 = vunpack.c.h.b16 %v472
        %v643 = vunpack.c.l.b16 %v473
        %v644 = vunpack.c.h.b16 %v473
        %v645 = vunpack.c.l.b16 %v474
        %v646 = vunpack.c.h.b16 %v474
        %v647 = vunpack.c.l.b16 %v475
        %v648 = vunpack.c.h.b16 %v475
        %v649 = vunpack.c.l.b16 %v476
        %v650 = vunpack.c.h.b16 %v476
        %v651 = vunpack.c.l.b16 %v477
        %v652 = vunpack.c.h.b16 %v477
        %v653 = vunpack.c.l.b16 %v478
        %v654 = vunpack.c.h.b16 %v478
        %v655 = vunpack.c.l.b16 %v479
        %v656 = vunpack.c.h.b16 %v479
        %v657 = vunpack.c.l.b16 %v480
        %v658 = vunpack.c.h.b16 %v480
        %v659 = vunpack.c.l.b16 %v481
        %v660 = vunpack.c.h.b16 %v481
        %v661 = vunpack.c.l.b16 %v482
        %v662 = vunpack.c.h.b16 %v482
        %v663 = vunpack.c.l.b16 %v483
        %v664 = vunpack.c.h.b16 %v483
        %v665 = vunpack.c.l.b16 %v484
        %v666 = vunpack.c.h.b16 %v484
        %v667 = vunpack.c.l.b16 %v485
        %v668 = vunpack.c.h.b16 %v485
        %v669 = vunpack.c.l.b16 %v486
        %v670 = vunpack.c.h.b16 %v486
        %v671 = vunpack.c.l.b16 %v487
        %v672 = vunpack.c.h.b16 %v487
        %v673 = vunpack.c.l.b16 %v488
        %v674 = vunpack.c.h.b16 %v488
        %v675 = vunpack.c.l.b16 %v489
        %v676 = vunpack.c.h.b16 %v489
        %v677 = vunpack.c.l.b16 %v490
        %v678 = vunpack.c.h.b16 %v490
        %v679 = vunpack.c.l.b16 %v491
        %v680 = vunpack.c.h.b16 %v491
        %v681 = vunpack.c.l.b16 %v492
        %v682 = vunpack.c.h.b16 %v492
        %v683 = vunpack.c.l.b16 %v493
        %v684 = vunpack.c.h.b16 %v493
        %v685 = vunpack.c.l.b16 %v494
        %v686 = vunpack.c.h.b16 %v494
        %v687 = vunpack.c.l.b16 %v495
        %v688 = vunpack.c.h.b16 %v495
        %v689 = vunpack.c.l.b16 %v496
        %v690 = vunpack.c.h.b16 %v496
        %v691 = vunpack.c.l.b16 %v497
        %v692 = vunpack.c.h.b16 %v497
        %v693 = vunpack.c.l.b16 %v498
        %v694 = vunpack.c.h.b16 %v498
        %v695 = vunpack.c.l.b16 %v499
        %v696 = vunpack.c.h.b16 %v499
        %v697 = vunpack.c.l.b16 %v500
        %v698 = vunpack.c.h.b16 %v500
        %v699 = vunpack.c.l.b16 %v501
        %v700 = vunpack.c.h.b16 %v501
        %v701 = vunpack.c.l.b16 %v502
        %v702 = vunpack.c.h.b16 %v502
        %v703 = vunpack.c.l.b16 %v503
        %v704 = vunpack.c.h.b16 %v503
        %v705 = vunpack.c.l.b16 %v504
        %v706 = vunpack.c.h.b16 %v504
        %v707 = vunpack.c.l.b16 %v505
        %v708 = vunpack.c.h.b16 %v505
        %v709 = vunpack.c.l.b16 %v506
        %v710 = vunpack.c.h.b16 %v506
        %v711 = vunpack.c.l.b16 %v507
        %v712 = vunpack.c.h.b16 %v507
        %v713 = vunpack.c.l.b16 %v508
        %v714 = vunpack.c.h.b16 %v508
        %v715 = vunpack.c.l.b16 %v509
        %v716 = vunpack.c.h.b16 %v509
        %v717 = vunpack.c.l.b16 %v510
        %v718 = vunpack.c.h.b16 %v510
        %v719 = vunpack.c.l.b16 %v511
        %v720 = vunpack.c.h.b16 %v511
        %v721 = vunpack.c.l.b16 %v512
        %v722 = vunpack.c.h.b16 %v512
        %v723 = vunpack.c.l.b16 %v513
        %v724 = vunpack.c.h.b16 %v513
        %v725 = vunpack.c.l.b16 %v514
        %v726 = vunpack.c.h.b16 %v514
        %v727 = vunpack.c.l.b16 %v515
        %v728 = vunpack.c.h.b16 %v515
        %v729 = vunpack.c.l.b16 %v516
        %v730 = vunpack.c.h.b16 %v516
        %v731 = vunpack.c.l.b16 %v517
        %v732 = vunpack.c.h.b16 %v517
        %v733 = vunpack.c.l.b16 %v518
        %v734 = vunpack.c.h.b16 %v518
        %v735 = vunpack.c.l.b16 %v519
        %v736 = vunpack.c.h.b16 %v519
        %v737 = vunpack.c.l.b16 %v520
        %v738 = vunpack.c.h.b16 %v520
        %v739 = vunpack.c.l.b16 %v521
        %v740 = vunpack.c.h.b16 %v521
        %v741 = vunpack.c.l.b16 %v522
        %v742 = vunpack.c.h.b16 %v522
        %v743 = vunpack.c.l.b16 %v523
        %v744 = vunpack.c.h.b16 %v523
        %v745 = vunpack.c.l.b16 %v524
        %v746 = vunpack.c.h.b16 %v524
        %v747 = vunpack.c.l.b16 %v525
        %v748 = vunpack.c.h.b16 %v525
        %v749 = vunpack.c.l.b16 %v526
        %v750 = vunpack.c.h.b16 %v526
        %v751 = vunpack.c.l.b16 %v527
        %v752 = vunpack.c.h.b16 %v527
        %v753 = vunpack.c.l.b16 %v528
        %v754 = vunpack.c.h.b16 %v528
        %v755 = vunpack.c.l.b16 %v529
        %v756 = vunpack.c.h.b16 %v529
        %v757 = vunpack.c.l.b16 %v530
        %v758 = vunpack.c.h.b16 %v530
        %v759 = vunpack.c.l.b16 %v531
        %v760 = vunpack.c.h.b16 %v531
        %v761 = vunpack.c.l.b16 %v532
        %v762 = vunpack.c.h.b16 %v532
        %v763 = vunpack.c.l.b16 %v533
        %v764 = vunpack.c.h.b16 %v533
        %v765 = vunpack.c.l.b16 %v534
        %v766 = vunpack.c.h.b16 %v534
        %v767 = vpack.c.b16 %v655, %v639
        %v768 = vpack.c.b16 %v656, %v640
        %v769 = vpack.c.b16 %v657, %v641
        %v770 = vpack.c.b16 %v658, %v642
        %v771 = vpack.c.b16 %v659, %v643
        %v772 = vpack.c.b16 %v660, %v644
        %v773 = vpack.c.b16 %v661, %v645
        %v774 = vpack.c.b16 %v662, %v646
        %v775 = vpack.c.b16 %v663, %v647
        %v776 = vpack.c.b16 %v664, %v648
        %v777 = vpack.c.b16 %v665, %v649
        %v778 = vpack.c.b16 %v666, %v650
        %v779 = vpack.c.b16 %v667, %v651
        %v780 = vpack.c.b16 %v668, %v652
        %v781 = vpack.c.b16 %v669, %v653
        %v782 = vpack.c.b16 %v670, %v654
        %v783 = vpack.c.b16 %v687, %v671
        %v784 = vpack.c.b16 %v688, %v672
        %v785 = vpack.c.b16 %v689, %v673
        %v786 = vpack.c.b16 %v690, %v674
        %v787 = vpack.c.b16 %v691, %v675
        %v788 = vpack.c.b16 %v692, %v676
        %v789 = vpack.c.b16 %v693, %v677
        %v790 = vpack.c.b16 %v694, %v678
        %v791 = vpack.c.b16 %v695, %v679
        %v792 = vpack.c.b16 %v696, %v680
        %v793 = vpack.c.b16 %v697, %v681
        %v794 = vpack.c.b16 %v698, %v682
        %v795 = vpack.c.b16 %v699, %v683
        %v796 = vpack.c.b16 %v700, %v684
        %v797 = vpack.c.b16 %v701, %v685
        %v798 = vpack.c.b16 %v702, %v686
        %v799 = vpack.c.b16 %v719, %v703
        %v800 = vpack.c.b16 %v720, %v704
        %v801 = vpack.c.b16 %v721, %v705
        %v802 = vpack.c.b16 %v722, %v706
        %v803 = vpack.c.b16 %v723, %v707
        %v804 = vpack.c.b16 %v724, %v708
        %v805 = vpack.c.b16 %v725, %v709
        %v806 = vpack.c.b16 %v726, %v710
        %v807 = vpack.c.b16 %v727, %v711
        %v808 = vpack.c.b16 %v728, %v712
        %v809 = vpack.c.b16 %v729, %v713
        %v810 = vpack.c.b16 %v730, %v714
        %v811 = vpack.c.b16 %v731, %v715
        %v812 = vpack.c.b16 %v732, %v716
        %v813 = vpack.c.b16 %v733, %v717
        %v814 = vpack.c.b16 %v734, %v718
        %v815 = vpack.c.b16 %v751, %v735
        %v816 = vpack.c.b16 %v752, %v736
        %v817 = vpack.c.b16 %v753, %v737
        %v818 = vpack.c.b16 %v754, %v738
        %v819 = vpack.c.b16 %v755, %v739
        %v820 = vpack.c.b16 %v756, %v740
        %v821 = vpack.c.b16 %v757, %v741
        %v822 = vpack.c.b16 %v758, %v742
        %v823 = vpack.c.b16 %v759, %v743
        %v824 = vpack.c.b16 %v760, %v744
        %v825 = vpack.c.b16 %v761, %v745
        %v826 = vpack.c.b16 %v762, %v746
        %v827 = vpack.c.b16 %v763, %v747
        %v828 = vpack.c.b16 %v764, %v748
        %v829 = vpack.c.b16 %v765, %v749
        %v830 = vpack.c.b16 %v766, %v750
        %vm895 = vcmask 523264
        %v897 = vsel %vm895, %v567, 0
        %v900 = vsel %vm895, %v568, 0
        %v903 = vsel %vm895, %v569, 0
        %v906 = vsel %vm895, %v570, 0
        %v909 = vsel %vm895, %v571, 0
        %v912 = vsel %vm895, %v572, 0
        %v915 = vsel %vm895, %v573, 0
        %v918 = vsel %vm895, %v574, 0
        %920 = vmatprep.subr.bf16.mxu0 0
        %921 = vmatpush1.bf16.msra.mxu0 0
        %922 = vmatprep.subr.bf16.mxu0 0
        %923 = vmatpush1.bf16.msra.mxu0 0
        %924 = vmatprep.subr.bf16.mxu0 0
        %925 = vmatpush1.bf16.msra.mxu0 0
        %926 = vmatprep.subr.bf16.mxu0 0
        %927 = vmatpush1.bf16.msra.mxu0 0
        %928 = vmatprep.subr.bf16.mxu0 %v816
        %929 = vmatpush1.bf16.msra.mxu0 %v815
        %930 = vmatprep.subr.bf16.mxu0 %v800
        %931 = vmatpush1.bf16.msra.mxu0 %v799
        %932 = vmatprep.subr.bf16.mxu0 %v784
        %933 = vmatpush1.bf16.msra.mxu0 %v783
        %934 = vmatprep.subr.bf16.mxu0 %v768
        %935 = vmatpush1.bf16.msra.mxu0 %v767
        %936 = vmatprep.subr.bf16.mxu0 0
        %937 = vmatpush2.bf16.msra.mxu0 0
        %938 = vmatprep.subr.bf16.mxu0 0
        %939 = vmatpush2.bf16.msra.mxu0 0
        %940 = vmatprep.subr.bf16.mxu0 0
        %941 = vmatpush2.bf16.msra.mxu0 0
        %942 = vmatprep.subr.bf16.mxu0 0
        %943 = vmatpush2.bf16.msra.mxu0 0
        %944 = vmatprep.subr.bf16.mxu0 0
        %945 = vmatpush2.bf16.msra.mxu0 0
        %946 = vmatprep.subr.bf16.mxu0 0
        %947 = vmatpush2.bf16.msra.mxu0 0
        %948 = vmatprep.subr.bf16.mxu0 0
        %949 = vmatpush2.bf16.msra.mxu0 0
        %950 = vmatprep.subr.bf16.mxu0 0
        %951 = vmatpush2.bf16.msra.mxu0 0
        %952 = vmatprep.mubr.bf16.mxu0 0
        %953 = vmatmul.mubr.bf16.gmra.mxu0 %v897
        %v954 = vpop.f32.mrf.mxu0
        %v955 = vadd.f32 0.0, %v954
        %v956 = vpop.f32.mrf.mxu0
        %v957 = vadd.f32 0.0, %v956
        %v958 = vpop.f32.mrf.mxu0
        %v959 = vadd.f32 0.0, %v958
        %v960 = vpop.f32.mrf.mxu0
        %v961 = vadd.f32 0.0, %v960
        %962 = vmatprep.mubr.bf16.mxu0 0
        %963 = vmatmul.mubr.bf16.gmra.mxu0 %v900
        %v964 = vpop.f32.mrf.mxu0
        %v965 = vadd.f32 0.0, %v964
        %v966 = vpop.f32.mrf.mxu0
        %v967 = vadd.f32 0.0, %v966
        %v968 = vpop.f32.mrf.mxu0
        %v969 = vadd.f32 0.0, %v968
        %v970 = vpop.f32.mrf.mxu0
        %v971 = vadd.f32 0.0, %v970
        %972 = vmatprep.mubr.bf16.mxu0 0
        %973 = vmatmul.mubr.bf16.gmra.mxu0 %v903
        %v974 = vpop.f32.mrf.mxu0
        %v975 = vadd.f32 0.0, %v974
        %v976 = vpop.f32.mrf.mxu0
        %v977 = vadd.f32 0.0, %v976
        %v978 = vpop.f32.mrf.mxu0
        %v979 = vadd.f32 0.0, %v978
        %v980 = vpop.f32.mrf.mxu0
        %v981 = vadd.f32 0.0, %v980
        %982 = vmatprep.mubr.bf16.mxu0 0
        %983 = vmatmul.mubr.bf16.gmra.mxu0 %v906
        %v984 = vpop.f32.mrf.mxu0
        %v985 = vadd.f32 0.0, %v984
        %v986 = vpop.f32.mrf.mxu0
        %v987 = vadd.f32 0.0, %v986
        %v988 = vpop.f32.mrf.mxu0
        %v989 = vadd.f32 0.0, %v988
        %v990 = vpop.f32.mrf.mxu0
        %v991 = vadd.f32 0.0, %v990
        %992 = vmatprep.mubr.bf16.mxu0 0
        %993 = vmatmul.mubr.bf16.gmra.mxu0 %v909
        %v994 = vpop.f32.mrf.mxu0
        %v995 = vadd.f32 0.0, %v994
        %v996 = vpop.f32.mrf.mxu0
        %v997 = vadd.f32 0.0, %v996
        %v998 = vpop.f32.mrf.mxu0
        %v999 = vadd.f32 0.0, %v998
        %v1000 = vpop.f32.mrf.mxu0
        %v1001 = vadd.f32 0.0, %v1000
        %1002 = vmatprep.mubr.bf16.mxu0 0
        %1003 = vmatmul.mubr.bf16.gmra.mxu0 %v912
        %v1004 = vpop.f32.mrf.mxu0
        %v1005 = vadd.f32 0.0, %v1004
        %v1006 = vpop.f32.mrf.mxu0
        %v1007 = vadd.f32 0.0, %v1006
        %v1008 = vpop.f32.mrf.mxu0
        %v1009 = vadd.f32 0.0, %v1008
        %v1010 = vpop.f32.mrf.mxu0
        %v1011 = vadd.f32 0.0, %v1010
        %1012 = vmatprep.mubr.bf16.mxu0 0
        %1013 = vmatmul.mubr.bf16.gmra.mxu0 %v915
        %v1014 = vpop.f32.mrf.mxu0
        %v1015 = vadd.f32 0.0, %v1014
        %v1016 = vpop.f32.mrf.mxu0
        %v1017 = vadd.f32 0.0, %v1016
        %v1018 = vpop.f32.mrf.mxu0
        %v1019 = vadd.f32 0.0, %v1018
        %v1020 = vpop.f32.mrf.mxu0
        %v1021 = vadd.f32 0.0, %v1020
        %1022 = vmatprep.mubr.bf16.mxu0 0
        %1023 = vmatmul.mubr.bf16.gmra.mxu0 %v918
        %v1024 = vpop.f32.mrf.mxu0
        %v1025 = vadd.f32 0.0, %v1024
        %v1026 = vpop.f32.mrf.mxu0
        %v1027 = vadd.f32 0.0, %v1026
        %v1028 = vpop.f32.mrf.mxu0
        %v1029 = vadd.f32 0.0, %v1028
        %v1030 = vpop.f32.mrf.mxu0
        %v1031 = vadd.f32 0.0, %v1030
        %1032 = vdwg.mxu0
        %1033 = vmatprep.subr.bf16.mxu0 0
        %1034 = vmatpush1.bf16.msra.mxu0 0
        %1035 = vmatprep.subr.bf16.mxu0 0
        %1036 = vmatpush1.bf16.msra.mxu0 0
        %1037 = vmatprep.subr.bf16.mxu0 0
        %1038 = vmatpush1.bf16.msra.mxu0 0
        %1039 = vmatprep.subr.bf16.mxu0 0
        %1040 = vmatpush1.bf16.msra.mxu0 0
        %1041 = vmatprep.subr.bf16.mxu0 %v818
        %1042 = vmatpush1.bf16.msra.mxu0 %v817
        %1043 = vmatprep.subr.bf16.mxu0 %v802
        %1044 = vmatpush1.bf16.msra.mxu0 %v801
        %1045 = vmatprep.subr.bf16.mxu0 %v786
        %1046 = vmatpush1.bf16.msra.mxu0 %v785
        %1047 = vmatprep.subr.bf16.mxu0 %v770
        %1048 = vmatpush1.bf16.msra.mxu0 %v769
        %1049 = vmatprep.subr.bf16.mxu0 0
        %1050 = vmatpush2.bf16.msra.mxu0 0
        %1051 = vmatprep.subr.bf16.mxu0 0
        %1052 = vmatpush2.bf16.msra.mxu0 0
        %1053 = vmatprep.subr.bf16.mxu0 0
        %1054 = vmatpush2.bf16.msra.mxu0 0
        %1055 = vmatprep.subr.bf16.mxu0 0
        %1056 = vmatpush2.bf16.msra.mxu0 0
        %1057 = vmatprep.subr.bf16.mxu0 0
        %1058 = vmatpush2.bf16.msra.mxu0 0
        %1059 = vmatprep.subr.bf16.mxu0 0
        %1060 = vmatpush2.bf16.msra.mxu0 0
        %1061 = vmatprep.subr.bf16.mxu0 0
        %1062 = vmatpush2.bf16.msra.mxu0 0
        %1063 = vmatprep.subr.bf16.mxu0 0
        %1064 = vmatpush2.bf16.msra.mxu0 0
        %1065 = vmatprep.mubr.bf16.mxu0 0
        %1066 = vmatmul.mubr.bf16.gmra.mxu0 %v897
        %v1067 = vpop.f32.mrf.mxu0
        %v1068 = vadd.f32 0.0, %v1067
        %v1069 = vpop.f32.mrf.mxu0
        %v1070 = vadd.f32 0.0, %v1069
        %v1071 = vpop.f32.mrf.mxu0
        %v1072 = vadd.f32 0.0, %v1071
        %v1073 = vpop.f32.mrf.mxu0
        %v1074 = vadd.f32 0.0, %v1073
        %1075 = vmatprep.mubr.bf16.mxu0 0
        %1076 = vmatmul.mubr.bf16.gmra.mxu0 %v900
        %v1077 = vpop.f32.mrf.mxu0
        %v1078 = vadd.f32 0.0, %v1077
        %v1079 = vpop.f32.mrf.mxu0
        %v1080 = vadd.f32 0.0, %v1079
        %v1081 = vpop.f32.mrf.mxu0
        %v1082 = vadd.f32 0.0, %v1081
        %v1083 = vpop.f32.mrf.mxu0
        %v1084 = vadd.f32 0.0, %v1083
        %1085 = vmatprep.mubr.bf16.mxu0 0
        %1086 = vmatmul.mubr.bf16.gmra.mxu0 %v903
        %v1087 = vpop.f32.mrf.mxu0
        %v1088 = vadd.f32 0.0, %v1087
        %v1089 = vpop.f32.mrf.mxu0
        %v1090 = vadd.f32 0.0, %v1089
        %v1091 = vpop.f32.mrf.mxu0
        %v1092 = vadd.f32 0.0, %v1091
        %v1093 = vpop.f32.mrf.mxu0
        %v1094 = vadd.f32 0.0, %v1093
        %1095 = vmatprep.mubr.bf16.mxu0 0
        %1096 = vmatmul.mubr.bf16.gmra.mxu0 %v906
        %v1097 = vpop.f32.mrf.mxu0
        %v1098 = vadd.f32 0.0, %v1097
        %v1099 = vpop.f32.mrf.mxu0
        %v1100 = vadd.f32 0.0, %v1099
        %v1101 = vpop.f32.mrf.mxu0
        %v1102 = vadd.f32 0.0, %v1101
        %v1103 = vpop.f32.mrf.mxu0
        %v1104 = vadd.f32 0.0, %v1103
        %1105 = vmatprep.mubr.bf16.mxu0 0
        %1106 = vmatmul.mubr.bf16.gmra.mxu0 %v909
        %v1107 = vpop.f32.mrf.mxu0
        %v1108 = vadd.f32 0.0, %v1107
        %v1109 = vpop.f32.mrf.mxu0
        %v1110 = vadd.f32 0.0, %v1109
        %v1111 = vpop.f32.mrf.mxu0
        %v1112 = vadd.f32 0.0, %v1111
        %v1113 = vpop.f32.mrf.mxu0
        %v1114 = vadd.f32 0.0, %v1113
        %1115 = vmatprep.mubr.bf16.mxu0 0
        %1116 = vmatmul.mubr.bf16.gmra.mxu0 %v912
        %v1117 = vpop.f32.mrf.mxu0
        %v1118 = vadd.f32 0.0, %v1117
        %v1119 = vpop.f32.mrf.mxu0
        %v1120 = vadd.f32 0.0, %v1119
        %v1121 = vpop.f32.mrf.mxu0
        %v1122 = vadd.f32 0.0, %v1121
        %v1123 = vpop.f32.mrf.mxu0
        %v1124 = vadd.f32 0.0, %v1123
        %1125 = vmatprep.mubr.bf16.mxu0 0
        %1126 = vmatmul.mubr.bf16.gmra.mxu0 %v915
        %v1127 = vpop.f32.mrf.mxu0
        %v1128 = vadd.f32 0.0, %v1127
        %v1129 = vpop.f32.mrf.mxu0
        %v1130 = vadd.f32 0.0, %v1129
        %v1131 = vpop.f32.mrf.mxu0
        %v1132 = vadd.f32 0.0, %v1131
        %v1133 = vpop.f32.mrf.mxu0
        %v1134 = vadd.f32 0.0, %v1133
        %1135 = vmatprep.mubr.bf16.mxu0 0
        %1136 = vmatmul.mubr.bf16.gmra.mxu0 %v918
        %v1137 = vpop.f32.mrf.mxu0
        %v1138 = vadd.f32 0.0, %v1137
        %v1139 = vpop.f32.mrf.mxu0
        %v1140 = vadd.f32 0.0, %v1139
        %v1141 = vpop.f32.mrf.mxu0
        %v1142 = vadd.f32 0.0, %v1141
        %v1143 = vpop.f32.mrf.mxu0
        %v1144 = vadd.f32 0.0, %v1143
        %1145 = vdwg.mxu0
        %1146 = vmatprep.subr.bf16.mxu0 0
        %1147 = vmatpush1.bf16.msra.mxu0 0
        %1148 = vmatprep.subr.bf16.mxu0 0
        %1149 = vmatpush1.bf16.msra.mxu0 0
        %1150 = vmatprep.subr.bf16.mxu0 0
        %1151 = vmatpush1.bf16.msra.mxu0 0
        %1152 = vmatprep.subr.bf16.mxu0 0
        %1153 = vmatpush1.bf16.msra.mxu0 0
        %1154 = vmatprep.subr.bf16.mxu0 %v820
        %1155 = vmatpush1.bf16.msra.mxu0 %v819
        %1156 = vmatprep.subr.bf16.mxu0 %v804
        %1157 = vmatpush1.bf16.msra.mxu0 %v803
        %1158 = vmatprep.subr.bf16.mxu0 %v788
        %1159 = vmatpush1.bf16.msra.mxu0 %v787
        %1160 = vmatprep.subr.bf16.mxu0 %v772
        %1161 = vmatpush1.bf16.msra.mxu0 %v771
        %1162 = vmatprep.subr.bf16.mxu0 0
        %1163 = vmatpush2.bf16.msra.mxu0 0
        %1164 = vmatprep.subr.bf16.mxu0 0
        %1165 = vmatpush2.bf16.msra.mxu0 0
        %1166 = vmatprep.subr.bf16.mxu0 0
        %1167 = vmatpush2.bf16.msra.mxu0 0
        %1168 = vmatprep.subr.bf16.mxu0 0
        %1169 = vmatpush2.bf16.msra.mxu0 0
        %1170 = vmatprep.subr.bf16.mxu0 0
        %1171 = vmatpush2.bf16.msra.mxu0 0
        %1172 = vmatprep.subr.bf16.mxu0 0
        %1173 = vmatpush2.bf16.msra.mxu0 0
        %1174 = vmatprep.subr.bf16.mxu0 0
        %1175 = vmatpush2.bf16.msra.mxu0 0
        %1176 = vmatprep.subr.bf16.mxu0 0
        %1177 = vmatpush2.bf16.msra.mxu0 0
        %1178 = vmatprep.mubr.bf16.mxu0 0
        %1179 = vmatmul.mubr.bf16.gmra.mxu0 %v897
        %v1180 = vpop.f32.mrf.mxu0
        %v1181 = vadd.f32 0.0, %v1180
        %v1182 = vpop.f32.mrf.mxu0
        %v1183 = vadd.f32 0.0, %v1182
        %v1184 = vpop.f32.mrf.mxu0
        %v1185 = vadd.f32 0.0, %v1184
        %v1186 = vpop.f32.mrf.mxu0
        %v1187 = vadd.f32 0.0, %v1186
        %1188 = vmatprep.mubr.bf16.mxu0 0
        %1189 = vmatmul.mubr.bf16.gmra.mxu0 %v900
        %v1190 = vpop.f32.mrf.mxu0
        %v1191 = vadd.f32 0.0, %v1190
        %v1192 = vpop.f32.mrf.mxu0
        %v1193 = vadd.f32 0.0, %v1192
        %v1194 = vpop.f32.mrf.mxu0
        %v1195 = vadd.f32 0.0, %v1194
        %v1196 = vpop.f32.mrf.mxu0
        %v1197 = vadd.f32 0.0, %v1196
        %1198 = vmatprep.mubr.bf16.mxu0 0
        %1199 = vmatmul.mubr.bf16.gmra.mxu0 %v903
        %v1200 = vpop.f32.mrf.mxu0
        %v1201 = vadd.f32 0.0, %v1200
        %v1202 = vpop.f32.mrf.mxu0
        %v1203 = vadd.f32 0.0, %v1202
        %v1204 = vpop.f32.mrf.mxu0
        %v1205 = vadd.f32 0.0, %v1204
        %v1206 = vpop.f32.mrf.mxu0
        %v1207 = vadd.f32 0.0, %v1206
        %1208 = vmatprep.mubr.bf16.mxu0 0
        %1209 = vmatmul.mubr.bf16.gmra.mxu0 %v906
        %v1210 = vpop.f32.mrf.mxu0
        %v1211 = vadd.f32 0.0, %v1210
        %v1212 = vpop.f32.mrf.mxu0
        %v1213 = vadd.f32 0.0, %v1212
        %v1214 = vpop.f32.mrf.mxu0
        %v1215 = vadd.f32 0.0, %v1214
        %v1216 = vpop.f32.mrf.mxu0
        %v1217 = vadd.f32 0.0, %v1216
        %1218 = vmatprep.mubr.bf16.mxu0 0
        %1219 = vmatmul.mubr.bf16.gmra.mxu0 %v909
        %v1220 = vpop.f32.mrf.mxu0
        %v1221 = vadd.f32 0.0, %v1220
        %v1222 = vpop.f32.mrf.mxu0
        %v1223 = vadd.f32 0.0, %v1222
        %v1224 = vpop.f32.mrf.mxu0
        %v1225 = vadd.f32 0.0, %v1224
        %v1226 = vpop.f32.mrf.mxu0
        %v1227 = vadd.f32 0.0, %v1226
        %1228 = vmatprep.mubr.bf16.mxu0 0
        %1229 = vmatmul.mubr.bf16.gmra.mxu0 %v912
        %v1230 = vpop.f32.mrf.mxu0
        %v1231 = vadd.f32 0.0, %v1230
        %v1232 = vpop.f32.mrf.mxu0
        %v1233 = vadd.f32 0.0, %v1232
        %v1234 = vpop.f32.mrf.mxu0
        %v1235 = vadd.f32 0.0, %v1234
        %v1236 = vpop.f32.mrf.mxu0
        %v1237 = vadd.f32 0.0, %v1236
        %1238 = vmatprep.mubr.bf16.mxu0 0
        %1239 = vmatmul.mubr.bf16.gmra.mxu0 %v915
        %v1240 = vpop.f32.mrf.mxu0
        %v1241 = vadd.f32 0.0, %v1240
        %v1242 = vpop.f32.mrf.mxu0
        %v1243 = vadd.f32 0.0, %v1242
        %v1244 = vpop.f32.mrf.mxu0
        %v1245 = vadd.f32 0.0, %v1244
        %v1246 = vpop.f32.mrf.mxu0
        %v1247 = vadd.f32 0.0, %v1246
        %1248 = vmatprep.mubr.bf16.mxu0 0
        %1249 = vmatmul.mubr.bf16.gmra.mxu0 %v918
        %v1250 = vpop.f32.mrf.mxu0
        %v1251 = vadd.f32 0.0, %v1250
        %v1252 = vpop.f32.mrf.mxu0
        %v1253 = vadd.f32 0.0, %v1252
        %v1254 = vpop.f32.mrf.mxu0
        %v1255 = vadd.f32 0.0, %v1254
        %v1256 = vpop.f32.mrf.mxu0
        %v1257 = vadd.f32 0.0, %v1256
        %1258 = vdwg.mxu0
        %1259 = vmatprep.subr.bf16.mxu0 0
        %1260 = vmatpush1.bf16.msra.mxu0 0
        %1261 = vmatprep.subr.bf16.mxu0 0
        %1262 = vmatpush1.bf16.msra.mxu0 0
        %1263 = vmatprep.subr.bf16.mxu0 0
        %1264 = vmatpush1.bf16.msra.mxu0 0
        %1265 = vmatprep.subr.bf16.mxu0 0
        %1266 = vmatpush1.bf16.msra.mxu0 0
        %1267 = vmatprep.subr.bf16.mxu0 %v822
        %1268 = vmatpush1.bf16.msra.mxu0 %v821
        %1269 = vmatprep.subr.bf16.mxu0 %v806
        %1270 = vmatpush1.bf16.msra.mxu0 %v805
        %1271 = vmatprep.subr.bf16.mxu0 %v790
        %1272 = vmatpush1.bf16.msra.mxu0 %v789
        %1273 = vmatprep.subr.bf16.mxu0 %v774
        %1274 = vmatpush1.bf16.msra.mxu0 %v773
        %1275 = vmatprep.subr.bf16.mxu0 0
        %1276 = vmatpush2.bf16.msra.mxu0 0
        %1277 = vmatprep.subr.bf16.mxu0 0
        %1278 = vmatpush2.bf16.msra.mxu0 0
        %1279 = vmatprep.subr.bf16.mxu0 0
        %1280 = vmatpush2.bf16.msra.mxu0 0
        %1281 = vmatprep.subr.bf16.mxu0 0
        %1282 = vmatpush2.bf16.msra.mxu0 0
        %1283 = vmatprep.subr.bf16.mxu0 0
        %1284 = vmatpush2.bf16.msra.mxu0 0
        %1285 = vmatprep.subr.bf16.mxu0 0
        %1286 = vmatpush2.bf16.msra.mxu0 0
        %1287 = vmatprep.subr.bf16.mxu0 0
        %1288 = vmatpush2.bf16.msra.mxu0 0
        %1289 = vmatprep.subr.bf16.mxu0 0
        %1290 = vmatpush2.bf16.msra.mxu0 0
        %1291 = vmatprep.mubr.bf16.mxu0 0
        %1292 = vmatmul.mubr.bf16.gmra.mxu0 %v897
        %v1293 = vpop.f32.mrf.mxu0
        %v1294 = vadd.f32 0.0, %v1293
        %v1295 = vpop.f32.mrf.mxu0
        %v1296 = vadd.f32 0.0, %v1295
        %v1297 = vpop.f32.mrf.mxu0
        %v1298 = vadd.f32 0.0, %v1297
        %v1299 = vpop.f32.mrf.mxu0
        %v1300 = vadd.f32 0.0, %v1299
        %1301 = vmatprep.mubr.bf16.mxu0 0
        %1302 = vmatmul.mubr.bf16.gmra.mxu0 %v900
        %v1303 = vpop.f32.mrf.mxu0
        %v1304 = vadd.f32 0.0, %v1303
        %v1305 = vpop.f32.mrf.mxu0
        %v1306 = vadd.f32 0.0, %v1305
        %v1307 = vpop.f32.mrf.mxu0
        %v1308 = vadd.f32 0.0, %v1307
        %v1309 = vpop.f32.mrf.mxu0
        %v1310 = vadd.f32 0.0, %v1309
        %1311 = vmatprep.mubr.bf16.mxu0 0
        %1312 = vmatmul.mubr.bf16.gmra.mxu0 %v903
        %v1313 = vpop.f32.mrf.mxu0
        %v1314 = vadd.f32 0.0, %v1313
        %v1315 = vpop.f32.mrf.mxu0
        %v1316 = vadd.f32 0.0, %v1315
        %v1317 = vpop.f32.mrf.mxu0
        %v1318 = vadd.f32 0.0, %v1317
        %v1319 = vpop.f32.mrf.mxu0
        %v1320 = vadd.f32 0.0, %v1319
        %1321 = vmatprep.mubr.bf16.mxu0 0
        %1322 = vmatmul.mubr.bf16.gmra.mxu0 %v906
        %v1323 = vpop.f32.mrf.mxu0
        %v1324 = vadd.f32 0.0, %v1323
        %v1325 = vpop.f32.mrf.mxu0
        %v1326 = vadd.f32 0.0, %v1325
        %v1327 = vpop.f32.mrf.mxu0
        %v1328 = vadd.f32 0.0, %v1327
        %v1329 = vpop.f32.mrf.mxu0
        %v1330 = vadd.f32 0.0, %v1329
        %1331 = vmatprep.mubr.bf16.mxu0 0
        %1332 = vmatmul.mubr.bf16.gmra.mxu0 %v909
        %v1333 = vpop.f32.mrf.mxu0
        %v1334 = vadd.f32 0.0, %v1333
        %v1335 = vpop.f32.mrf.mxu0
        %v1336 = vadd.f32 0.0, %v1335
        %v1337 = vpop.f32.mrf.mxu0
        %v1338 = vadd.f32 0.0, %v1337
        %v1339 = vpop.f32.mrf.mxu0
        %v1340 = vadd.f32 0.0, %v1339
        %1341 = vmatprep.mubr.bf16.mxu0 0
        %1342 = vmatmul.mubr.bf16.gmra.mxu0 %v912
        %v1343 = vpop.f32.mrf.mxu0
        %v1344 = vadd.f32 0.0, %v1343
        %v1345 = vpop.f32.mrf.mxu0
        %v1346 = vadd.f32 0.0, %v1345
        %v1347 = vpop.f32.mrf.mxu0
        %v1348 = vadd.f32 0.0, %v1347
        %v1349 = vpop.f32.mrf.mxu0
        %v1350 = vadd.f32 0.0, %v1349
        %1351 = vmatprep.mubr.bf16.mxu0 0
        %1352 = vmatmul.mubr.bf16.gmra.mxu0 %v915
        %v1353 = vpop.f32.mrf.mxu0
        %v1354 = vadd.f32 0.0, %v1353
        %v1355 = vpop.f32.mrf.mxu0
        %v1356 = vadd.f32 0.0, %v1355
        %v1357 = vpop.f32.mrf.mxu0
        %v1358 = vadd.f32 0.0, %v1357
        %v1359 = vpop.f32.mrf.mxu0
        %v1360 = vadd.f32 0.0, %v1359
        %1361 = vmatprep.mubr.bf16.mxu0 0
        %1362 = vmatmul.mubr.bf16.gmra.mxu0 %v918
        %v1363 = vpop.f32.mrf.mxu0
        %v1364 = vadd.f32 0.0, %v1363
        %v1365 = vpop.f32.mrf.mxu0
        %v1366 = vadd.f32 0.0, %v1365
        %v1367 = vpop.f32.mrf.mxu0
        %v1368 = vadd.f32 0.0, %v1367
        %v1369 = vpop.f32.mrf.mxu0
        %v1370 = vadd.f32 0.0, %v1369
        %1371 = vdwg.mxu0
        %1372 = vmatprep.subr.bf16.mxu0 0
        %1373 = vmatpush1.bf16.msra.mxu0 0
        %1374 = vmatprep.subr.bf16.mxu0 0
        %1375 = vmatpush1.bf16.msra.mxu0 0
        %1376 = vmatprep.subr.bf16.mxu0 0
        %1377 = vmatpush1.bf16.msra.mxu0 0
        %1378 = vmatprep.subr.bf16.mxu0 0
        %1379 = vmatpush1.bf16.msra.mxu0 0
        %1380 = vmatprep.subr.bf16.mxu0 %v824
        %1381 = vmatpush1.bf16.msra.mxu0 %v823
        %1382 = vmatprep.subr.bf16.mxu0 %v808
        %1383 = vmatpush1.bf16.msra.mxu0 %v807
        %1384 = vmatprep.subr.bf16.mxu0 %v792
        %1385 = vmatpush1.bf16.msra.mxu0 %v791
        %1386 = vmatprep.subr.bf16.mxu0 %v776
        %1387 = vmatpush1.bf16.msra.mxu0 %v775
        %1388 = vmatprep.subr.bf16.mxu0 0
        %1389 = vmatpush2.bf16.msra.mxu0 0
        %1390 = vmatprep.subr.bf16.mxu0 0
        %1391 = vmatpush2.bf16.msra.mxu0 0
        %1392 = vmatprep.subr.bf16.mxu0 0
        %1393 = vmatpush2.bf16.msra.mxu0 0
        %1394 = vmatprep.subr.bf16.mxu0 0
        %1395 = vmatpush2.bf16.msra.mxu0 0
        %1396 = vmatprep.subr.bf16.mxu0 0
        %1397 = vmatpush2.bf16.msra.mxu0 0
        %1398 = vmatprep.subr.bf16.mxu0 0
        %1399 = vmatpush2.bf16.msra.mxu0 0
        %1400 = vmatprep.subr.bf16.mxu0 0
        %1401 = vmatpush2.bf16.msra.mxu0 0
        %1402 = vmatprep.subr.bf16.mxu0 0
        %1403 = vmatpush2.bf16.msra.mxu0 0
        %1404 = vmatprep.mubr.bf16.mxu0 0
        %1405 = vmatmul.mubr.bf16.gmra.mxu0 %v897
        %v1406 = vpop.f32.mrf.mxu0
        %v1407 = vadd.f32 0.0, %v1406
        %v1408 = vpop.f32.mrf.mxu0
        %v1409 = vadd.f32 0.0, %v1408
        %v1410 = vpop.f32.mrf.mxu0
        %v1411 = vadd.f32 0.0, %v1410
        %v1412 = vpop.f32.mrf.mxu0
        %v1413 = vadd.f32 0.0, %v1412
        %1414 = vmatprep.mubr.bf16.mxu0 0
        %1415 = vmatmul.mubr.bf16.gmra.mxu0 %v900
        %v1416 = vpop.f32.mrf.mxu0
        %v1417 = vadd.f32 0.0, %v1416
        %v1418 = vpop.f32.mrf.mxu0
        %v1419 = vadd.f32 0.0, %v1418
        %v1420 = vpop.f32.mrf.mxu0
        %v1421 = vadd.f32 0.0, %v1420
        %v1422 = vpop.f32.mrf.mxu0
        %v1423 = vadd.f32 0.0, %v1422
        %1424 = vmatprep.mubr.bf16.mxu0 0
        %1425 = vmatmul.mubr.bf16.gmra.mxu0 %v903
        %v1426 = vpop.f32.mrf.mxu0
        %v1427 = vadd.f32 0.0, %v1426
        %v1428 = vpop.f32.mrf.mxu0
        %v1429 = vadd.f32 0.0, %v1428
        %v1430 = vpop.f32.mrf.mxu0
        %v1431 = vadd.f32 0.0, %v1430
        %v1432 = vpop.f32.mrf.mxu0
        %v1433 = vadd.f32 0.0, %v1432
        %1434 = vmatprep.mubr.bf16.mxu0 0
        %1435 = vmatmul.mubr.bf16.gmra.mxu0 %v906
        %v1436 = vpop.f32.mrf.mxu0
        %v1437 = vadd.f32 0.0, %v1436
        %v1438 = vpop.f32.mrf.mxu0
        %v1439 = vadd.f32 0.0, %v1438
        %v1440 = vpop.f32.mrf.mxu0
        %v1441 = vadd.f32 0.0, %v1440
        %v1442 = vpop.f32.mrf.mxu0
        %v1443 = vadd.f32 0.0, %v1442
        %1444 = vmatprep.mubr.bf16.mxu0 0
        %1445 = vmatmul.mubr.bf16.gmra.mxu0 %v909
        %v1446 = vpop.f32.mrf.mxu0
        %v1447 = vadd.f32 0.0, %v1446
        %v1448 = vpop.f32.mrf.mxu0
        %v1449 = vadd.f32 0.0, %v1448
        %v1450 = vpop.f32.mrf.mxu0
        %v1451 = vadd.f32 0.0, %v1450
        %v1452 = vpop.f32.mrf.mxu0
        %v1453 = vadd.f32 0.0, %v1452
        %1454 = vmatprep.mubr.bf16.mxu0 0
        %1455 = vmatmul.mubr.bf16.gmra.mxu0 %v912
        %v1456 = vpop.f32.mrf.mxu0
        %v1457 = vadd.f32 0.0, %v1456
        %v1458 = vpop.f32.mrf.mxu0
        %v1459 = vadd.f32 0.0, %v1458
        %v1460 = vpop.f32.mrf.mxu0
        %v1461 = vadd.f32 0.0, %v1460
        %v1462 = vpop.f32.mrf.mxu0
        %v1463 = vadd.f32 0.0, %v1462
        %1464 = vmatprep.mubr.bf16.mxu0 0
        %1465 = vmatmul.mubr.bf16.gmra.mxu0 %v915
        %v1466 = vpop.f32.mrf.mxu0
        %v1467 = vadd.f32 0.0, %v1466
        %v1468 = vpop.f32.mrf.mxu0
        %v1469 = vadd.f32 0.0, %v1468
        %v1470 = vpop.f32.mrf.mxu0
        %v1471 = vadd.f32 0.0, %v1470
        %v1472 = vpop.f32.mrf.mxu0
        %v1473 = vadd.f32 0.0, %v1472
        %1474 = vmatprep.mubr.bf16.mxu0 0
        %1475 = vmatmul.mubr.bf16.gmra.mxu0 %v918
        %v1476 = vpop.f32.mrf.mxu0
        %v1477 = vadd.f32 0.0, %v1476
        %v1478 = vpop.f32.mrf.mxu0
        %v1479 = vadd.f32 0.0, %v1478
        %v1480 = vpop.f32.mrf.mxu0
        %v1481 = vadd.f32 0.0, %v1480
        %v1482 = vpop.f32.mrf.mxu0
        %v1483 = vadd.f32 0.0, %v1482
        %1484 = vdwg.mxu0
        %1485 = vmatprep.subr.bf16.mxu0 0
        %1486 = vmatpush1.bf16.msra.mxu0 0
        %1487 = vmatprep.subr.bf16.mxu0 0
        %1488 = vmatpush1.bf16.msra.mxu0 0
        %1489 = vmatprep.subr.bf16.mxu0 0
        %1490 = vmatpush1.bf16.msra.mxu0 0
        %1491 = vmatprep.subr.bf16.mxu0 0
        %1492 = vmatpush1.bf16.msra.mxu0 0
        %1493 = vmatprep.subr.bf16.mxu0 %v826
        %1494 = vmatpush1.bf16.msra.mxu0 %v825
        %1495 = vmatprep.subr.bf16.mxu0 %v810
        %1496 = vmatpush1.bf16.msra.mxu0 %v809
        %1497 = vmatprep.subr.bf16.mxu0 %v794
        %1498 = vmatpush1.bf16.msra.mxu0 %v793
        %1499 = vmatprep.subr.bf16.mxu0 %v778
        %1500 = vmatpush1.bf16.msra.mxu0 %v777
        %1501 = vmatprep.subr.bf16.mxu0 0
        %1502 = vmatpush2.bf16.msra.mxu0 0
        %1503 = vmatprep.subr.bf16.mxu0 0
        %1504 = vmatpush2.bf16.msra.mxu0 0
        %1505 = vmatprep.subr.bf16.mxu0 0
        %1506 = vmatpush2.bf16.msra.mxu0 0
        %1507 = vmatprep.subr.bf16.mxu0 0
        %1508 = vmatpush2.bf16.msra.mxu0 0
        %1509 = vmatprep.subr.bf16.mxu0 0
        %1510 = vmatpush2.bf16.msra.mxu0 0
        %1511 = vmatprep.subr.bf16.mxu0 0
        %1512 = vmatpush2.bf16.msra.mxu0 0
        %1513 = vmatprep.subr.bf16.mxu0 0
        %1514 = vmatpush2.bf16.msra.mxu0 0
        %1515 = vmatprep.subr.bf16.mxu0 0
        %1516 = vmatpush2.bf16.msra.mxu0 0
        %1517 = vmatprep.mubr.bf16.mxu0 0
        %1518 = vmatmul.mubr.bf16.gmra.mxu0 %v897
        %v1519 = vpop.f32.mrf.mxu0
        %v1520 = vadd.f32 0.0, %v1519
        %v1521 = vpop.f32.mrf.mxu0
        %v1522 = vadd.f32 0.0, %v1521
        %v1523 = vpop.f32.mrf.mxu0
        %v1524 = vadd.f32 0.0, %v1523
        %v1525 = vpop.f32.mrf.mxu0
        %v1526 = vadd.f32 0.0, %v1525
        %1527 = vmatprep.mubr.bf16.mxu0 0
        %1528 = vmatmul.mubr.bf16.gmra.mxu0 %v900
        %v1529 = vpop.f32.mrf.mxu0
        %v1530 = vadd.f32 0.0, %v1529
        %v1531 = vpop.f32.mrf.mxu0
        %v1532 = vadd.f32 0.0, %v1531
        %v1533 = vpop.f32.mrf.mxu0
        %v1534 = vadd.f32 0.0, %v1533
        %v1535 = vpop.f32.mrf.mxu0
        %v1536 = vadd.f32 0.0, %v1535
        %1537 = vmatprep.mubr.bf16.mxu0 0
        %1538 = vmatmul.mubr.bf16.gmra.mxu0 %v903
        %v1539 = vpop.f32.mrf.mxu0
        %v1540 = vadd.f32 0.0, %v1539
        %v1541 = vpop.f32.mrf.mxu0
        %v1542 = vadd.f32 0.0, %v1541
        %v1543 = vpop.f32.mrf.mxu0
        %v1544 = vadd.f32 0.0, %v1543
        %v1545 = vpop.f32.mrf.mxu0
        %v1546 = vadd.f32 0.0, %v1545
        %1547 = vmatprep.mubr.bf16.mxu0 0
        %1548 = vmatmul.mubr.bf16.gmra.mxu0 %v906
        %v1549 = vpop.f32.mrf.mxu0
        %v1550 = vadd.f32 0.0, %v1549
        %v1551 = vpop.f32.mrf.mxu0
        %v1552 = vadd.f32 0.0, %v1551
        %v1553 = vpop.f32.mrf.mxu0
        %v1554 = vadd.f32 0.0, %v1553
        %v1555 = vpop.f32.mrf.mxu0
        %v1556 = vadd.f32 0.0, %v1555
        %1557 = vmatprep.mubr.bf16.mxu0 0
        %1558 = vmatmul.mubr.bf16.gmra.mxu0 %v909
        %v1559 = vpop.f32.mrf.mxu0
        %v1560 = vadd.f32 0.0, %v1559
        %v1561 = vpop.f32.mrf.mxu0
        %v1562 = vadd.f32 0.0, %v1561
        %v1563 = vpop.f32.mrf.mxu0
        %v1564 = vadd.f32 0.0, %v1563
        %v1565 = vpop.f32.mrf.mxu0
        %v1566 = vadd.f32 0.0, %v1565
        %1567 = vmatprep.mubr.bf16.mxu0 0
        %1568 = vmatmul.mubr.bf16.gmra.mxu0 %v912
        %v1569 = vpop.f32.mrf.mxu0
        %v1570 = vadd.f32 0.0, %v1569
        %v1571 = vpop.f32.mrf.mxu0
        %v1572 = vadd.f32 0.0, %v1571
        %v1573 = vpop.f32.mrf.mxu0
        %v1574 = vadd.f32 0.0, %v1573
        %v1575 = vpop.f32.mrf.mxu0
        %v1576 = vadd.f32 0.0, %v1575
        %1577 = vmatprep.mubr.bf16.mxu0 0
        %1578 = vmatmul.mubr.bf16.gmra.mxu0 %v915
        %v1579 = vpop.f32.mrf.mxu0
        %v1580 = vadd.f32 0.0, %v1579
        %v1581 = vpop.f32.mrf.mxu0
        %v1582 = vadd.f32 0.0, %v1581
        %v1583 = vpop.f32.mrf.mxu0
        %v1584 = vadd.f32 0.0, %v1583
        %v1585 = vpop.f32.mrf.mxu0
        %v1586 = vadd.f32 0.0, %v1585
        %1587 = vmatprep.mubr.bf16.mxu0 0
        %1588 = vmatmul.mubr.bf16.gmra.mxu0 %v918
        %v1589 = vpop.f32.mrf.mxu0
        %v1590 = vadd.f32 0.0, %v1589
        %v1591 = vpop.f32.mrf.mxu0
        %v1592 = vadd.f32 0.0, %v1591
        %v1593 = vpop.f32.mrf.mxu0
        %v1594 = vadd.f32 0.0, %v1593
        %v1595 = vpop.f32.mrf.mxu0
        %v1596 = vadd.f32 0.0, %v1595
        %1597 = vdwg.mxu0
        %1598 = vmatprep.subr.bf16.mxu0 0
        %1599 = vmatpush1.bf16.msra.mxu0 0
        %1600 = vmatprep.subr.bf16.mxu0 0
        %1601 = vmatpush1.bf16.msra.mxu0 0
        %1602 = vmatprep.subr.bf16.mxu0 0
        %1603 = vmatpush1.bf16.msra.mxu0 0
        %1604 = vmatprep.subr.bf16.mxu0 0
        %1605 = vmatpush1.bf16.msra.mxu0 0
        %1606 = vmatprep.subr.bf16.mxu0 %v828
        %1607 = vmatpush1.bf16.msra.mxu0 %v827
        %1608 = vmatprep.subr.bf16.mxu0 %v812
        %1609 = vmatpush1.bf16.msra.mxu0 %v811
        %1610 = vmatprep.subr.bf16.mxu0 %v796
        %1611 = vmatpush1.bf16.msra.mxu0 %v795
        %1612 = vmatprep.subr.bf16.mxu0 %v780
        %1613 = vmatpush1.bf16.msra.mxu0 %v779
        %1614 = vmatprep.subr.bf16.mxu0 0
        %1615 = vmatpush2.bf16.msra.mxu0 0
        %1616 = vmatprep.subr.bf16.mxu0 0
        %1617 = vmatpush2.bf16.msra.mxu0 0
        %1618 = vmatprep.subr.bf16.mxu0 0
        %1619 = vmatpush2.bf16.msra.mxu0 0
        %1620 = vmatprep.subr.bf16.mxu0 0
        %1621 = vmatpush2.bf16.msra.mxu0 0
        %1622 = vmatprep.subr.bf16.mxu0 0
        %1623 = vmatpush2.bf16.msra.mxu0 0
        %1624 = vmatprep.subr.bf16.mxu0 0
        %1625 = vmatpush2.bf16.msra.mxu0 0
        %1626 = vmatprep.subr.bf16.mxu0 0
        %1627 = vmatpush2.bf16.msra.mxu0 0
        %1628 = vmatprep.subr.bf16.mxu0 0
        %1629 = vmatpush2.bf16.msra.mxu0 0
        %1630 = vmatprep.mubr.bf16.mxu0 0
        %1631 = vmatmul.mubr.bf16.gmra.mxu0 %v897
        %v1632 = vpop.f32.mrf.mxu0
        %v1633 = vadd.f32 0.0, %v1632
        %v1634 = vpop.f32.mrf.mxu0
        %v1635 = vadd.f32 0.0, %v1634
        %v1636 = vpop.f32.mrf.mxu0
        %v1637 = vadd.f32 0.0, %v1636
        %v1638 = vpop.f32.mrf.mxu0
        %v1639 = vadd.f32 0.0, %v1638
        %1640 = vmatprep.mubr.bf16.mxu0 0
        %1641 = vmatmul.mubr.bf16.gmra.mxu0 %v900
        %v1642 = vpop.f32.mrf.mxu0
        %v1643 = vadd.f32 0.0, %v1642
        %v1644 = vpop.f32.mrf.mxu0
        %v1645 = vadd.f32 0.0, %v1644
        %v1646 = vpop.f32.mrf.mxu0
        %v1647 = vadd.f32 0.0, %v1646
        %v1648 = vpop.f32.mrf.mxu0
        %v1649 = vadd.f32 0.0, %v1648
        %1650 = vmatprep.mubr.bf16.mxu0 0
        %1651 = vmatmul.mubr.bf16.gmra.mxu0 %v903
        %v1652 = vpop.f32.mrf.mxu0
        %v1653 = vadd.f32 0.0, %v1652
        %v1654 = vpop.f32.mrf.mxu0
        %v1655 = vadd.f32 0.0, %v1654
        %v1656 = vpop.f32.mrf.mxu0
        %v1657 = vadd.f32 0.0, %v1656
        %v1658 = vpop.f32.mrf.mxu0
        %v1659 = vadd.f32 0.0, %v1658
        %1660 = vmatprep.mubr.bf16.mxu0 0
        %1661 = vmatmul.mubr.bf16.gmra.mxu0 %v906
        %v1662 = vpop.f32.mrf.mxu0
        %v1663 = vadd.f32 0.0, %v1662
        %v1664 = vpop.f32.mrf.mxu0
        %v1665 = vadd.f32 0.0, %v1664
        %v1666 = vpop.f32.mrf.mxu0
        %v1667 = vadd.f32 0.0, %v1666
        %v1668 = vpop.f32.mrf.mxu0
        %v1669 = vadd.f32 0.0, %v1668
        %1670 = vmatprep.mubr.bf16.mxu0 0
        %1671 = vmatmul.mubr.bf16.gmra.mxu0 %v909
        %v1672 = vpop.f32.mrf.mxu0
        %v1673 = vadd.f32 0.0, %v1672
        %v1674 = vpop.f32.mrf.mxu0
        %v1675 = vadd.f32 0.0, %v1674
        %v1676 = vpop.f32.mrf.mxu0
        %v1677 = vadd.f32 0.0, %v1676
        %v1678 = vpop.f32.mrf.mxu0
        %v1679 = vadd.f32 0.0, %v1678
        %1680 = vmatprep.mubr.bf16.mxu0 0
        %1681 = vmatmul.mubr.bf16.gmra.mxu0 %v912
        %v1682 = vpop.f32.mrf.mxu0
        %v1683 = vadd.f32 0.0, %v1682
        %v1684 = vpop.f32.mrf.mxu0
        %v1685 = vadd.f32 0.0, %v1684
        %v1686 = vpop.f32.mrf.mxu0
        %v1687 = vadd.f32 0.0, %v1686
        %v1688 = vpop.f32.mrf.mxu0
        %v1689 = vadd.f32 0.0, %v1688
        %1690 = vmatprep.mubr.bf16.mxu0 0
        %1691 = vmatmul.mubr.bf16.gmra.mxu0 %v915
        %v1692 = vpop.f32.mrf.mxu0
        %v1693 = vadd.f32 0.0, %v1692
        %v1694 = vpop.f32.mrf.mxu0
        %v1695 = vadd.f32 0.0, %v1694
        %v1696 = vpop.f32.mrf.mxu0
        %v1697 = vadd.f32 0.0, %v1696
        %v1698 = vpop.f32.mrf.mxu0
        %v1699 = vadd.f32 0.0, %v1698
        %1700 = vmatprep.mubr.bf16.mxu0 0
        %1701 = vmatmul.mubr.bf16.gmra.mxu0 %v918
        %v1702 = vpop.f32.mrf.mxu0
        %v1703 = vadd.f32 0.0, %v1702
        %v1704 = vpop.f32.mrf.mxu0
        %v1705 = vadd.f32 0.0, %v1704
        %v1706 = vpop.f32.mrf.mxu0
        %v1707 = vadd.f32 0.0, %v1706
        %v1708 = vpop.f32.mrf.mxu0
        %v1709 = vadd.f32 0.0, %v1708
        %1710 = vdwg.mxu0
        %1711 = vmatprep.subr.bf16.mxu0 0
        %1712 = vmatpush1.bf16.msra.mxu0 0
        %1713 = vmatprep.subr.bf16.mxu0 0
        %1714 = vmatpush1.bf16.msra.mxu0 0
        %1715 = vmatprep.subr.bf16.mxu0 0
        %1716 = vmatpush1.bf16.msra.mxu0 0
        %1717 = vmatprep.subr.bf16.mxu0 0
        %1718 = vmatpush1.bf16.msra.mxu0 0
        %1719 = vmatprep.subr.bf16.mxu0 %v830
        %1720 = vmatpush1.bf16.msra.mxu0 %v829
        %1721 = vmatprep.subr.bf16.mxu0 %v814
        %1722 = vmatpush1.bf16.msra.mxu0 %v813
        %1723 = vmatprep.subr.bf16.mxu0 %v798
        %1724 = vmatpush1.bf16.msra.mxu0 %v797
        %1725 = vmatprep.subr.bf16.mxu0 %v782
        %1726 = vmatpush1.bf16.msra.mxu0 %v781
        %1727 = vmatprep.subr.bf16.mxu0 0
        %1728 = vmatpush2.bf16.msra.mxu0 0
        %1729 = vmatprep.subr.bf16.mxu0 0
        %1730 = vmatpush2.bf16.msra.mxu0 0
        %1731 = vmatprep.subr.bf16.mxu0 0
        %1732 = vmatpush2.bf16.msra.mxu0 0
        %1733 = vmatprep.subr.bf16.mxu0 0
        %1734 = vmatpush2.bf16.msra.mxu0 0
        %1735 = vmatprep.subr.bf16.mxu0 0
        %1736 = vmatpush2.bf16.msra.mxu0 0
        %1737 = vmatprep.subr.bf16.mxu0 0
        %1738 = vmatpush2.bf16.msra.mxu0 0
        %1739 = vmatprep.subr.bf16.mxu0 0
        %1740 = vmatpush2.bf16.msra.mxu0 0
        %1741 = vmatprep.subr.bf16.mxu0 0
        %1742 = vmatpush2.bf16.msra.mxu0 0
        %1743 = vmatprep.mubr.bf16.mxu0 0
        %1744 = vmatmul.mubr.bf16.gmra.mxu0 %v897
        %v1745 = vpop.f32.mrf.mxu0
        %v1746 = vadd.f32 0.0, %v1745
        %v1747 = vpop.f32.mrf.mxu0
        %v1748 = vadd.f32 0.0, %v1747
        %v1749 = vpop.f32.mrf.mxu0
        %v1750 = vadd.f32 0.0, %v1749
        %v1751 = vpop.f32.mrf.mxu0
        %v1752 = vadd.f32 0.0, %v1751
        %1753 = vmatprep.mubr.bf16.mxu0 0
        %1754 = vmatmul.mubr.bf16.gmra.mxu0 %v900
        %v1755 = vpop.f32.mrf.mxu0
        %v1756 = vadd.f32 0.0, %v1755
        %v1757 = vpop.f32.mrf.mxu0
        %v1758 = vadd.f32 0.0, %v1757
        %v1759 = vpop.f32.mrf.mxu0
        %v1760 = vadd.f32 0.0, %v1759
        %v1761 = vpop.f32.mrf.mxu0
        %v1762 = vadd.f32 0.0, %v1761
        %1763 = vmatprep.mubr.bf16.mxu0 0
        %1764 = vmatmul.mubr.bf16.gmra.mxu0 %v903
        %v1765 = vpop.f32.mrf.mxu0
        %v1766 = vadd.f32 0.0, %v1765
        %v1767 = vpop.f32.mrf.mxu0
        %v1768 = vadd.f32 0.0, %v1767
        %v1769 = vpop.f32.mrf.mxu0
        %v1770 = vadd.f32 0.0, %v1769
        %v1771 = vpop.f32.mrf.mxu0
        %v1772 = vadd.f32 0.0, %v1771
        %1773 = vmatprep.mubr.bf16.mxu0 0
        %1774 = vmatmul.mubr.bf16.gmra.mxu0 %v906
        %v1775 = vpop.f32.mrf.mxu0
        %v1776 = vadd.f32 0.0, %v1775
        %v1777 = vpop.f32.mrf.mxu0
        %v1778 = vadd.f32 0.0, %v1777
        %v1779 = vpop.f32.mrf.mxu0
        %v1780 = vadd.f32 0.0, %v1779
        %v1781 = vpop.f32.mrf.mxu0
        %v1782 = vadd.f32 0.0, %v1781
        %1783 = vmatprep.mubr.bf16.mxu0 0
        %1784 = vmatmul.mubr.bf16.gmra.mxu0 %v909
        %v1785 = vpop.f32.mrf.mxu0
        %v1786 = vadd.f32 0.0, %v1785
        %v1787 = vpop.f32.mrf.mxu0
        %v1788 = vadd.f32 0.0, %v1787
        %v1789 = vpop.f32.mrf.mxu0
        %v1790 = vadd.f32 0.0, %v1789
        %v1791 = vpop.f32.mrf.mxu0
        %v1792 = vadd.f32 0.0, %v1791
        %1793 = vmatprep.mubr.bf16.mxu0 0
        %1794 = vmatmul.mubr.bf16.gmra.mxu0 %v912
        %v1795 = vpop.f32.mrf.mxu0
        %v1796 = vadd.f32 0.0, %v1795
        %v1797 = vpop.f32.mrf.mxu0
        %v1798 = vadd.f32 0.0, %v1797
        %v1799 = vpop.f32.mrf.mxu0
        %v1800 = vadd.f32 0.0, %v1799
        %v1801 = vpop.f32.mrf.mxu0
        %v1802 = vadd.f32 0.0, %v1801
        %1803 = vmatprep.mubr.bf16.mxu0 0
        %1804 = vmatmul.mubr.bf16.gmra.mxu0 %v915
        %v1805 = vpop.f32.mrf.mxu0
        %v1806 = vadd.f32 0.0, %v1805
        %v1807 = vpop.f32.mrf.mxu0
        %v1808 = vadd.f32 0.0, %v1807
        %v1809 = vpop.f32.mrf.mxu0
        %v1810 = vadd.f32 0.0, %v1809
        %v1811 = vpop.f32.mrf.mxu0
        %v1812 = vadd.f32 0.0, %v1811
        %1813 = vmatprep.mubr.bf16.mxu0 0
        %1814 = vmatmul.mubr.bf16.gmra.mxu0 %v918
        %v1815 = vpop.f32.mrf.mxu0
        %v1816 = vadd.f32 0.0, %v1815
        %v1817 = vpop.f32.mrf.mxu0
        %v1818 = vadd.f32 0.0, %v1817
        %v1819 = vpop.f32.mrf.mxu0
        %v1820 = vadd.f32 0.0, %v1819
        %v1821 = vpop.f32.mrf.mxu0
        %v1822 = vadd.f32 0.0, %v1821
        %1823 = vdwg.mxu0
        %v1824 = vpack.c.bf16 %v959, %v955
        %v1825 = vpack.c.bf16 %v961, %v957
        %v1826 = vpack.c.bf16 %v1072, %v1068
        %v1827 = vpack.c.bf16 %v1074, %v1070
        %v1828 = vpack.c.bf16 %v1185, %v1181
        %v1829 = vpack.c.bf16 %v1187, %v1183
        %v1830 = vpack.c.bf16 %v1298, %v1294
        %v1831 = vpack.c.bf16 %v1300, %v1296
        %v1832 = vpack.c.bf16 %v1411, %v1407
        %v1833 = vpack.c.bf16 %v1413, %v1409
        %v1834 = vpack.c.bf16 %v1524, %v1520
        %v1835 = vpack.c.bf16 %v1526, %v1522
        %v1836 = vpack.c.bf16 %v1637, %v1633
        %v1837 = vpack.c.bf16 %v1639, %v1635
        %v1838 = vpack.c.bf16 %v1750, %v1746
        %v1839 = vpack.c.bf16 %v1752, %v1748
        %v1840 = vpack.c.bf16 %v969, %v965
        %v1841 = vpack.c.bf16 %v971, %v967
        %v1842 = vpack.c.bf16 %v1082, %v1078
        %v1843 = vpack.c.bf16 %v1084, %v1080
        %v1844 = vpack.c.bf16 %v1195, %v1191
        %v1845 = vpack.c.bf16 %v1197, %v1193
        %v1846 = vpack.c.bf16 %v1308, %v1304
        %v1847 = vpack.c.bf16 %v1310, %v1306
        %v1848 = vpack.c.bf16 %v1421, %v1417
        %v1849 = vpack.c.bf16 %v1423, %v1419
        %v1850 = vpack.c.bf16 %v1534, %v1530
        %v1851 = vpack.c.bf16 %v1536, %v1532
        %v1852 = vpack.c.bf16 %v1647, %v1643
        %v1853 = vpack.c.bf16 %v1649, %v1645
        %v1854 = vpack.c.bf16 %v1760, %v1756
        %v1855 = vpack.c.bf16 %v1762, %v1758
        %v1856 = vpack.c.bf16 %v979, %v975
        %v1857 = vpack.c.bf16 %v981, %v977
        %v1858 = vpack.c.bf16 %v1092, %v1088
        %v1859 = vpack.c.bf16 %v1094, %v1090
        %v1860 = vpack.c.bf16 %v1205, %v1201
        %v1861 = vpack.c.bf16 %v1207, %v1203
        %v1862 = vpack.c.bf16 %v1318, %v1314
        %v1863 = vpack.c.bf16 %v1320, %v1316
        %v1864 = vpack.c.bf16 %v1431, %v1427
        %v1865 = vpack.c.bf16 %v1433, %v1429
        %v1866 = vpack.c.bf16 %v1544, %v1540
        %v1867 = vpack.c.bf16 %v1546, %v1542
        %v1868 = vpack.c.bf16 %v1657, %v1653
        %v1869 = vpack.c.bf16 %v1659, %v1655
        %v1870 = vpack.c.bf16 %v1770, %v1766
        %v1871 = vpack.c.bf16 %v1772, %v1768
        %v1872 = vpack.c.bf16 %v989, %v985
        %v1873 = vpack.c.bf16 %v991, %v987
        %v1874 = vpack.c.bf16 %v1102, %v1098
        %v1875 = vpack.c.bf16 %v1104, %v1100
        %v1876 = vpack.c.bf16 %v1215, %v1211
        %v1877 = vpack.c.bf16 %v1217, %v1213
        %v1878 = vpack.c.bf16 %v1328, %v1324
        %v1879 = vpack.c.bf16 %v1330, %v1326
        %v1880 = vpack.c.bf16 %v1441, %v1437
        %v1881 = vpack.c.bf16 %v1443, %v1439
        %v1882 = vpack.c.bf16 %v1554, %v1550
        %v1883 = vpack.c.bf16 %v1556, %v1552
        %v1884 = vpack.c.bf16 %v1667, %v1663
        %v1885 = vpack.c.bf16 %v1669, %v1665
        %v1886 = vpack.c.bf16 %v1780, %v1776
        %v1887 = vpack.c.bf16 %v1782, %v1778
        %v1888 = vmax.bf16 %v1824, 0
        %v1889 = vmax.bf16 %v1825, 0
        %v1890 = vmax.bf16 %v1826, 0
        %v1891 = vmax.bf16 %v1827, 0
        %v1892 = vmax.bf16 %v1828, 0
        %v1893 = vmax.bf16 %v1829, 0
        %v1894 = vmax.bf16 %v1830, 0
        %v1895 = vmax.bf16 %v1831, 0
        %v1896 = vmax.bf16 %v1832, 0
        %v1897 = vmax.bf16 %v1833, 0
        %v1898 = vmax.bf16 %v1834, 0
        %v1899 = vmax.bf16 %v1835, 0
        %v1900 = vmax.bf16 %v1836, 0
        %v1901 = vmax.bf16 %v1837, 0
        %v1902 = vmax.bf16 %v1838, 0
        %v1903 = vmax.bf16 %v1839, 0
        %v1904 = vmax.bf16 %v1840, 0
        %v1905 = vmax.bf16 %v1841, 0
        %v1906 = vmax.bf16 %v1842, 0
        %v1907 = vmax.bf16 %v1843, 0
        %v1908 = vmax.bf16 %v1844, 0
        %v1909 = vmax.bf16 %v1845, 0
        %v1910 = vmax.bf16 %v1846, 0
        %v1911 = vmax.bf16 %v1847, 0
        %v1912 = vmax.bf16 %v1848, 0
        %v1913 = vmax.bf16 %v1849, 0
        %v1914 = vmax.bf16 %v1850, 0
        %v1915 = vmax.bf16 %v1851, 0
        %v1916 = vmax.bf16 %v1852, 0
        %v1917 = vmax.bf16 %v1853, 0
        %v1918 = vmax.bf16 %v1854, 0
        %v1919 = vmax.bf16 %v1855, 0
        %v1920 = vmax.bf16 %v1856, 0
        %v1921 = vmax.bf16 %v1857, 0
        %v1922 = vmax.bf16 %v1858, 0
        %v1923 = vmax.bf16 %v1859, 0
        %v1924 = vmax.bf16 %v1860, 0
        %v1925 = vmax.bf16 %v1861, 0
        %v1926 = vmax.bf16 %v1862, 0
        %v1927 = vmax.bf16 %v1863, 0
        %v1928 = vmax.bf16 %v1864, 0
        %v1929 = vmax.bf16 %v1865, 0
        %v1930 = vmax.bf16 %v1866, 0
        %v1931 = vmax.bf16 %v1867, 0
        %v1932 = vmax.bf16 %v1868, 0
        %v1933 = vmax.bf16 %v1869, 0
        %v1934 = vmax.bf16 %v1870, 0
        %v1935 = vmax.bf16 %v1871, 0
        %v1936 = vmax.bf16 %v1872, 0
        %v1937 = vmax.bf16 %v1873, 0
        %v1938 = vmax.bf16 %v1874, 0
        %v1939 = vmax.bf16 %v1875, 0
        %v1940 = vmax.bf16 %v1876, 0
        %v1941 = vmax.bf16 %v1877, 0
        %v1942 = vmax.bf16 %v1878, 0
        %v1943 = vmax.bf16 %v1879, 0
        %v1944 = vmax.bf16 %v1880, 0
        %v1945 = vmax.bf16 %v1881, 0
        %v1946 = vmax.bf16 %v1882, 0
        %v1947 = vmax.bf16 %v1883, 0
        %v1948 = vmax.bf16 %v1884, 0
        %v1949 = vmax.bf16 %v1885, 0
        %v1950 = vmax.bf16 %v1886, 0
        %v1951 = vmax.bf16 %v1887, 0
        %v1952 = vld [vmem:[%s2] sm:$0xf]
        %v1953 = vld [vmem:[%s2 + $0x4] sm:$0xf]
        %v1954 = vld [vmem:[%s2 + $0x8] sm:$0xf]
        %v1955 = vld [vmem:[%s2 + $0xc] sm:$0xf]
        %v1956 = vld [vmem:[%s2 + $0x10] sm:$0xf]
        %v1957 = vld [vmem:[%s2 + $0x14] sm:$0xf]
        %v1958 = vld [vmem:[%s2 + $0x18] sm:$0xf]
        %v1959 = vld [vmem:[%s2 + $0x1c] sm:$0xf]
        %v1968 = vunpack.c.l.b16 %v1952
        %v1969 = vunpack.c.l.b16 %v1953
        %v1970 = vunpack.c.l.b16 %v1954
        %v1971 = vunpack.c.l.b16 %v1955
        %v1972 = vunpack.c.l.b16 %v1956
        %v1973 = vunpack.c.l.b16 %v1957
        %v1974 = vunpack.c.l.b16 %v1958
        %v1975 = vunpack.c.l.b16 %v1959
        %v1976 = vpack.c.b16 %v1969, %v1968
        %v1977 = vpack.c.b16 %v1971, %v1970
        %v1978 = vpack.c.b16 %v1973, %v1972
        %v1979 = vpack.c.b16 %v1975, %v1974
        %v1981 = vsel %vm895, %v1976, 0
        %v1984 = vsel %vm895, %v1977, 0
        %v1987 = vsel %vm895, %v1978, 0
        %v1990 = vsel %vm895, %v1979, 0
        %1992 = vmatprep.subr.bf16.mxu0 0
        %1993 = vmatpush1.bf16.msra.mxu0 0
        %1994 = vmatprep.subr.bf16.mxu0 0
        %1995 = vmatpush1.bf16.msra.mxu0 0
        %1996 = vmatprep.subr.bf16.mxu0 0
        %1997 = vmatpush1.bf16.msra.mxu0 0
        %1998 = vmatprep.subr.bf16.mxu0 0
        %1999 = vmatpush1.bf16.msra.mxu0 0
        %2000 = vmatprep.subr.bf16.mxu0 %v1937
        %2001 = vmatpush1.bf16.msra.mxu0 %v1936
        %2002 = vmatprep.subr.bf16.mxu0 %v1921
        %2003 = vmatpush1.bf16.msra.mxu0 %v1920
        %2004 = vmatprep.subr.bf16.mxu0 %v1905
        %2005 = vmatpush1.bf16.msra.mxu0 %v1904
        %2006 = vmatprep.subr.bf16.mxu0 %v1889
        %2007 = vmatpush1.bf16.msra.mxu0 %v1888
        %2008 = vmatprep.subr.bf16.mxu0 0
        %2009 = vmatpush2.bf16.msra.mxu0 0
        %2010 = vmatprep.subr.bf16.mxu0 0
        %2011 = vmatpush2.bf16.msra.mxu0 0
        %2012 = vmatprep.subr.bf16.mxu0 0
        %2013 = vmatpush2.bf16.msra.mxu0 0
        %2014 = vmatprep.subr.bf16.mxu0 0
        %2015 = vmatpush2.bf16.msra.mxu0 0
        %2016 = vmatprep.subr.bf16.mxu0 0
        %2017 = vmatpush2.bf16.msra.mxu0 0
        %2018 = vmatprep.subr.bf16.mxu0 0
        %2019 = vmatpush2.bf16.msra.mxu0 0
        %2020 = vmatprep.subr.bf16.mxu0 0
        %2021 = vmatpush2.bf16.msra.mxu0 0
        %2022 = vmatprep.subr.bf16.mxu0 0
        %2023 = vmatpush2.bf16.msra.mxu0 0
        %2024 = vmatprep.mubr.bf16.mxu0 0
        %2025 = vmatmul.mubr.bf16.gmra.mxu0 %v1981
        %v2026 = vpop.f32.mrf.mxu0
        %v2027 = vadd.f32 0.0, %v2026
        %v2028 = vpop.f32.mrf.mxu0
        %v2029 = vadd.f32 0.0, %v2028
        %v2030 = vpop.f32.mrf.mxu0
        %v2031 = vadd.f32 0.0, %v2030
        %v2032 = vpop.f32.mrf.mxu0
        %v2033 = vadd.f32 0.0, %v2032
        %2034 = vmatprep.mubr.bf16.mxu0 0
        %2035 = vmatmul.mubr.bf16.gmra.mxu0 %v1984
        %v2036 = vpop.f32.mrf.mxu0
        %v2037 = vadd.f32 0.0, %v2036
        %v2038 = vpop.f32.mrf.mxu0
        %v2039 = vadd.f32 0.0, %v2038
        %v2040 = vpop.f32.mrf.mxu0
        %v2041 = vadd.f32 0.0, %v2040
        %v2042 = vpop.f32.mrf.mxu0
        %v2043 = vadd.f32 0.0, %v2042
        %2044 = vmatprep.mubr.bf16.mxu0 0
        %2045 = vmatmul.mubr.bf16.gmra.mxu0 %v1987
        %v2046 = vpop.f32.mrf.mxu0
        %v2047 = vadd.f32 0.0, %v2046
        %v2048 = vpop.f32.mrf.mxu0
        %v2049 = vadd.f32 0.0, %v2048
        %v2050 = vpop.f32.mrf.mxu0
        %v2051 = vadd.f32 0.0, %v2050
        %v2052 = vpop.f32.mrf.mxu0
        %v2053 = vadd.f32 0.0, %v2052
        %2054 = vmatprep.mubr.bf16.mxu0 0
        %2055 = vmatmul.mubr.bf16.gmra.mxu0 %v1990
        %v2056 = vpop.f32.mrf.mxu0
        %v2057 = vadd.f32 0.0, %v2056
        %v2058 = vpop.f32.mrf.mxu0
        %v2059 = vadd.f32 0.0, %v2058
        %v2060 = vpop.f32.mrf.mxu0
        %v2061 = vadd.f32 0.0, %v2060
        %v2062 = vpop.f32.mrf.mxu0
        %v2063 = vadd.f32 0.0, %v2062
        %2064 = vdwg.mxu0
        %2065 = vmatprep.subr.bf16.mxu0 0
        %2066 = vmatpush1.bf16.msra.mxu0 0
        %2067 = vmatprep.subr.bf16.mxu0 0
        %2068 = vmatpush1.bf16.msra.mxu0 0
        %2069 = vmatprep.subr.bf16.mxu0 0
        %2070 = vmatpush1.bf16.msra.mxu0 0
        %2071 = vmatprep.subr.bf16.mxu0 0
        %2072 = vmatpush1.bf16.msra.mxu0 0
        %2073 = vmatprep.subr.bf16.mxu0 %v1939
        %2074 = vmatpush1.bf16.msra.mxu0 %v1938
        %2075 = vmatprep.subr.bf16.mxu0 %v1923
        %2076 = vmatpush1.bf16.msra.mxu0 %v1922
        %2077 = vmatprep.subr.bf16.mxu0 %v1907
        %2078 = vmatpush1.bf16.msra.mxu0 %v1906
        %2079 = vmatprep.subr.bf16.mxu0 %v1891
        %2080 = vmatpush1.bf16.msra.mxu0 %v1890
        %2081 = vmatprep.subr.bf16.mxu0 0
        %2082 = vmatpush2.bf16.msra.mxu0 0
        %2083 = vmatprep.subr.bf16.mxu0 0
        %2084 = vmatpush2.bf16.msra.mxu0 0
        %2085 = vmatprep.subr.bf16.mxu0 0
        %2086 = vmatpush2.bf16.msra.mxu0 0
        %2087 = vmatprep.subr.bf16.mxu0 0
        %2088 = vmatpush2.bf16.msra.mxu0 0
        %2089 = vmatprep.subr.bf16.mxu0 0
        %2090 = vmatpush2.bf16.msra.mxu0 0
        %2091 = vmatprep.subr.bf16.mxu0 0
        %2092 = vmatpush2.bf16.msra.mxu0 0
        %2093 = vmatprep.subr.bf16.mxu0 0
        %2094 = vmatpush2.bf16.msra.mxu0 0
        %2095 = vmatprep.subr.bf16.mxu0 0
        %2096 = vmatpush2.bf16.msra.mxu0 0
        %2097 = vmatprep.mubr.bf16.mxu0 0
        %2098 = vmatmul.mubr.bf16.gmra.mxu0 %v1981
        %v2099 = vpop.f32.mrf.mxu0
        %v2100 = vadd.f32 0.0, %v2099
        %v2101 = vpop.f32.mrf.mxu0
        %v2102 = vadd.f32 0.0, %v2101
        %v2103 = vpop.f32.mrf.mxu0
        %v2104 = vadd.f32 0.0, %v2103
        %v2105 = vpop.f32.mrf.mxu0
        %v2106 = vadd.f32 0.0, %v2105
        %2107 = vmatprep.mubr.bf16.mxu0 0
        %2108 = vmatmul.mubr.bf16.gmra.mxu0 %v1984
        %v2109 = vpop.f32.mrf.mxu0
        %v2110 = vadd.f32 0.0, %v2109
        %v2111 = vpop.f32.mrf.mxu0
        %v2112 = vadd.f32 0.0, %v2111
        %v2113 = vpop.f32.mrf.mxu0
        %v2114 = vadd.f32 0.0, %v2113
        %v2115 = vpop.f32.mrf.mxu0
        %v2116 = vadd.f32 0.0, %v2115
        %2117 = vmatprep.mubr.bf16.mxu0 0
        %2118 = vmatmul.mubr.bf16.gmra.mxu0 %v1987
        %v2119 = vpop.f32.mrf.mxu0
        %v2120 = vadd.f32 0.0, %v2119
        %v2121 = vpop.f32.mrf.mxu0
        %v2122 = vadd.f32 0.0, %v2121
        %v2123 = vpop.f32.mrf.mxu0
        %v2124 = vadd.f32 0.0, %v2123
        %v2125 = vpop.f32.mrf.mxu0
        %v2126 = vadd.f32 0.0, %v2125
        %2127 = vmatprep.mubr.bf16.mxu0 0
        %2128 = vmatmul.mubr.bf16.gmra.mxu0 %v1990
        %v2129 = vpop.f32.mrf.mxu0
        %v2130 = vadd.f32 0.0, %v2129
        %v2131 = vpop.f32.mrf.mxu0
        %v2132 = vadd.f32 0.0, %v2131
        %v2133 = vpop.f32.mrf.mxu0
        %v2134 = vadd.f32 0.0, %v2133
        %v2135 = vpop.f32.mrf.mxu0
        %v2136 = vadd.f32 0.0, %v2135
        %2137 = vdwg.mxu0
        %2138 = vmatprep.subr.bf16.mxu0 0
        %2139 = vmatpush1.bf16.msra.mxu0 0
        %2140 = vmatprep.subr.bf16.mxu0 0
        %2141 = vmatpush1.bf16.msra.mxu0 0
        %2142 = vmatprep.subr.bf16.mxu0 0
        %2143 = vmatpush1.bf16.msra.mxu0 0
        %2144 = vmatprep.subr.bf16.mxu0 0
        %2145 = vmatpush1.bf16.msra.mxu0 0
        %2146 = vmatprep.subr.bf16.mxu0 %v1941
        %2147 = vmatpush1.bf16.msra.mxu0 %v1940
        %2148 = vmatprep.subr.bf16.mxu0 %v1925
        %2149 = vmatpush1.bf16.msra.mxu0 %v1924
        %2150 = vmatprep.subr.bf16.mxu0 %v1909
        %2151 = vmatpush1.bf16.msra.mxu0 %v1908
        %2152 = vmatprep.subr.bf16.mxu0 %v1893
        %2153 = vmatpush1.bf16.msra.mxu0 %v1892
        %2154 = vmatprep.subr.bf16.mxu0 0
        %2155 = vmatpush2.bf16.msra.mxu0 0
        %2156 = vmatprep.subr.bf16.mxu0 0
        %2157 = vmatpush2.bf16.msra.mxu0 0
        %2158 = vmatprep.subr.bf16.mxu0 0
        %2159 = vmatpush2.bf16.msra.mxu0 0
        %2160 = vmatprep.subr.bf16.mxu0 0
        %2161 = vmatpush2.bf16.msra.mxu0 0
        %2162 = vmatprep.subr.bf16.mxu0 0
        %2163 = vmatpush2.bf16.msra.mxu0 0
        %2164 = vmatprep.subr.bf16.mxu0 0
        %2165 = vmatpush2.bf16.msra.mxu0 0
        %2166 = vmatprep.subr.bf16.mxu0 0
        %2167 = vmatpush2.bf16.msra.mxu0 0
        %2168 = vmatprep.subr.bf16.mxu0 0
        %2169 = vmatpush2.bf16.msra.mxu0 0
        %2170 = vmatprep.mubr.bf16.mxu0 0
        %2171 = vmatmul.mubr.bf16.gmra.mxu0 %v1981
        %v2172 = vpop.f32.mrf.mxu0
        %v2173 = vadd.f32 0.0, %v2172
        %v2174 = vpop.f32.mrf.mxu0
        %v2175 = vadd.f32 0.0, %v2174
        %v2176 = vpop.f32.mrf.mxu0
        %v2177 = vadd.f32 0.0, %v2176
        %v2178 = vpop.f32.mrf.mxu0
        %v2179 = vadd.f32 0.0, %v2178
        %2180 = vmatprep.mubr.bf16.mxu0 0
        %2181 = vmatmul.mubr.bf16.gmra.mxu0 %v1984
        %v2182 = vpop.f32.mrf.mxu0
        %v2183 = vadd.f32 0.0, %v2182
        %v2184 = vpop.f32.mrf.mxu0
        %v2185 = vadd.f32 0.0, %v2184
        %v2186 = vpop.f32.mrf.mxu0
        %v2187 = vadd.f32 0.0, %v2186
        %v2188 = vpop.f32.mrf.mxu0
        %v2189 = vadd.f32 0.0, %v2188
        %2190 = vmatprep.mubr.bf16.mxu0 0
        %2191 = vmatmul.mubr.bf16.gmra.mxu0 %v1987
        %v2192 = vpop.f32.mrf.mxu0
        %v2193 = vadd.f32 0.0, %v2192
        %v2194 = vpop.f32.mrf.mxu0
        %v2195 = vadd.f32 0.0, %v2194
        %v2196 = vpop.f32.mrf.mxu0
        %v2197 = vadd.f32 0.0, %v2196
        %v2198 = vpop.f32.mrf.mxu0
        %v2199 = vadd.f32 0.0, %v2198
        %2200 = vmatprep.mubr.bf16.mxu0 0
        %2201 = vmatmul.mubr.bf16.gmra.mxu0 %v1990
        %v2202 = vpop.f32.mrf.mxu0
        %v2203 = vadd.f32 0.0, %v2202
        %v2204 = vpop.f32.mrf.mxu0
        %v2205 = vadd.f32 0.0, %v2204
        %v2206 = vpop.f32.mrf.mxu0
        %v2207 = vadd.f32 0.0, %v2206
        %v2208 = vpop.f32.mrf.mxu0
        %v2209 = vadd.f32 0.0, %v2208
        %2210 = vdwg.mxu0
        %2211 = vmatprep.subr.bf16.mxu0 0
        %2212 = vmatpush1.bf16.msra.mxu0 0
        %2213 = vmatprep.subr.bf16.mxu0 0
        %2214 = vmatpush1.bf16.msra.mxu0 0
        %2215 = vmatprep.subr.bf16.mxu0 0
        %2216 = vmatpush1.bf16.msra.mxu0 0
        %2217 = vmatprep.subr.bf16.mxu0 0
        %2218 = vmatpush1.bf16.msra.mxu0 0
        %2219 = vmatprep.subr.bf16.mxu0 %v1943
        %2220 = vmatpush1.bf16.msra.mxu0 %v1942
        %2221 = vmatprep.subr.bf16.mxu0 %v1927
        %2222 = vmatpush1.bf16.msra.mxu0 %v1926
        %2223 = vmatprep.subr.bf16.mxu0 %v1911
        %2224 = vmatpush1.bf16.msra.mxu0 %v1910
        %2225 = vmatprep.subr.bf16.mxu0 %v1895
        %2226 = vmatpush1.bf16.msra.mxu0 %v1894
        %2227 = vmatprep.subr.bf16.mxu0 0
        %2228 = vmatpush2.bf16.msra.mxu0 0
        %2229 = vmatprep.subr.bf16.mxu0 0
        %2230 = vmatpush2.bf16.msra.mxu0 0
        %2231 = vmatprep.subr.bf16.mxu0 0
        %2232 = vmatpush2.bf16.msra.mxu0 0
        %2233 = vmatprep.subr.bf16.mxu0 0
        %2234 = vmatpush2.bf16.msra.mxu0 0
        %2235 = vmatprep.subr.bf16.mxu0 0
        %2236 = vmatpush2.bf16.msra.mxu0 0
        %2237 = vmatprep.subr.bf16.mxu0 0
        %2238 = vmatpush2.bf16.msra.mxu0 0
        %2239 = vmatprep.subr.bf16.mxu0 0
        %2240 = vmatpush2.bf16.msra.mxu0 0
        %2241 = vmatprep.subr.bf16.mxu0 0
        %2242 = vmatpush2.bf16.msra.mxu0 0
        %2243 = vmatprep.mubr.bf16.mxu0 0
        %2244 = vmatmul.mubr.bf16.gmra.mxu0 %v1981
        %v2245 = vpop.f32.mrf.mxu0
        %v2246 = vadd.f32 0.0, %v2245
        %v2247 = vpop.f32.mrf.mxu0
        %v2248 = vadd.f32 0.0, %v2247
        %v2249 = vpop.f32.mrf.mxu0
        %v2250 = vadd.f32 0.0, %v2249
        %v2251 = vpop.f32.mrf.mxu0
        %v2252 = vadd.f32 0.0, %v2251
        %2253 = vmatprep.mubr.bf16.mxu0 0
        %2254 = vmatmul.mubr.bf16.gmra.mxu0 %v1984
        %v2255 = vpop.f32.mrf.mxu0
        %v2256 = vadd.f32 0.0, %v2255
        %v2257 = vpop.f32.mrf.mxu0
        %v2258 = vadd.f32 0.0, %v2257
        %v2259 = vpop.f32.mrf.mxu0
        %v2260 = vadd.f32 0.0, %v2259
        %v2261 = vpop.f32.mrf.mxu0
        %v2262 = vadd.f32 0.0, %v2261
        %2263 = vmatprep.mubr.bf16.mxu0 0
        %2264 = vmatmul.mubr.bf16.gmra.mxu0 %v1987
        %v2265 = vpop.f32.mrf.mxu0
        %v2266 = vadd.f32 0.0, %v2265
        %v2267 = vpop.f32.mrf.mxu0
        %v2268 = vadd.f32 0.0, %v2267
        %v2269 = vpop.f32.mrf.mxu0
        %v2270 = vadd.f32 0.0, %v2269
        %v2271 = vpop.f32.mrf.mxu0
        %v2272 = vadd.f32 0.0, %v2271
        %2273 = vmatprep.mubr.bf16.mxu0 0
        %2274 = vmatmul.mubr.bf16.gmra.mxu0 %v1990
        %v2275 = vpop.f32.mrf.mxu0
        %v2276 = vadd.f32 0.0, %v2275
        %v2277 = vpop.f32.mrf.mxu0
        %v2278 = vadd.f32 0.0, %v2277
        %v2279 = vpop.f32.mrf.mxu0
        %v2280 = vadd.f32 0.0, %v2279
        %v2281 = vpop.f32.mrf.mxu0
        %v2282 = vadd.f32 0.0, %v2281
        %2283 = vdwg.mxu0
        %2284 = vmatprep.subr.bf16.mxu0 0
        %2285 = vmatpush1.bf16.msra.mxu0 0
        %2286 = vmatprep.subr.bf16.mxu0 0
        %2287 = vmatpush1.bf16.msra.mxu0 0
        %2288 = vmatprep.subr.bf16.mxu0 0
        %2289 = vmatpush1.bf16.msra.mxu0 0
        %2290 = vmatprep.subr.bf16.mxu0 0
        %2291 = vmatpush1.bf16.msra.mxu0 0
        %2292 = vmatprep.subr.bf16.mxu0 %v1945
        %2293 = vmatpush1.bf16.msra.mxu0 %v1944
        %2294 = vmatprep.subr.bf16.mxu0 %v1929
        %2295 = vmatpush1.bf16.msra.mxu0 %v1928
        %2296 = vmatprep.subr.bf16.mxu0 %v1913
        %2297 = vmatpush1.bf16.msra.mxu0 %v1912
        %2298 = vmatprep.subr.bf16.mxu0 %v1897
        %2299 = vmatpush1.bf16.msra.mxu0 %v1896
        %2300 = vmatprep.subr.bf16.mxu0 0
        %2301 = vmatpush2.bf16.msra.mxu0 0
        %2302 = vmatprep.subr.bf16.mxu0 0
        %2303 = vmatpush2.bf16.msra.mxu0 0
        %2304 = vmatprep.subr.bf16.mxu0 0
        %2305 = vmatpush2.bf16.msra.mxu0 0
        %2306 = vmatprep.subr.bf16.mxu0 0
        %2307 = vmatpush2.bf16.msra.mxu0 0
        %2308 = vmatprep.subr.bf16.mxu0 0
        %2309 = vmatpush2.bf16.msra.mxu0 0
        %2310 = vmatprep.subr.bf16.mxu0 0
        %2311 = vmatpush2.bf16.msra.mxu0 0
        %2312 = vmatprep.subr.bf16.mxu0 0
        %2313 = vmatpush2.bf16.msra.mxu0 0
        %2314 = vmatprep.subr.bf16.mxu0 0
        %2315 = vmatpush2.bf16.msra.mxu0 0
        %2316 = vmatprep.mubr.bf16.mxu0 0
        %2317 = vmatmul.mubr.bf16.gmra.mxu0 %v1981
        %v2318 = vpop.f32.mrf.mxu0
        %v2319 = vadd.f32 0.0, %v2318
        %v2320 = vpop.f32.mrf.mxu0
        %v2321 = vadd.f32 0.0, %v2320
        %v2322 = vpop.f32.mrf.mxu0
        %v2323 = vadd.f32 0.0, %v2322
        %v2324 = vpop.f32.mrf.mxu0
        %v2325 = vadd.f32 0.0, %v2324
        %2326 = vmatprep.mubr.bf16.mxu0 0
        %2327 = vmatmul.mubr.bf16.gmra.mxu0 %v1984
        %v2328 = vpop.f32.mrf.mxu0
        %v2329 = vadd.f32 0.0, %v2328
        %v2330 = vpop.f32.mrf.mxu0
        %v2331 = vadd.f32 0.0, %v2330
        %v2332 = vpop.f32.mrf.mxu0
        %v2333 = vadd.f32 0.0, %v2332
        %v2334 = vpop.f32.mrf.mxu0
        %v2335 = vadd.f32 0.0, %v2334
        %2336 = vmatprep.mubr.bf16.mxu0 0
        %2337 = vmatmul.mubr.bf16.gmra.mxu0 %v1987
        %v2338 = vpop.f32.mrf.mxu0
        %v2339 = vadd.f32 0.0, %v2338
        %v2340 = vpop.f32.mrf.mxu0
        %v2341 = vadd.f32 0.0, %v2340
        %v2342 = vpop.f32.mrf.mxu0
        %v2343 = vadd.f32 0.0, %v2342
        %v2344 = vpop.f32.mrf.mxu0
        %v2345 = vadd.f32 0.0, %v2344
        %2346 = vmatprep.mubr.bf16.mxu0 0
        %2347 = vmatmul.mubr.bf16.gmra.mxu0 %v1990
        %v2348 = vpop.f32.mrf.mxu0
        %v2349 = vadd.f32 0.0, %v2348
        %v2350 = vpop.f32.mrf.mxu0
        %v2351 = vadd.f32 0.0, %v2350
        %v2352 = vpop.f32.mrf.mxu0
        %v2353 = vadd.f32 0.0, %v2352
        %v2354 = vpop.f32.mrf.mxu0
        %v2355 = vadd.f32 0.0, %v2354
        %2356 = vdwg.mxu0
        %2357 = vmatprep.subr.bf16.mxu0 0
        %2358 = vmatpush1.bf16.msra.mxu0 0
        %2359 = vmatprep.subr.bf16.mxu0 0
        %2360 = vmatpush1.bf16.msra.mxu0 0
        %2361 = vmatprep.subr.bf16.mxu0 0
        %2362 = vmatpush1.bf16.msra.mxu0 0
        %2363 = vmatprep.subr.bf16.mxu0 0
        %2364 = vmatpush1.bf16.msra.mxu0 0
        %2365 = vmatprep.subr.bf16.mxu0 %v1947
        %2366 = vmatpush1.bf16.msra.mxu0 %v1946
        %2367 = vmatprep.subr.bf16.mxu0 %v1931
        %2368 = vmatpush1.bf16.msra.mxu0 %v1930
        %2369 = vmatprep.subr.bf16.mxu0 %v1915
        %2370 = vmatpush1.bf16.msra.mxu0 %v1914
        %2371 = vmatprep.subr.bf16.mxu0 %v1899
        %2372 = vmatpush1.bf16.msra.mxu0 %v1898
        %2373 = vmatprep.subr.bf16.mxu0 0
        %2374 = vmatpush2.bf16.msra.mxu0 0
        %2375 = vmatprep.subr.bf16.mxu0 0
        %2376 = vmatpush2.bf16.msra.mxu0 0
        %2377 = vmatprep.subr.bf16.mxu0 0
        %2378 = vmatpush2.bf16.msra.mxu0 0
        %2379 = vmatprep.subr.bf16.mxu0 0
        %2380 = vmatpush2.bf16.msra.mxu0 0
        %2381 = vmatprep.subr.bf16.mxu0 0
        %2382 = vmatpush2.bf16.msra.mxu0 0
        %2383 = vmatprep.subr.bf16.mxu0 0
        %2384 = vmatpush2.bf16.msra.mxu0 0
        %2385 = vmatprep.subr.bf16.mxu0 0
        %2386 = vmatpush2.bf16.msra.mxu0 0
        %2387 = vmatprep.subr.bf16.mxu0 0
        %2388 = vmatpush2.bf16.msra.mxu0 0
        %2389 = vmatprep.mubr.bf16.mxu0 0
        %2390 = vmatmul.mubr.bf16.gmra.mxu0 %v1981
        %v2391 = vpop.f32.mrf.mxu0
        %v2392 = vadd.f32 0.0, %v2391
        %v2393 = vpop.f32.mrf.mxu0
        %v2394 = vadd.f32 0.0, %v2393
        %v2395 = vpop.f32.mrf.mxu0
        %v2396 = vadd.f32 0.0, %v2395
        %v2397 = vpop.f32.mrf.mxu0
        %v2398 = vadd.f32 0.0, %v2397
        %2399 = vmatprep.mubr.bf16.mxu0 0
        %2400 = vmatmul.mubr.bf16.gmra.mxu0 %v1984
        %v2401 = vpop.f32.mrf.mxu0
        %v2402 = vadd.f32 0.0, %v2401
        %v2403 = vpop.f32.mrf.mxu0
        %v2404 = vadd.f32 0.0, %v2403
        %v2405 = vpop.f32.mrf.mxu0
        %v2406 = vadd.f32 0.0, %v2405
        %v2407 = vpop.f32.mrf.mxu0
        %v2408 = vadd.f32 0.0, %v2407
        %2409 = vmatprep.mubr.bf16.mxu0 0
        %2410 = vmatmul.mubr.bf16.gmra.mxu0 %v1987
        %v2411 = vpop.f32.mrf.mxu0
        %v2412 = vadd.f32 0.0, %v2411
        %v2413 = vpop.f32.mrf.mxu0
        %v2414 = vadd.f32 0.0, %v2413
        %v2415 = vpop.f32.mrf.mxu0
        %v2416 = vadd.f32 0.0, %v2415
        %v2417 = vpop.f32.mrf.mxu0
        %v2418 = vadd.f32 0.0, %v2417
        %2419 = vmatprep.mubr.bf16.mxu0 0
        %2420 = vmatmul.mubr.bf16.gmra.mxu0 %v1990
        %v2421 = vpop.f32.mrf.mxu0
        %v2422 = vadd.f32 0.0, %v2421
        %v2423 = vpop.f32.mrf.mxu0
        %v2424 = vadd.f32 0.0, %v2423
        %v2425 = vpop.f32.mrf.mxu0
        %v2426 = vadd.f32 0.0, %v2425
        %v2427 = vpop.f32.mrf.mxu0
        %v2428 = vadd.f32 0.0, %v2427
        %2429 = vdwg.mxu0
        %2430 = vmatprep.subr.bf16.mxu0 0
        %2431 = vmatpush1.bf16.msra.mxu0 0
        %2432 = vmatprep.subr.bf16.mxu0 0
        %2433 = vmatpush1.bf16.msra.mxu0 0
        %2434 = vmatprep.subr.bf16.mxu0 0
        %2435 = vmatpush1.bf16.msra.mxu0 0
        %2436 = vmatprep.subr.bf16.mxu0 0
        %2437 = vmatpush1.bf16.msra.mxu0 0
        %2438 = vmatprep.subr.bf16.mxu0 %v1949
        %2439 = vmatpush1.bf16.msra.mxu0 %v1948
        %2440 = vmatprep.subr.bf16.mxu0 %v1933
        %2441 = vmatpush1.bf16.msra.mxu0 %v1932
        %2442 = vmatprep.subr.bf16.mxu0 %v1917
        %2443 = vmatpush1.bf16.msra.mxu0 %v1916
        %2444 = vmatprep.subr.bf16.mxu0 %v1901
        %2445 = vmatpush1.bf16.msra.mxu0 %v1900
        %2446 = vmatprep.subr.bf16.mxu0 0
        %2447 = vmatpush2.bf16.msra.mxu0 0
        %2448 = vmatprep.subr.bf16.mxu0 0
        %2449 = vmatpush2.bf16.msra.mxu0 0
        %2450 = vmatprep.subr.bf16.mxu0 0
        %2451 = vmatpush2.bf16.msra.mxu0 0
        %2452 = vmatprep.subr.bf16.mxu0 0
        %2453 = vmatpush2.bf16.msra.mxu0 0
        %2454 = vmatprep.subr.bf16.mxu0 0
        %2455 = vmatpush2.bf16.msra.mxu0 0
        %2456 = vmatprep.subr.bf16.mxu0 0
        %2457 = vmatpush2.bf16.msra.mxu0 0
        %2458 = vmatprep.subr.bf16.mxu0 0
        %2459 = vmatpush2.bf16.msra.mxu0 0
        %2460 = vmatprep.subr.bf16.mxu0 0
        %2461 = vmatpush2.bf16.msra.mxu0 0
        %2462 = vmatprep.mubr.bf16.mxu0 0
        %2463 = vmatmul.mubr.bf16.gmra.mxu0 %v1981
        %v2464 = vpop.f32.mrf.mxu0
        %v2465 = vadd.f32 0.0, %v2464
        %v2466 = vpop.f32.mrf.mxu0
        %v2467 = vadd.f32 0.0, %v2466
        %v2468 = vpop.f32.mrf.mxu0
        %v2469 = vadd.f32 0.0, %v2468
        %v2470 = vpop.f32.mrf.mxu0
        %v2471 = vadd.f32 0.0, %v2470
        %2472 = vmatprep.mubr.bf16.mxu0 0
        %2473 = vmatmul.mubr.bf16.gmra.mxu0 %v1984
        %v2474 = vpop.f32.mrf.mxu0
        %v2475 = vadd.f32 0.0, %v2474
        %v2476 = vpop.f32.mrf.mxu0
        %v2477 = vadd.f32 0.0, %v2476
        %v2478 = vpop.f32.mrf.mxu0
        %v2479 = vadd.f32 0.0, %v2478
        %v2480 = vpop.f32.mrf.mxu0
        %v2481 = vadd.f32 0.0, %v2480
        %2482 = vmatprep.mubr.bf16.mxu0 0
        %2483 = vmatmul.mubr.bf16.gmra.mxu0 %v1987
        %v2484 = vpop.f32.mrf.mxu0
        %v2485 = vadd.f32 0.0, %v2484
        %v2486 = vpop.f32.mrf.mxu0
        %v2487 = vadd.f32 0.0, %v2486
        %v2488 = vpop.f32.mrf.mxu0
        %v2489 = vadd.f32 0.0, %v2488
        %v2490 = vpop.f32.mrf.mxu0
        %v2491 = vadd.f32 0.0, %v2490
        %2492 = vmatprep.mubr.bf16.mxu0 0
        %2493 = vmatmul.mubr.bf16.gmra.mxu0 %v1990
        %v2494 = vpop.f32.mrf.mxu0
        %v2495 = vadd.f32 0.0, %v2494
        %v2496 = vpop.f32.mrf.mxu0
        %v2497 = vadd.f32 0.0, %v2496
        %v2498 = vpop.f32.mrf.mxu0
        %v2499 = vadd.f32 0.0, %v2498
        %v2500 = vpop.f32.mrf.mxu0
        %v2501 = vadd.f32 0.0, %v2500
        %2502 = vdwg.mxu0
        %2503 = vmatprep.subr.bf16.mxu0 0
        %2504 = vmatpush1.bf16.msra.mxu0 0
        %2505 = vmatprep.subr.bf16.mxu0 0
        %2506 = vmatpush1.bf16.msra.mxu0 0
        %2507 = vmatprep.subr.bf16.mxu0 0
        %2508 = vmatpush1.bf16.msra.mxu0 0
        %2509 = vmatprep.subr.bf16.mxu0 0
        %2510 = vmatpush1.bf16.msra.mxu0 0
        %2511 = vmatprep.subr.bf16.mxu0 %v1951
        %2512 = vmatpush1.bf16.msra.mxu0 %v1950
        %2513 = vmatprep.subr.bf16.mxu0 %v1935
        %2514 = vmatpush1.bf16.msra.mxu0 %v1934
        %2515 = vmatprep.subr.bf16.mxu0 %v1919
        %2516 = vmatpush1.bf16.msra.mxu0 %v1918
        %2517 = vmatprep.subr.bf16.mxu0 %v1903
        %2518 = vmatpush1.bf16.msra.mxu0 %v1902
        %2519 = vmatprep.subr.bf16.mxu0 0
        %2520 = vmatpush2.bf16.msra.mxu0 0
        %2521 = vmatprep.subr.bf16.mxu0 0
        %2522 = vmatpush2.bf16.msra.mxu0 0
        %2523 = vmatprep.subr.bf16.mxu0 0
        %2524 = vmatpush2.bf16.msra.mxu0 0
        %2525 = vmatprep.subr.bf16.mxu0 0
        %2526 = vmatpush2.bf16.msra.mxu0 0
        %2527 = vmatprep.subr.bf16.mxu0 0
        %2528 = vmatpush2.bf16.msra.mxu0 0
        %2529 = vmatprep.subr.bf16.mxu0 0
        %2530 = vmatpush2.bf16.msra.mxu0 0
        %2531 = vmatprep.subr.bf16.mxu0 0
        %2532 = vmatpush2.bf16.msra.mxu0 0
        %2533 = vmatprep.subr.bf16.mxu0 0
        %2534 = vmatpush2.bf16.msra.mxu0 0
        %2535 = vmatprep.mubr.bf16.mxu0 0
        %2536 = vmatmul.mubr.bf16.gmra.mxu0 %v1981
        %v2537 = vpop.f32.mrf.mxu0
        %v2538 = vadd.f32 0.0, %v2537
        %v2539 = vpop.f32.mrf.mxu0
        %v2540 = vadd.f32 0.0, %v2539
        %v2541 = vpop.f32.mrf.mxu0
        %v2542 = vadd.f32 0.0, %v2541
        %v2543 = vpop.f32.mrf.mxu0
        %v2544 = vadd.f32 0.0, %v2543
        %2545 = vmatprep.mubr.bf16.mxu0 0
        %2546 = vmatmul.mubr.bf16.gmra.mxu0 %v1984
        %v2547 = vpop.f32.mrf.mxu0
        %v2548 = vadd.f32 0.0, %v2547
        %v2549 = vpop.f32.mrf.mxu0
        %v2550 = vadd.f32 0.0, %v2549
        %v2551 = vpop.f32.mrf.mxu0
        %v2552 = vadd.f32 0.0, %v2551
        %v2553 = vpop.f32.mrf.mxu0
        %v2554 = vadd.f32 0.0, %v2553
        %2555 = vmatprep.mubr.bf16.mxu0 0
        %2556 = vmatmul.mubr.bf16.gmra.mxu0 %v1987
        %v2557 = vpop.f32.mrf.mxu0
        %v2558 = vadd.f32 0.0, %v2557
        %v2559 = vpop.f32.mrf.mxu0
        %v2560 = vadd.f32 0.0, %v2559
        %v2561 = vpop.f32.mrf.mxu0
        %v2562 = vadd.f32 0.0, %v2561
        %v2563 = vpop.f32.mrf.mxu0
        %v2564 = vadd.f32 0.0, %v2563
        %2565 = vmatprep.mubr.bf16.mxu0 0
        %2566 = vmatmul.mubr.bf16.gmra.mxu0 %v1990
        %v2567 = vpop.f32.mrf.mxu0
        %v2568 = vadd.f32 0.0, %v2567
        %v2569 = vpop.f32.mrf.mxu0
        %v2570 = vadd.f32 0.0, %v2569
        %v2571 = vpop.f32.mrf.mxu0
        %v2572 = vadd.f32 0.0, %v2571
        %v2573 = vpop.f32.mrf.mxu0
        %v2574 = vadd.f32 0.0, %v2573
        %2575 = vdwg.mxu0
        %v2576 = vpack.c.bf16 %v2031, %v2027
        %v2577 = vpack.c.bf16 %v2033, %v2029
        %v2578 = vpack.c.bf16 %v2104, %v2100
        %v2579 = vpack.c.bf16 %v2106, %v2102
        %v2580 = vpack.c.bf16 %v2177, %v2173
        %v2581 = vpack.c.bf16 %v2179, %v2175
        %v2582 = vpack.c.bf16 %v2250, %v2246
        %v2583 = vpack.c.bf16 %v2252, %v2248
        %v2584 = vpack.c.bf16 %v2323, %v2319
        %v2585 = vpack.c.bf16 %v2325, %v2321
        %v2586 = vpack.c.bf16 %v2396, %v2392
        %v2587 = vpack.c.bf16 %v2398, %v2394
        %v2588 = vpack.c.bf16 %v2469, %v2465
        %v2589 = vpack.c.bf16 %v2471, %v2467
        %v2590 = vpack.c.bf16 %v2542, %v2538
        %v2591 = vpack.c.bf16 %v2544, %v2540
        %v2592 = vpack.c.bf16 %v2041, %v2037
        %v2593 = vpack.c.bf16 %v2043, %v2039
        %v2594 = vpack.c.bf16 %v2114, %v2110
        %v2595 = vpack.c.bf16 %v2116, %v2112
        %v2596 = vpack.c.bf16 %v2187, %v2183
        %v2597 = vpack.c.bf16 %v2189, %v2185
        %v2598 = vpack.c.bf16 %v2260, %v2256
        %v2599 = vpack.c.bf16 %v2262, %v2258
        %v2600 = vpack.c.bf16 %v2333, %v2329
        %v2601 = vpack.c.bf16 %v2335, %v2331
        %v2602 = vpack.c.bf16 %v2406, %v2402
        %v2603 = vpack.c.bf16 %v2408, %v2404
        %v2604 = vpack.c.bf16 %v2479, %v2475
        %v2605 = vpack.c.bf16 %v2481, %v2477
        %v2606 = vpack.c.bf16 %v2552, %v2548
        %v2607 = vpack.c.bf16 %v2554, %v2550
        %v2608 = vpack.c.bf16 %v2051, %v2047
        %v2609 = vpack.c.bf16 %v2053, %v2049
        %v2610 = vpack.c.bf16 %v2124, %v2120
        %v2611 = vpack.c.bf16 %v2126, %v2122
        %v2612 = vpack.c.bf16 %v2197, %v2193
        %v2613 = vpack.c.bf16 %v2199, %v2195
        %v2614 = vpack.c.bf16 %v2270, %v2266
        %v2615 = vpack.c.bf16 %v2272, %v2268
        %v2616 = vpack.c.bf16 %v2343, %v2339
        %v2617 = vpack.c.bf16 %v2345, %v2341
        %v2618 = vpack.c.bf16 %v2416, %v2412
        %v2619 = vpack.c.bf16 %v2418, %v2414
        %v2620 = vpack.c.bf16 %v2489, %v2485
        %v2621 = vpack.c.bf16 %v2491, %v2487
        %v2622 = vpack.c.bf16 %v2562, %v2558
        %v2623 = vpack.c.bf16 %v2564, %v2560
        %v2624 = vpack.c.bf16 %v2061, %v2057
        %v2625 = vpack.c.bf16 %v2063, %v2059
        %v2626 = vpack.c.bf16 %v2134, %v2130
        %v2627 = vpack.c.bf16 %v2136, %v2132
        %v2628 = vpack.c.bf16 %v2207, %v2203
        %v2629 = vpack.c.bf16 %v2209, %v2205
        %v2630 = vpack.c.bf16 %v2280, %v2276
        %v2631 = vpack.c.bf16 %v2282, %v2278
        %v2632 = vpack.c.bf16 %v2353, %v2349
        %v2633 = vpack.c.bf16 %v2355, %v2351
        %v2634 = vpack.c.bf16 %v2426, %v2422
        %v2635 = vpack.c.bf16 %v2428, %v2424
        %v2636 = vpack.c.bf16 %v2499, %v2495
        %v2637 = vpack.c.bf16 %v2501, %v2497
        %v2638 = vpack.c.bf16 %v2572, %v2568
        %v2639 = vpack.c.bf16 %v2574, %v2570
        %v2640 = vmax.bf16 %v2576, 0
        %v2641 = vmax.bf16 %v2577, 0
        %v2642 = vmax.bf16 %v2578, 0
        %v2643 = vmax.bf16 %v2579, 0
        %v2644 = vmax.bf16 %v2580, 0
        %v2645 = vmax.bf16 %v2581, 0
        %v2646 = vmax.bf16 %v2582, 0
        %v2647 = vmax.bf16 %v2583, 0
        %v2648 = vmax.bf16 %v2584, 0
        %v2649 = vmax.bf16 %v2585, 0
        %v2650 = vmax.bf16 %v2586, 0
        %v2651 = vmax.bf16 %v2587, 0
        %v2652 = vmax.bf16 %v2588, 0
        %v2653 = vmax.bf16 %v2589, 0
        %v2654 = vmax.bf16 %v2590, 0
        %v2655 = vmax.bf16 %v2591, 0
        %v2656 = vmax.bf16 %v2592, 0
        %v2657 = vmax.bf16 %v2593, 0
        %v2658 = vmax.bf16 %v2594, 0
        %v2659 = vmax.bf16 %v2595, 0
        %v2660 = vmax.bf16 %v2596, 0
        %v2661 = vmax.bf16 %v2597, 0
        %v2662 = vmax.bf16 %v2598, 0
        %v2663 = vmax.bf16 %v2599, 0
        %v2664 = vmax.bf16 %v2600, 0
        %v2665 = vmax.bf16 %v2601, 0
        %v2666 = vmax.bf16 %v2602, 0
        %v2667 = vmax.bf16 %v2603, 0
        %v2668 = vmax.bf16 %v2604, 0
        %v2669 = vmax.bf16 %v2605, 0
        %v2670 = vmax.bf16 %v2606, 0
        %v2671 = vmax.bf16 %v2607, 0
        %v2672 = vmax.bf16 %v2608, 0
        %v2673 = vmax.bf16 %v2609, 0
        %v2674 = vmax.bf16 %v2610, 0
        %v2675 = vmax.bf16 %v2611, 0
        %v2676 = vmax.bf16 %v2612, 0
        %v2677 = vmax.bf16 %v2613, 0
        %v2678 = vmax.bf16 %v2614, 0
        %v2679 = vmax.bf16 %v2615, 0
        %v2680 = vmax.bf16 %v2616, 0
        %v2681 = vmax.bf16 %v2617, 0
        %v2682 = vmax.bf16 %v2618, 0
        %v2683 = vmax.bf16 %v2619, 0
        %v2684 = vmax.bf16 %v2620, 0
        %v2685 = vmax.bf16 %v2621, 0
        %v2686 = vmax.bf16 %v2622, 0
        %v2687 = vmax.bf16 %v2623, 0
        %v2688 = vmax.bf16 %v2624, 0
        %v2689 = vmax.bf16 %v2625, 0
        %v2690 = vmax.bf16 %v2626, 0
        %v2691 = vmax.bf16 %v2627, 0
        %v2692 = vmax.bf16 %v2628, 0
        %v2693 = vmax.bf16 %v2629, 0
        %v2694 = vmax.bf16 %v2630, 0
        %v2695 = vmax.bf16 %v2631, 0
        %v2696 = vmax.bf16 %v2632, 0
        %v2697 = vmax.bf16 %v2633, 0
        %v2698 = vmax.bf16 %v2634, 0
        %v2699 = vmax.bf16 %v2635, 0
        %v2700 = vmax.bf16 %v2636, 0
        %v2701 = vmax.bf16 %v2637, 0
        %v2702 = vmax.bf16 %v2638, 0
        %v2703 = vmax.bf16 %v2639, 0
        %v2704 = vld [vmem:[%s3] sm:$0xf]
        %v2705 = vld [vmem:[%s3 + $0x4] sm:$0xf]
        %v2708 = vunpack.c.l.b16 %v2704
        %v2709 = vunpack.c.l.b16 %v2705
        %v2710 = vpack.c.b16 %v2709, %v2708
        %v2712 = vsel %vm895, %v2710, 0
        %2714 = vmatprep.subr.bf16.mxu0 0
        %2715 = vmatpush1.bf16.msra.mxu0 0
        %2716 = vmatprep.subr.bf16.mxu0 0
        %2717 = vmatpush1.bf16.msra.mxu0 0
        %2718 = vmatprep.subr.bf16.mxu0 0
        %2719 = vmatpush1.bf16.msra.mxu0 0
        %2720 = vmatprep.subr.bf16.mxu0 0
        %2721 = vmatpush1.bf16.msra.mxu0 0
        %2722 = vmatprep.subr.bf16.mxu0 %v2689
        %2723 = vmatpush1.bf16.msra.mxu0 %v2688
        %2724 = vmatprep.subr.bf16.mxu0 %v2673
        %2725 = vmatpush1.bf16.msra.mxu0 %v2672
        %2726 = vmatprep.subr.bf16.mxu0 %v2657
        %2727 = vmatpush1.bf16.msra.mxu0 %v2656
        %2728 = vmatprep.subr.bf16.mxu0 %v2641
        %2729 = vmatpush1.bf16.msra.mxu0 %v2640
        %2730 = vmatprep.subr.bf16.mxu0 0
        %2731 = vmatpush2.bf16.msra.mxu0 0
        %2732 = vmatprep.subr.bf16.mxu0 0
        %2733 = vmatpush2.bf16.msra.mxu0 0
        %2734 = vmatprep.subr.bf16.mxu0 0
        %2735 = vmatpush2.bf16.msra.mxu0 0
        %2736 = vmatprep.subr.bf16.mxu0 0
        %2737 = vmatpush2.bf16.msra.mxu0 0
        %2738 = vmatprep.subr.bf16.mxu0 0
        %2739 = vmatpush2.bf16.msra.mxu0 0
        %2740 = vmatprep.subr.bf16.mxu0 0
        %2741 = vmatpush2.bf16.msra.mxu0 0
        %2742 = vmatprep.subr.bf16.mxu0 0
        %2743 = vmatpush2.bf16.msra.mxu0 0
        %2744 = vmatprep.subr.bf16.mxu0 0
        %2745 = vmatpush2.bf16.msra.mxu0 0
        %2746 = vmatprep.mubr.bf16.mxu0 0
        %2747 = vmatmul.mubr.bf16.gmra.mxu0 %v2712
        %v2748 = vpop.f32.mrf.mxu0
        %v2749 = vadd.f32 0.0, %v2748
        %v2750 = vpop.f32.mrf.mxu0
        %v2751 = vadd.f32 0.0, %v2750
        %v2752 = vpop.f32.mrf.mxu0
        %v2753 = vadd.f32 0.0, %v2752
        %v2754 = vpop.f32.mrf.mxu0
        %v2755 = vadd.f32 0.0, %v2754
        %2756 = vdwg.mxu0
        %2757 = vmatprep.subr.bf16.mxu0 0
        %2758 = vmatpush1.bf16.msra.mxu0 0
        %2759 = vmatprep.subr.bf16.mxu0 0
        %2760 = vmatpush1.bf16.msra.mxu0 0
        %2761 = vmatprep.subr.bf16.mxu0 0
        %2762 = vmatpush1.bf16.msra.mxu0 0
        %2763 = vmatprep.subr.bf16.mxu0 0
        %2764 = vmatpush1.bf16.msra.mxu0 0
        %2765 = vmatprep.subr.bf16.mxu0 %v2691
        %2766 = vmatpush1.bf16.msra.mxu0 %v2690
        %2767 = vmatprep.subr.bf16.mxu0 %v2675
        %2768 = vmatpush1.bf16.msra.mxu0 %v2674
        %2769 = vmatprep.subr.bf16.mxu0 %v2659
        %2770 = vmatpush1.bf16.msra.mxu0 %v2658
        %2771 = vmatprep.subr.bf16.mxu0 %v2643
        %2772 = vmatpush1.bf16.msra.mxu0 %v2642
        %2773 = vmatprep.subr.bf16.mxu0 0
        %2774 = vmatpush2.bf16.msra.mxu0 0
        %2775 = vmatprep.subr.bf16.mxu0 0
        %2776 = vmatpush2.bf16.msra.mxu0 0
        %2777 = vmatprep.subr.bf16.mxu0 0
        %2778 = vmatpush2.bf16.msra.mxu0 0
        %2779 = vmatprep.subr.bf16.mxu0 0
        %2780 = vmatpush2.bf16.msra.mxu0 0
        %2781 = vmatprep.subr.bf16.mxu0 0
        %2782 = vmatpush2.bf16.msra.mxu0 0
        %2783 = vmatprep.subr.bf16.mxu0 0
        %2784 = vmatpush2.bf16.msra.mxu0 0
        %2785 = vmatprep.subr.bf16.mxu0 0
        %2786 = vmatpush2.bf16.msra.mxu0 0
        %2787 = vmatprep.subr.bf16.mxu0 0
        %2788 = vmatpush2.bf16.msra.mxu0 0
        %2789 = vmatprep.mubr.bf16.mxu0 0
        %2790 = vmatmul.mubr.bf16.gmra.mxu0 %v2712
        %v2791 = vpop.f32.mrf.mxu0
        %v2792 = vadd.f32 0.0, %v2791
        %v2793 = vpop.f32.mrf.mxu0
        %v2794 = vadd.f32 0.0, %v2793
        %v2795 = vpop.f32.mrf.mxu0
        %v2796 = vadd.f32 0.0, %v2795
        %v2797 = vpop.f32.mrf.mxu0
        %v2798 = vadd.f32 0.0, %v2797
        %2799 = vdwg.mxu0
        %2800 = vmatprep.subr.bf16.mxu0 0
        %2801 = vmatpush1.bf16.msra.mxu0 0
        %2802 = vmatprep.subr.bf16.mxu0 0
        %2803 = vmatpush1.bf16.msra.mxu0 0
        %2804 = vmatprep.subr.bf16.mxu0 0
        %2805 = vmatpush1.bf16.msra.mxu0 0
        %2806 = vmatprep.subr.bf16.mxu0 0
        %2807 = vmatpush1.bf16.msra.mxu0 0
        %2808 = vmatprep.subr.bf16.mxu0 %v2693
        %2809 = vmatpush1.bf16.msra.mxu0 %v2692
        %2810 = vmatprep.subr.bf16.mxu0 %v2677
        %2811 = vmatpush1.bf16.msra.mxu0 %v2676
        %2812 = vmatprep.subr.bf16.mxu0 %v2661
        %2813 = vmatpush1.bf16.msra.mxu0 %v2660
        %2814 = vmatprep.subr.bf16.mxu0 %v2645
        %2815 = vmatpush1.bf16.msra.mxu0 %v2644
        %2816 = vmatprep.subr.bf16.mxu0 0
        %2817 = vmatpush2.bf16.msra.mxu0 0
        %2818 = vmatprep.subr.bf16.mxu0 0
        %2819 = vmatpush2.bf16.msra.mxu0 0
        %2820 = vmatprep.subr.bf16.mxu0 0
        %2821 = vmatpush2.bf16.msra.mxu0 0
        %2822 = vmatprep.subr.bf16.mxu0 0
        %2823 = vmatpush2.bf16.msra.mxu0 0
        %2824 = vmatprep.subr.bf16.mxu0 0
        %2825 = vmatpush2.bf16.msra.mxu0 0
        %2826 = vmatprep.subr.bf16.mxu0 0
        %2827 = vmatpush2.bf16.msra.mxu0 0
        %2828 = vmatprep.subr.bf16.mxu0 0
        %2829 = vmatpush2.bf16.msra.mxu0 0
        %2830 = vmatprep.subr.bf16.mxu0 0
        %2831 = vmatpush2.bf16.msra.mxu0 0
        %2832 = vmatprep.mubr.bf16.mxu0 0
        %2833 = vmatmul.mubr.bf16.gmra.mxu0 %v2712
        %v2834 = vpop.f32.mrf.mxu0
        %v2835 = vadd.f32 0.0, %v2834
        %v2836 = vpop.f32.mrf.mxu0
        %v2837 = vadd.f32 0.0, %v2836
        %v2838 = vpop.f32.mrf.mxu0
        %v2839 = vadd.f32 0.0, %v2838
        %v2840 = vpop.f32.mrf.mxu0
        %v2841 = vadd.f32 0.0, %v2840
        %2842 = vdwg.mxu0
        %2843 = vmatprep.subr.bf16.mxu0 0
        %2844 = vmatpush1.bf16.msra.mxu0 0
        %2845 = vmatprep.subr.bf16.mxu0 0
        %2846 = vmatpush1.bf16.msra.mxu0 0
        %2847 = vmatprep.subr.bf16.mxu0 0
        %2848 = vmatpush1.bf16.msra.mxu0 0
        %2849 = vmatprep.subr.bf16.mxu0 0
        %2850 = vmatpush1.bf16.msra.mxu0 0
        %2851 = vmatprep.subr.bf16.mxu0 %v2695
        %2852 = vmatpush1.bf16.msra.mxu0 %v2694
        %2853 = vmatprep.subr.bf16.mxu0 %v2679
        %2854 = vmatpush1.bf16.msra.mxu0 %v2678
        %2855 = vmatprep.subr.bf16.mxu0 %v2663
        %2856 = vmatpush1.bf16.msra.mxu0 %v2662
        %2857 = vmatprep.subr.bf16.mxu0 %v2647
        %2858 = vmatpush1.bf16.msra.mxu0 %v2646
        %2859 = vmatprep.subr.bf16.mxu0 0
        %2860 = vmatpush2.bf16.msra.mxu0 0
        %2861 = vmatprep.subr.bf16.mxu0 0
        %2862 = vmatpush2.bf16.msra.mxu0 0
        %2863 = vmatprep.subr.bf16.mxu0 0
        %2864 = vmatpush2.bf16.msra.mxu0 0
        %2865 = vmatprep.subr.bf16.mxu0 0
        %2866 = vmatpush2.bf16.msra.mxu0 0
        %2867 = vmatprep.subr.bf16.mxu0 0
        %2868 = vmatpush2.bf16.msra.mxu0 0
        %2869 = vmatprep.subr.bf16.mxu0 0
        %2870 = vmatpush2.bf16.msra.mxu0 0
        %2871 = vmatprep.subr.bf16.mxu0 0
        %2872 = vmatpush2.bf16.msra.mxu0 0
        %2873 = vmatprep.subr.bf16.mxu0 0
        %2874 = vmatpush2.bf16.msra.mxu0 0
        %2875 = vmatprep.mubr.bf16.mxu0 0
        %2876 = vmatmul.mubr.bf16.gmra.mxu0 %v2712
        %v2877 = vpop.f32.mrf.mxu0
        %v2878 = vadd.f32 0.0, %v2877
        %v2879 = vpop.f32.mrf.mxu0
        %v2880 = vadd.f32 0.0, %v2879
        %v2881 = vpop.f32.mrf.mxu0
        %v2882 = vadd.f32 0.0, %v2881
        %v2883 = vpop.f32.mrf.mxu0
        %v2884 = vadd.f32 0.0, %v2883
        %2885 = vdwg.mxu0
        %2886 = vmatprep.subr.bf16.mxu0 0
        %2887 = vmatpush1.bf16.msra.mxu0 0
        %2888 = vmatprep.subr.bf16.mxu0 0
        %2889 = vmatpush1.bf16.msra.mxu0 0
        %2890 = vmatprep.subr.bf16.mxu0 0
        %2891 = vmatpush1.bf16.msra.mxu0 0
        %2892 = vmatprep.subr.bf16.mxu0 0
        %2893 = vmatpush1.bf16.msra.mxu0 0
        %2894 = vmatprep.subr.bf16.mxu0 %v2697
        %2895 = vmatpush1.bf16.msra.mxu0 %v2696
        %2896 = vmatprep.subr.bf16.mxu0 %v2681
        %2897 = vmatpush1.bf16.msra.mxu0 %v2680
        %2898 = vmatprep.subr.bf16.mxu0 %v2665
        %2899 = vmatpush1.bf16.msra.mxu0 %v2664
        %2900 = vmatprep.subr.bf16.mxu0 %v2649
        %2901 = vmatpush1.bf16.msra.mxu0 %v2648
        %2902 = vmatprep.subr.bf16.mxu0 0
        %2903 = vmatpush2.bf16.msra.mxu0 0
        %2904 = vmatprep.subr.bf16.mxu0 0
        %2905 = vmatpush2.bf16.msra.mxu0 0
        %2906 = vmatprep.subr.bf16.mxu0 0
        %2907 = vmatpush2.bf16.msra.mxu0 0
        %2908 = vmatprep.subr.bf16.mxu0 0
        %2909 = vmatpush2.bf16.msra.mxu0 0
        %2910 = vmatprep.subr.bf16.mxu0 0
        %2911 = vmatpush2.bf16.msra.mxu0 0
        %2912 = vmatprep.subr.bf16.mxu0 0
        %2913 = vmatpush2.bf16.msra.mxu0 0
        %2914 = vmatprep.subr.bf16.mxu0 0
        %2915 = vmatpush2.bf16.msra.mxu0 0
        %2916 = vmatprep.subr.bf16.mxu0 0
        %2917 = vmatpush2.bf16.msra.mxu0 0
        %2918 = vmatprep.mubr.bf16.mxu0 0
        %2919 = vmatmul.mubr.bf16.gmra.mxu0 %v2712
        %v2920 = vpop.f32.mrf.mxu0
        %v2921 = vadd.f32 0.0, %v2920
        %v2922 = vpop.f32.mrf.mxu0
        %v2923 = vadd.f32 0.0, %v2922
        %v2924 = vpop.f32.mrf.mxu0
        %v2925 = vadd.f32 0.0, %v2924
        %v2926 = vpop.f32.mrf.mxu0
        %v2927 = vadd.f32 0.0, %v2926
        %2928 = vdwg.mxu0
        %2929 = vmatprep.subr.bf16.mxu0 0
        %2930 = vmatpush1.bf16.msra.mxu0 0
        %2931 = vmatprep.subr.bf16.mxu0 0
        %2932 = vmatpush1.bf16.msra.mxu0 0
        %2933 = vmatprep.subr.bf16.mxu0 0
        %2934 = vmatpush1.bf16.msra.mxu0 0
        %2935 = vmatprep.subr.bf16.mxu0 0
        %2936 = vmatpush1.bf16.msra.mxu0 0
        %2937 = vmatprep.subr.bf16.mxu0 %v2699
        %2938 = vmatpush1.bf16.msra.mxu0 %v2698
        %2939 = vmatprep.subr.bf16.mxu0 %v2683
        %2940 = vmatpush1.bf16.msra.mxu0 %v2682
        %2941 = vmatprep.subr.bf16.mxu0 %v2667
        %2942 = vmatpush1.bf16.msra.mxu0 %v2666
        %2943 = vmatprep.subr.bf16.mxu0 %v2651
        %2944 = vmatpush1.bf16.msra.mxu0 %v2650
        %2945 = vmatprep.subr.bf16.mxu0 0
        %2946 = vmatpush2.bf16.msra.mxu0 0
        %2947 = vmatprep.subr.bf16.mxu0 0
        %2948 = vmatpush2.bf16.msra.mxu0 0
        %2949 = vmatprep.subr.bf16.mxu0 0
        %2950 = vmatpush2.bf16.msra.mxu0 0
        %2951 = vmatprep.subr.bf16.mxu0 0
        %2952 = vmatpush2.bf16.msra.mxu0 0
        %2953 = vmatprep.subr.bf16.mxu0 0
        %2954 = vmatpush2.bf16.msra.mxu0 0
        %2955 = vmatprep.subr.bf16.mxu0 0
        %2956 = vmatpush2.bf16.msra.mxu0 0
        %2957 = vmatprep.subr.bf16.mxu0 0
        %2958 = vmatpush2.bf16.msra.mxu0 0
        %2959 = vmatprep.subr.bf16.mxu0 0
        %2960 = vmatpush2.bf16.msra.mxu0 0
        %2961 = vmatprep.mubr.bf16.mxu0 0
        %2962 = vmatmul.mubr.bf16.gmra.mxu0 %v2712
        %v2963 = vpop.f32.mrf.mxu0
        %v2964 = vadd.f32 0.0, %v2963
        %v2965 = vpop.f32.mrf.mxu0
        %v2966 = vadd.f32 0.0, %v2965
        %v2967 = vpop.f32.mrf.mxu0
        %v2968 = vadd.f32 0.0, %v2967
        %v2969 = vpop.f32.mrf.mxu0
        %v2970 = vadd.f32 0.0, %v2969
        %2971 = vdwg.mxu0
        %2972 = vmatprep.subr.bf16.mxu0 0
        %2973 = vmatpush1.bf16.msra.mxu0 0
        %2974 = vmatprep.subr.bf16.mxu0 0
        %2975 = vmatpush1.bf16.msra.mxu0 0
        %2976 = vmatprep.subr.bf16.mxu0 0
        %2977 = vmatpush1.bf16.msra.mxu0 0
        %2978 = vmatprep.subr.bf16.mxu0 0
        %2979 = vmatpush1.bf16.msra.mxu0 0
        %2980 = vmatprep.subr.bf16.mxu0 %v2701
        %2981 = vmatpush1.bf16.msra.mxu0 %v2700
        %2982 = vmatprep.subr.bf16.mxu0 %v2685
        %2983 = vmatpush1.bf16.msra.mxu0 %v2684
        %2984 = vmatprep.subr.bf16.mxu0 %v2669
        %2985 = vmatpush1.bf16.msra.mxu0 %v2668
        %2986 = vmatprep.subr.bf16.mxu0 %v2653
        %2987 = vmatpush1.bf16.msra.mxu0 %v2652
        %2988 = vmatprep.subr.bf16.mxu0 0
        %2989 = vmatpush2.bf16.msra.mxu0 0
        %2990 = vmatprep.subr.bf16.mxu0 0
        %2991 = vmatpush2.bf16.msra.mxu0 0
        %2992 = vmatprep.subr.bf16.mxu0 0
        %2993 = vmatpush2.bf16.msra.mxu0 0
        %2994 = vmatprep.subr.bf16.mxu0 0
        %2995 = vmatpush2.bf16.msra.mxu0 0
        %2996 = vmatprep.subr.bf16.mxu0 0
        %2997 = vmatpush2.bf16.msra.mxu0 0
        %2998 = vmatprep.subr.bf16.mxu0 0
        %2999 = vmatpush2.bf16.msra.mxu0 0
        %3000 = vmatprep.subr.bf16.mxu0 0
        %3001 = vmatpush2.bf16.msra.mxu0 0
        %3002 = vmatprep.subr.bf16.mxu0 0
        %3003 = vmatpush2.bf16.msra.mxu0 0
        %3004 = vmatprep.mubr.bf16.mxu0 0
        %3005 = vmatmul.mubr.bf16.gmra.mxu0 %v2712
        %v3006 = vpop.f32.mrf.mxu0
        %v3007 = vadd.f32 0.0, %v3006
        %v3008 = vpop.f32.mrf.mxu0
        %v3009 = vadd.f32 0.0, %v3008
        %v3010 = vpop.f32.mrf.mxu0
        %v3011 = vadd.f32 0.0, %v3010
        %v3012 = vpop.f32.mrf.mxu0
        %v3013 = vadd.f32 0.0, %v3012
        %3014 = vdwg.mxu0
        %3015 = vmatprep.subr.bf16.mxu0 0
        %3016 = vmatpush1.bf16.msra.mxu0 0
        %3017 = vmatprep.subr.bf16.mxu0 0
        %3018 = vmatpush1.bf16.msra.mxu0 0
        %3019 = vmatprep.subr.bf16.mxu0 0
        %3020 = vmatpush1.bf16.msra.mxu0 0
        %3021 = vmatprep.subr.bf16.mxu0 0
        %3022 = vmatpush1.bf16.msra.mxu0 0
        %3023 = vmatprep.subr.bf16.mxu0 %v2703
        %3024 = vmatpush1.bf16.msra.mxu0 %v2702
        %3025 = vmatprep.subr.bf16.mxu0 %v2687
        %3026 = vmatpush1.bf16.msra.mxu0 %v2686
        %3027 = vmatprep.subr.bf16.mxu0 %v2671
        %3028 = vmatpush1.bf16.msra.mxu0 %v2670
        %3029 = vmatprep.subr.bf16.mxu0 %v2655
        %3030 = vmatpush1.bf16.msra.mxu0 %v2654
        %3031 = vmatprep.subr.bf16.mxu0 0
        %3032 = vmatpush2.bf16.msra.mxu0 0
        %3033 = vmatprep.subr.bf16.mxu0 0
        %3034 = vmatpush2.bf16.msra.mxu0 0
        %3035 = vmatprep.subr.bf16.mxu0 0
        %3036 = vmatpush2.bf16.msra.mxu0 0
        %3037 = vmatprep.subr.bf16.mxu0 0
        %3038 = vmatpush2.bf16.msra.mxu0 0
        %3039 = vmatprep.subr.bf16.mxu0 0
        %3040 = vmatpush2.bf16.msra.mxu0 0
        %3041 = vmatprep.subr.bf16.mxu0 0
        %3042 = vmatpush2.bf16.msra.mxu0 0
        %3043 = vmatprep.subr.bf16.mxu0 0
        %3044 = vmatpush2.bf16.msra.mxu0 0
        %3045 = vmatprep.subr.bf16.mxu0 0
        %3046 = vmatpush2.bf16.msra.mxu0 0
        %3047 = vmatprep.mubr.bf16.mxu0 0
        %3048 = vmatmul.mubr.bf16.gmra.mxu0 %v2712
        %v3049 = vpop.f32.mrf.mxu0
        %v3050 = vadd.f32 0.0, %v3049
        %v3051 = vpop.f32.mrf.mxu0
        %v3052 = vadd.f32 0.0, %v3051
        %v3053 = vpop.f32.mrf.mxu0
        %v3054 = vadd.f32 0.0, %v3053
        %v3055 = vpop.f32.mrf.mxu0
        %v3056 = vadd.f32 0.0, %v3055
        %3057 = vdwg.mxu0
        %v3058 = vmax.f32 %v2749, 0.0
        %v3059 = vmax.f32 %v2751, 0.0
        %v3060 = vmax.f32 %v2792, 0.0
        %v3061 = vmax.f32 %v2794, 0.0
        %v3062 = vmax.f32 %v2835, 0.0
        %v3063 = vmax.f32 %v2837, 0.0
        %v3064 = vmax.f32 %v2878, 0.0
        %v3065 = vmax.f32 %v2880, 0.0
        %v3066 = vmax.f32 %v2921, 0.0
        %v3067 = vmax.f32 %v2923, 0.0
        %v3068 = vmax.f32 %v2964, 0.0
        %v3069 = vmax.f32 %v2966, 0.0
        %v3070 = vmax.f32 %v3007, 0.0
        %v3071 = vmax.f32 %v3009, 0.0
        %v3072 = vmax.f32 %v3050, 0.0
        %v3073 = vmax.f32 %v3052, 0.0
        %v3074 = vmax.f32 %v2753, 0.0
        %v3075 = vmax.f32 %v2755, 0.0
        %v3076 = vmax.f32 %v2796, 0.0
        %v3077 = vmax.f32 %v2798, 0.0
        %v3078 = vmax.f32 %v2839, 0.0
        %v3079 = vmax.f32 %v2841, 0.0
        %v3080 = vmax.f32 %v2882, 0.0
        %v3081 = vmax.f32 %v2884, 0.0
        %v3082 = vmax.f32 %v2925, 0.0
        %v3083 = vmax.f32 %v2927, 0.0
        %v3084 = vmax.f32 %v2968, 0.0
        %v3085 = vmax.f32 %v2970, 0.0
        %v3086 = vmax.f32 %v3011, 0.0
        %v3087 = vmax.f32 %v3013, 0.0
        %v3088 = vmax.f32 %v3054, 0.0
        %v3089 = vmax.f32 %v3056, 0.0
        %v3090 = vld [vmem:[%s4] sm:$0xf]
        %v3091 = vld [vmem:[%s4 + $0x4] sm:$0xf]
        %v3092 = vld [vmem:[%s4 + $0x8] sm:$0xf]
        %v3093 = vld [vmem:[%s4 + $0xc] sm:$0xf]
        %v3094 = vld [vmem:[%s4 + $0x10] sm:$0xf]
        %v3095 = vld [vmem:[%s4 + $0x14] sm:$0xf]
        %v3096 = vld [vmem:[%s4 + $0x18] sm:$0xf]
        %v3097 = vld [vmem:[%s4 + $0x1c] sm:$0xf]
        %v3098 = vpack.c.bf16 %v3074, %v3058
        %v3099 = vpack.c.bf16 %v3075, %v3059
        %v3100 = vpack.c.bf16 %v3076, %v3060
        %v3101 = vpack.c.bf16 %v3077, %v3061
        %v3102 = vpack.c.bf16 %v3078, %v3062
        %v3103 = vpack.c.bf16 %v3079, %v3063
        %v3104 = vpack.c.bf16 %v3080, %v3064
        %v3105 = vpack.c.bf16 %v3081, %v3065
        %v3106 = vpack.c.bf16 %v3082, %v3066
        %v3107 = vpack.c.bf16 %v3083, %v3067
        %v3108 = vpack.c.bf16 %v3084, %v3068
        %v3109 = vpack.c.bf16 %v3085, %v3069
        %v3110 = vpack.c.bf16 %v3086, %v3070
        %v3111 = vpack.c.bf16 %v3087, %v3071
        %v3112 = vpack.c.bf16 %v3088, %v3072
        %v3113 = vpack.c.bf16 %v3089, %v3073
        %v3122 = vunpack.c.l.b16 %v3090
        %v3123 = vunpack.c.l.b16 %v3091
        %v3124 = vunpack.c.l.b16 %v3092
        %v3125 = vunpack.c.l.b16 %v3093
        %v3126 = vunpack.c.l.b16 %v3094
        %v3127 = vunpack.c.l.b16 %v3095
        %v3128 = vunpack.c.l.b16 %v3096
        %v3129 = vunpack.c.l.b16 %v3097
        %v3130 = vpack.c.b16 %v3123, %v3122
        %v3131 = vpack.c.b16 %v3125, %v3124
        %v3132 = vpack.c.b16 %v3127, %v3126
        %v3133 = vpack.c.b16 %v3129, %v3128
        %vm3134 = vcmask 130048
        %v3136 = vsel %vm3134, %v3130, 0
        %v3139 = vsel %vm3134, %v3131, 0
        %v3142 = vsel %vm3134, %v3132, 0
        %v3145 = vsel %vm3134, %v3133, 0
        %3147 = vmatprep.subr.bf16.mxu0 0
        %3148 = vmatpush1.bf16.msra.mxu0 0
        %3149 = vmatprep.subr.bf16.mxu0 0
        %3150 = vmatpush1.bf16.msra.mxu0 0
        %3151 = vmatprep.subr.bf16.mxu0 0
        %3152 = vmatpush1.bf16.msra.mxu0 0
        %3153 = vmatprep.subr.bf16.mxu0 0
        %3154 = vmatpush1.bf16.msra.mxu0 0
        %3155 = vmatprep.subr.bf16.mxu0 0
        %3156 = vmatpush1.bf16.msra.mxu0 0
        %3157 = vmatprep.subr.bf16.mxu0 0
        %3158 = vmatpush1.bf16.msra.mxu0 0
        %3159 = vmatprep.subr.bf16.mxu0 0
        %3160 = vmatpush1.bf16.msra.mxu0 0
        %3161 = vmatprep.subr.bf16.mxu0 %v3099
        %3162 = vmatpush1.bf16.msra.mxu0 %v3098
        %3163 = vmatprep.subr.bf16.mxu0 0
        %3164 = vmatpush2.bf16.msra.mxu0 0
        %3165 = vmatprep.subr.bf16.mxu0 0
        %3166 = vmatpush2.bf16.msra.mxu0 0
        %3167 = vmatprep.subr.bf16.mxu0 0
        %3168 = vmatpush2.bf16.msra.mxu0 0
        %3169 = vmatprep.subr.bf16.mxu0 0
        %3170 = vmatpush2.bf16.msra.mxu0 0
        %3171 = vmatprep.subr.bf16.mxu0 0
        %3172 = vmatpush2.bf16.msra.mxu0 0
        %3173 = vmatprep.subr.bf16.mxu0 0
        %3174 = vmatpush2.bf16.msra.mxu0 0
        %3175 = vmatprep.subr.bf16.mxu0 0
        %3176 = vmatpush2.bf16.msra.mxu0 0
        %3177 = vmatprep.subr.bf16.mxu0 0
        %3178 = vmatpush2.bf16.msra.mxu0 0
        %3179 = vmatprep.mubr.bf16.mxu0 0
        %3180 = vmatmul.mubr.bf16.gmra.mxu0 %v3136
        %v3181 = vpop.f32.mrf.mxu0
        %v3182 = vadd.f32 0.0, %v3181
        %v3183 = vpop.f32.mrf.mxu0
        %v3184 = vadd.f32 0.0, %v3183
        %v3185 = vpop.f32.mrf.mxu0
        %v3186 = vadd.f32 0.0, %v3185
        %v3187 = vpop.f32.mrf.mxu0
        %v3188 = vadd.f32 0.0, %v3187
        %3189 = vmatprep.mubr.bf16.mxu0 0
        %3190 = vmatmul.mubr.bf16.gmra.mxu0 %v3139
        %v3191 = vpop.f32.mrf.mxu0
        %v3192 = vadd.f32 0.0, %v3191
        %v3193 = vpop.f32.mrf.mxu0
        %v3194 = vadd.f32 0.0, %v3193
        %v3195 = vpop.f32.mrf.mxu0
        %v3196 = vadd.f32 0.0, %v3195
        %v3197 = vpop.f32.mrf.mxu0
        %v3198 = vadd.f32 0.0, %v3197
        %3199 = vmatprep.mubr.bf16.mxu0 0
        %3200 = vmatmul.mubr.bf16.gmra.mxu0 %v3142
        %v3201 = vpop.f32.mrf.mxu0
        %v3202 = vadd.f32 0.0, %v3201
        %v3203 = vpop.f32.mrf.mxu0
        %v3204 = vadd.f32 0.0, %v3203
        %v3205 = vpop.f32.mrf.mxu0
        %v3206 = vadd.f32 0.0, %v3205
        %v3207 = vpop.f32.mrf.mxu0
        %v3208 = vadd.f32 0.0, %v3207
        %3209 = vmatprep.mubr.bf16.mxu0 0
        %3210 = vmatmul.mubr.bf16.gmra.mxu0 %v3145
        %v3211 = vpop.f32.mrf.mxu0
        %v3212 = vadd.f32 0.0, %v3211
        %v3213 = vpop.f32.mrf.mxu0
        %v3214 = vadd.f32 0.0, %v3213
        %v3215 = vpop.f32.mrf.mxu0
        %v3216 = vadd.f32 0.0, %v3215
        %v3217 = vpop.f32.mrf.mxu0
        %v3218 = vadd.f32 0.0, %v3217
        %3219 = vdwg.mxu0
        %3220 = vmatprep.subr.bf16.mxu0 0
        %3221 = vmatpush1.bf16.msra.mxu0 0
        %3222 = vmatprep.subr.bf16.mxu0 0
        %3223 = vmatpush1.bf16.msra.mxu0 0
        %3224 = vmatprep.subr.bf16.mxu0 0
        %3225 = vmatpush1.bf16.msra.mxu0 0
        %3226 = vmatprep.subr.bf16.mxu0 0
        %3227 = vmatpush1.bf16.msra.mxu0 0
        %3228 = vmatprep.subr.bf16.mxu0 0
        %3229 = vmatpush1.bf16.msra.mxu0 0
        %3230 = vmatprep.subr.bf16.mxu0 0
        %3231 = vmatpush1.bf16.msra.mxu0 0
        %3232 = vmatprep.subr.bf16.mxu0 0
        %3233 = vmatpush1.bf16.msra.mxu0 0
        %3234 = vmatprep.subr.bf16.mxu0 %v3101
        %3235 = vmatpush1.bf16.msra.mxu0 %v3100
        %3236 = vmatprep.subr.bf16.mxu0 0
        %3237 = vmatpush2.bf16.msra.mxu0 0
        %3238 = vmatprep.subr.bf16.mxu0 0
        %3239 = vmatpush2.bf16.msra.mxu0 0
        %3240 = vmatprep.subr.bf16.mxu0 0
        %3241 = vmatpush2.bf16.msra.mxu0 0
        %3242 = vmatprep.subr.bf16.mxu0 0
        %3243 = vmatpush2.bf16.msra.mxu0 0
        %3244 = vmatprep.subr.bf16.mxu0 0
        %3245 = vmatpush2.bf16.msra.mxu0 0
        %3246 = vmatprep.subr.bf16.mxu0 0
        %3247 = vmatpush2.bf16.msra.mxu0 0
        %3248 = vmatprep.subr.bf16.mxu0 0
        %3249 = vmatpush2.bf16.msra.mxu0 0
        %3250 = vmatprep.subr.bf16.mxu0 0
        %3251 = vmatpush2.bf16.msra.mxu0 0
        %3252 = vmatprep.mubr.bf16.mxu0 0
        %3253 = vmatmul.mubr.bf16.gmra.mxu0 %v3136
        %v3254 = vpop.f32.mrf.mxu0
        %v3255 = vadd.f32 0.0, %v3254
        %v3256 = vpop.f32.mrf.mxu0
        %v3257 = vadd.f32 0.0, %v3256
        %v3258 = vpop.f32.mrf.mxu0
        %v3259 = vadd.f32 0.0, %v3258
        %v3260 = vpop.f32.mrf.mxu0
        %v3261 = vadd.f32 0.0, %v3260
        %3262 = vmatprep.mubr.bf16.mxu0 0
        %3263 = vmatmul.mubr.bf16.gmra.mxu0 %v3139
        %v3264 = vpop.f32.mrf.mxu0
        %v3265 = vadd.f32 0.0, %v3264
        %v3266 = vpop.f32.mrf.mxu0
        %v3267 = vadd.f32 0.0, %v3266
        %v3268 = vpop.f32.mrf.mxu0
        %v3269 = vadd.f32 0.0, %v3268
        %v3270 = vpop.f32.mrf.mxu0
        %v3271 = vadd.f32 0.0, %v3270
        %3272 = vmatprep.mubr.bf16.mxu0 0
        %3273 = vmatmul.mubr.bf16.gmra.mxu0 %v3142
        %v3274 = vpop.f32.mrf.mxu0
        %v3275 = vadd.f32 0.0, %v3274
        %v3276 = vpop.f32.mrf.mxu0
        %v3277 = vadd.f32 0.0, %v3276
        %v3278 = vpop.f32.mrf.mxu0
        %v3279 = vadd.f32 0.0, %v3278
        %v3280 = vpop.f32.mrf.mxu0
        %v3281 = vadd.f32 0.0, %v3280
        %3282 = vmatprep.mubr.bf16.mxu0 0
        %3283 = vmatmul.mubr.bf16.gmra.mxu0 %v3145
        %v3284 = vpop.f32.mrf.mxu0
        %v3285 = vadd.f32 0.0, %v3284
        %v3286 = vpop.f32.mrf.mxu0
        %v3287 = vadd.f32 0.0, %v3286
        %v3288 = vpop.f32.mrf.mxu0
        %v3289 = vadd.f32 0.0, %v3288
        %v3290 = vpop.f32.mrf.mxu0
        %v3291 = vadd.f32 0.0, %v3290
        %3292 = vdwg.mxu0
        %3293 = vmatprep.subr.bf16.mxu0 0
        %3294 = vmatpush1.bf16.msra.mxu0 0
        %3295 = vmatprep.subr.bf16.mxu0 0
        %3296 = vmatpush1.bf16.msra.mxu0 0
        %3297 = vmatprep.subr.bf16.mxu0 0
        %3298 = vmatpush1.bf16.msra.mxu0 0
        %3299 = vmatprep.subr.bf16.mxu0 0
        %3300 = vmatpush1.bf16.msra.mxu0 0
        %3301 = vmatprep.subr.bf16.mxu0 0
        %3302 = vmatpush1.bf16.msra.mxu0 0
        %3303 = vmatprep.subr.bf16.mxu0 0
        %3304 = vmatpush1.bf16.msra.mxu0 0
        %3305 = vmatprep.subr.bf16.mxu0 0
        %3306 = vmatpush1.bf16.msra.mxu0 0
        %3307 = vmatprep.subr.bf16.mxu0 %v3103
        %3308 = vmatpush1.bf16.msra.mxu0 %v3102
        %3309 = vmatprep.subr.bf16.mxu0 0
        %3310 = vmatpush2.bf16.msra.mxu0 0
        %3311 = vmatprep.subr.bf16.mxu0 0
        %3312 = vmatpush2.bf16.msra.mxu0 0
        %3313 = vmatprep.subr.bf16.mxu0 0
        %3314 = vmatpush2.bf16.msra.mxu0 0
        %3315 = vmatprep.subr.bf16.mxu0 0
        %3316 = vmatpush2.bf16.msra.mxu0 0
        %3317 = vmatprep.subr.bf16.mxu0 0
        %3318 = vmatpush2.bf16.msra.mxu0 0
        %3319 = vmatprep.subr.bf16.mxu0 0
        %3320 = vmatpush2.bf16.msra.mxu0 0
        %3321 = vmatprep.subr.bf16.mxu0 0
        %3322 = vmatpush2.bf16.msra.mxu0 0
        %3323 = vmatprep.subr.bf16.mxu0 0
        %3324 = vmatpush2.bf16.msra.mxu0 0
        %3325 = vmatprep.mubr.bf16.mxu0 0
        %3326 = vmatmul.mubr.bf16.gmra.mxu0 %v3136
        %v3327 = vpop.f32.mrf.mxu0
        %v3328 = vadd.f32 0.0, %v3327
        %v3329 = vpop.f32.mrf.mxu0
        %v3330 = vadd.f32 0.0, %v3329
        %v3331 = vpop.f32.mrf.mxu0
        %v3332 = vadd.f32 0.0, %v3331
        %v3333 = vpop.f32.mrf.mxu0
        %v3334 = vadd.f32 0.0, %v3333
        %3335 = vmatprep.mubr.bf16.mxu0 0
        %3336 = vmatmul.mubr.bf16.gmra.mxu0 %v3139
        %v3337 = vpop.f32.mrf.mxu0
        %v3338 = vadd.f32 0.0, %v3337
        %v3339 = vpop.f32.mrf.mxu0
        %v3340 = vadd.f32 0.0, %v3339
        %v3341 = vpop.f32.mrf.mxu0
        %v3342 = vadd.f32 0.0, %v3341
        %v3343 = vpop.f32.mrf.mxu0
        %v3344 = vadd.f32 0.0, %v3343
        %3345 = vmatprep.mubr.bf16.mxu0 0
        %3346 = vmatmul.mubr.bf16.gmra.mxu0 %v3142
        %v3347 = vpop.f32.mrf.mxu0
        %v3348 = vadd.f32 0.0, %v3347
        %v3349 = vpop.f32.mrf.mxu0
        %v3350 = vadd.f32 0.0, %v3349
        %v3351 = vpop.f32.mrf.mxu0
        %v3352 = vadd.f32 0.0, %v3351
        %v3353 = vpop.f32.mrf.mxu0
        %v3354 = vadd.f32 0.0, %v3353
        %3355 = vmatprep.mubr.bf16.mxu0 0
        %3356 = vmatmul.mubr.bf16.gmra.mxu0 %v3145
        %v3357 = vpop.f32.mrf.mxu0
        %v3358 = vadd.f32 0.0, %v3357
        %v3359 = vpop.f32.mrf.mxu0
        %v3360 = vadd.f32 0.0, %v3359
        %v3361 = vpop.f32.mrf.mxu0
        %v3362 = vadd.f32 0.0, %v3361
        %v3363 = vpop.f32.mrf.mxu0
        %v3364 = vadd.f32 0.0, %v3363
        %3365 = vdwg.mxu0
        %3366 = vmatprep.subr.bf16.mxu0 0
        %3367 = vmatpush1.bf16.msra.mxu0 0
        %3368 = vmatprep.subr.bf16.mxu0 0
        %3369 = vmatpush1.bf16.msra.mxu0 0
        %3370 = vmatprep.subr.bf16.mxu0 0
        %3371 = vmatpush1.bf16.msra.mxu0 0
        %3372 = vmatprep.subr.bf16.mxu0 0
        %3373 = vmatpush1.bf16.msra.mxu0 0
        %3374 = vmatprep.subr.bf16.mxu0 0
        %3375 = vmatpush1.bf16.msra.mxu0 0
        %3376 = vmatprep.subr.bf16.mxu0 0
        %3377 = vmatpush1.bf16.msra.mxu0 0
        %3378 = vmatprep.subr.bf16.mxu0 0
        %3379 = vmatpush1.bf16.msra.mxu0 0
        %3380 = vmatprep.subr.bf16.mxu0 %v3105
        %3381 = vmatpush1.bf16.msra.mxu0 %v3104
        %3382 = vmatprep.subr.bf16.mxu0 0
        %3383 = vmatpush2.bf16.msra.mxu0 0
        %3384 = vmatprep.subr.bf16.mxu0 0
        %3385 = vmatpush2.bf16.msra.mxu0 0
        %3386 = vmatprep.subr.bf16.mxu0 0
        %3387 = vmatpush2.bf16.msra.mxu0 0
        %3388 = vmatprep.subr.bf16.mxu0 0
        %3389 = vmatpush2.bf16.msra.mxu0 0
        %3390 = vmatprep.subr.bf16.mxu0 0
        %3391 = vmatpush2.bf16.msra.mxu0 0
        %3392 = vmatprep.subr.bf16.mxu0 0
        %3393 = vmatpush2.bf16.msra.mxu0 0
        %3394 = vmatprep.subr.bf16.mxu0 0
        %3395 = vmatpush2.bf16.msra.mxu0 0
        %3396 = vmatprep.subr.bf16.mxu0 0
        %3397 = vmatpush2.bf16.msra.mxu0 0
        %3398 = vmatprep.mubr.bf16.mxu0 0
        %3399 = vmatmul.mubr.bf16.gmra.mxu0 %v3136
        %v3400 = vpop.f32.mrf.mxu0
        %v3401 = vadd.f32 0.0, %v3400
        %v3402 = vpop.f32.mrf.mxu0
        %v3403 = vadd.f32 0.0, %v3402
        %v3404 = vpop.f32.mrf.mxu0
        %v3405 = vadd.f32 0.0, %v3404
        %v3406 = vpop.f32.mrf.mxu0
        %v3407 = vadd.f32 0.0, %v3406
        %3408 = vmatprep.mubr.bf16.mxu0 0
        %3409 = vmatmul.mubr.bf16.gmra.mxu0 %v3139
        %v3410 = vpop.f32.mrf.mxu0
        %v3411 = vadd.f32 0.0, %v3410
        %v3412 = vpop.f32.mrf.mxu0
        %v3413 = vadd.f32 0.0, %v3412
        %v3414 = vpop.f32.mrf.mxu0
        %v3415 = vadd.f32 0.0, %v3414
        %v3416 = vpop.f32.mrf.mxu0
        %v3417 = vadd.f32 0.0, %v3416
        %3418 = vmatprep.mubr.bf16.mxu0 0
        %3419 = vmatmul.mubr.bf16.gmra.mxu0 %v3142
        %v3420 = vpop.f32.mrf.mxu0
        %v3421 = vadd.f32 0.0, %v3420
        %v3422 = vpop.f32.mrf.mxu0
        %v3423 = vadd.f32 0.0, %v3422
        %v3424 = vpop.f32.mrf.mxu0
        %v3425 = vadd.f32 0.0, %v3424
        %v3426 = vpop.f32.mrf.mxu0
        %v3427 = vadd.f32 0.0, %v3426
        %3428 = vmatprep.mubr.bf16.mxu0 0
        %3429 = vmatmul.mubr.bf16.gmra.mxu0 %v3145
        %v3430 = vpop.f32.mrf.mxu0
        %v3431 = vadd.f32 0.0, %v3430
        %v3432 = vpop.f32.mrf.mxu0
        %v3433 = vadd.f32 0.0, %v3432
        %v3434 = vpop.f32.mrf.mxu0
        %v3435 = vadd.f32 0.0, %v3434
        %v3436 = vpop.f32.mrf.mxu0
        %v3437 = vadd.f32 0.0, %v3436
        %3438 = vdwg.mxu0
        %3439 = vmatprep.subr.bf16.mxu0 0
        %3440 = vmatpush1.bf16.msra.mxu0 0
        %3441 = vmatprep.subr.bf16.mxu0 0
        %3442 = vmatpush1.bf16.msra.mxu0 0
        %3443 = vmatprep.subr.bf16.mxu0 0
        %3444 = vmatpush1.bf16.msra.mxu0 0
        %3445 = vmatprep.subr.bf16.mxu0 0
        %3446 = vmatpush1.bf16.msra.mxu0 0
        %3447 = vmatprep.subr.bf16.mxu0 0
        %3448 = vmatpush1.bf16.msra.mxu0 0
        %3449 = vmatprep.subr.bf16.mxu0 0
        %3450 = vmatpush1.bf16.msra.mxu0 0
        %3451 = vmatprep.subr.bf16.mxu0 0
        %3452 = vmatpush1.bf16.msra.mxu0 0
        %3453 = vmatprep.subr.bf16.mxu0 %v3107
        %3454 = vmatpush1.bf16.msra.mxu0 %v3106
        %3455 = vmatprep.subr.bf16.mxu0 0
        %3456 = vmatpush2.bf16.msra.mxu0 0
        %3457 = vmatprep.subr.bf16.mxu0 0
        %3458 = vmatpush2.bf16.msra.mxu0 0
        %3459 = vmatprep.subr.bf16.mxu0 0
        %3460 = vmatpush2.bf16.msra.mxu0 0
        %3461 = vmatprep.subr.bf16.mxu0 0
        %3462 = vmatpush2.bf16.msra.mxu0 0
        %3463 = vmatprep.subr.bf16.mxu0 0
        %3464 = vmatpush2.bf16.msra.mxu0 0
        %3465 = vmatprep.subr.bf16.mxu0 0
        %3466 = vmatpush2.bf16.msra.mxu0 0
        %3467 = vmatprep.subr.bf16.mxu0 0
        %3468 = vmatpush2.bf16.msra.mxu0 0
        %3469 = vmatprep.subr.bf16.mxu0 0
        %3470 = vmatpush2.bf16.msra.mxu0 0
        %3471 = vmatprep.mubr.bf16.mxu0 0
        %3472 = vmatmul.mubr.bf16.gmra.mxu0 %v3136
        %v3473 = vpop.f32.mrf.mxu0
        %v3474 = vadd.f32 0.0, %v3473
        %v3475 = vpop.f32.mrf.mxu0
        %v3476 = vadd.f32 0.0, %v3475
        %v3477 = vpop.f32.mrf.mxu0
        %v3478 = vadd.f32 0.0, %v3477
        %v3479 = vpop.f32.mrf.mxu0
        %v3480 = vadd.f32 0.0, %v3479
        %3481 = vmatprep.mubr.bf16.mxu0 0
        %3482 = vmatmul.mubr.bf16.gmra.mxu0 %v3139
        %v3483 = vpop.f32.mrf.mxu0
        %v3484 = vadd.f32 0.0, %v3483
        %v3485 = vpop.f32.mrf.mxu0
        %v3486 = vadd.f32 0.0, %v3485
        %v3487 = vpop.f32.mrf.mxu0
        %v3488 = vadd.f32 0.0, %v3487
        %v3489 = vpop.f32.mrf.mxu0
        %v3490 = vadd.f32 0.0, %v3489
        %3491 = vmatprep.mubr.bf16.mxu0 0
        %3492 = vmatmul.mubr.bf16.gmra.mxu0 %v3142
        %v3493 = vpop.f32.mrf.mxu0
        %v3494 = vadd.f32 0.0, %v3493
        %v3495 = vpop.f32.mrf.mxu0
        %v3496 = vadd.f32 0.0, %v3495
        %v3497 = vpop.f32.mrf.mxu0
        %v3498 = vadd.f32 0.0, %v3497
        %v3499 = vpop.f32.mrf.mxu0
        %v3500 = vadd.f32 0.0, %v3499
        %3501 = vmatprep.mubr.bf16.mxu0 0
        %3502 = vmatmul.mubr.bf16.gmra.mxu0 %v3145
        %v3503 = vpop.f32.mrf.mxu0
        %v3504 = vadd.f32 0.0, %v3503
        %v3505 = vpop.f32.mrf.mxu0
        %v3506 = vadd.f32 0.0, %v3505
        %v3507 = vpop.f32.mrf.mxu0
        %v3508 = vadd.f32 0.0, %v3507
        %v3509 = vpop.f32.mrf.mxu0
        %v3510 = vadd.f32 0.0, %v3509
        %3511 = vdwg.mxu0
        %3512 = vmatprep.subr.bf16.mxu0 0
        %3513 = vmatpush1.bf16.msra.mxu0 0
        %3514 = vmatprep.subr.bf16.mxu0 0
        %3515 = vmatpush1.bf16.msra.mxu0 0
        %3516 = vmatprep.subr.bf16.mxu0 0
        %3517 = vmatpush1.bf16.msra.mxu0 0
        %3518 = vmatprep.subr.bf16.mxu0 0
        %3519 = vmatpush1.bf16.msra.mxu0 0
        %3520 = vmatprep.subr.bf16.mxu0 0
        %3521 = vmatpush1.bf16.msra.mxu0 0
        %3522 = vmatprep.subr.bf16.mxu0 0
        %3523 = vmatpush1.bf16.msra.mxu0 0
        %3524 = vmatprep.subr.bf16.mxu0 0
        %3525 = vmatpush1.bf16.msra.mxu0 0
        %3526 = vmatprep.subr.bf16.mxu0 %v3109
        %3527 = vmatpush1.bf16.msra.mxu0 %v3108
        %3528 = vmatprep.subr.bf16.mxu0 0
        %3529 = vmatpush2.bf16.msra.mxu0 0
        %3530 = vmatprep.subr.bf16.mxu0 0
        %3531 = vmatpush2.bf16.msra.mxu0 0
        %3532 = vmatprep.subr.bf16.mxu0 0
        %3533 = vmatpush2.bf16.msra.mxu0 0
        %3534 = vmatprep.subr.bf16.mxu0 0
        %3535 = vmatpush2.bf16.msra.mxu0 0
        %3536 = vmatprep.subr.bf16.mxu0 0
        %3537 = vmatpush2.bf16.msra.mxu0 0
        %3538 = vmatprep.subr.bf16.mxu0 0
        %3539 = vmatpush2.bf16.msra.mxu0 0
        %3540 = vmatprep.subr.bf16.mxu0 0
        %3541 = vmatpush2.bf16.msra.mxu0 0
        %3542 = vmatprep.subr.bf16.mxu0 0
        %3543 = vmatpush2.bf16.msra.mxu0 0
        %3544 = vmatprep.mubr.bf16.mxu0 0
        %3545 = vmatmul.mubr.bf16.gmra.mxu0 %v3136
        %v3546 = vpop.f32.mrf.mxu0
        %v3547 = vadd.f32 0.0, %v3546
        %v3548 = vpop.f32.mrf.mxu0
        %v3549 = vadd.f32 0.0, %v3548
        %v3550 = vpop.f32.mrf.mxu0
        %v3551 = vadd.f32 0.0, %v3550
        %v3552 = vpop.f32.mrf.mxu0
        %v3553 = vadd.f32 0.0, %v3552
        %3554 = vmatprep.mubr.bf16.mxu0 0
        %3555 = vmatmul.mubr.bf16.gmra.mxu0 %v3139
        %v3556 = vpop.f32.mrf.mxu0
        %v3557 = vadd.f32 0.0, %v3556
        %v3558 = vpop.f32.mrf.mxu0
        %v3559 = vadd.f32 0.0, %v3558
        %v3560 = vpop.f32.mrf.mxu0
        %v3561 = vadd.f32 0.0, %v3560
        %v3562 = vpop.f32.mrf.mxu0
        %v3563 = vadd.f32 0.0, %v3562
        %3564 = vmatprep.mubr.bf16.mxu0 0
        %3565 = vmatmul.mubr.bf16.gmra.mxu0 %v3142
        %v3566 = vpop.f32.mrf.mxu0
        %v3567 = vadd.f32 0.0, %v3566
        %v3568 = vpop.f32.mrf.mxu0
        %v3569 = vadd.f32 0.0, %v3568
        %v3570 = vpop.f32.mrf.mxu0
        %v3571 = vadd.f32 0.0, %v3570
        %v3572 = vpop.f32.mrf.mxu0
        %v3573 = vadd.f32 0.0, %v3572
        %3574 = vmatprep.mubr.bf16.mxu0 0
        %3575 = vmatmul.mubr.bf16.gmra.mxu0 %v3145
        %v3576 = vpop.f32.mrf.mxu0
        %v3577 = vadd.f32 0.0, %v3576
        %v3578 = vpop.f32.mrf.mxu0
        %v3579 = vadd.f32 0.0, %v3578
        %v3580 = vpop.f32.mrf.mxu0
        %v3581 = vadd.f32 0.0, %v3580
        %v3582 = vpop.f32.mrf.mxu0
        %v3583 = vadd.f32 0.0, %v3582
        %3584 = vdwg.mxu0
        %3585 = vmatprep.subr.bf16.mxu0 0
        %3586 = vmatpush1.bf16.msra.mxu0 0
        %3587 = vmatprep.subr.bf16.mxu0 0
        %3588 = vmatpush1.bf16.msra.mxu0 0
        %3589 = vmatprep.subr.bf16.mxu0 0
        %3590 = vmatpush1.bf16.msra.mxu0 0
        %3591 = vmatprep.subr.bf16.mxu0 0
        %3592 = vmatpush1.bf16.msra.mxu0 0
        %3593 = vmatprep.subr.bf16.mxu0 0
        %3594 = vmatpush1.bf16.msra.mxu0 0
        %3595 = vmatprep.subr.bf16.mxu0 0
        %3596 = vmatpush1.bf16.msra.mxu0 0
        %3597 = vmatprep.subr.bf16.mxu0 0
        %3598 = vmatpush1.bf16.msra.mxu0 0
        %3599 = vmatprep.subr.bf16.mxu0 %v3111
        %3600 = vmatpush1.bf16.msra.mxu0 %v3110
        %3601 = vmatprep.subr.bf16.mxu0 0
        %3602 = vmatpush2.bf16.msra.mxu0 0
        %3603 = vmatprep.subr.bf16.mxu0 0
        %3604 = vmatpush2.bf16.msra.mxu0 0
        %3605 = vmatprep.subr.bf16.mxu0 0
        %3606 = vmatpush2.bf16.msra.mxu0 0
        %3607 = vmatprep.subr.bf16.mxu0 0
        %3608 = vmatpush2.bf16.msra.mxu0 0
        %3609 = vmatprep.subr.bf16.mxu0 0
        %3610 = vmatpush2.bf16.msra.mxu0 0
        %3611 = vmatprep.subr.bf16.mxu0 0
        %3612 = vmatpush2.bf16.msra.mxu0 0
        %3613 = vmatprep.subr.bf16.mxu0 0
        %3614 = vmatpush2.bf16.msra.mxu0 0
        %3615 = vmatprep.subr.bf16.mxu0 0
        %3616 = vmatpush2.bf16.msra.mxu0 0
        %3617 = vmatprep.mubr.bf16.mxu0 0
        %3618 = vmatmul.mubr.bf16.gmra.mxu0 %v3136
        %v3619 = vpop.f32.mrf.mxu0
        %v3620 = vadd.f32 0.0, %v3619
        %v3621 = vpop.f32.mrf.mxu0
        %v3622 = vadd.f32 0.0, %v3621
        %v3623 = vpop.f32.mrf.mxu0
        %v3624 = vadd.f32 0.0, %v3623
        %v3625 = vpop.f32.mrf.mxu0
        %v3626 = vadd.f32 0.0, %v3625
        %3627 = vmatprep.mubr.bf16.mxu0 0
        %3628 = vmatmul.mubr.bf16.gmra.mxu0 %v3139
        %v3629 = vpop.f32.mrf.mxu0
        %v3630 = vadd.f32 0.0, %v3629
        %v3631 = vpop.f32.mrf.mxu0
        %v3632 = vadd.f32 0.0, %v3631
        %v3633 = vpop.f32.mrf.mxu0
        %v3634 = vadd.f32 0.0, %v3633
        %v3635 = vpop.f32.mrf.mxu0
        %v3636 = vadd.f32 0.0, %v3635
        %3637 = vmatprep.mubr.bf16.mxu0 0
        %3638 = vmatmul.mubr.bf16.gmra.mxu0 %v3142
        %v3639 = vpop.f32.mrf.mxu0
        %v3640 = vadd.f32 0.0, %v3639
        %v3641 = vpop.f32.mrf.mxu0
        %v3642 = vadd.f32 0.0, %v3641
        %v3643 = vpop.f32.mrf.mxu0
        %v3644 = vadd.f32 0.0, %v3643
        %v3645 = vpop.f32.mrf.mxu0
        %v3646 = vadd.f32 0.0, %v3645
        %3647 = vmatprep.mubr.bf16.mxu0 0
        %3648 = vmatmul.mubr.bf16.gmra.mxu0 %v3145
        %v3649 = vpop.f32.mrf.mxu0
        %v3650 = vadd.f32 0.0, %v3649
        %v3651 = vpop.f32.mrf.mxu0
        %v3652 = vadd.f32 0.0, %v3651
        %v3653 = vpop.f32.mrf.mxu0
        %v3654 = vadd.f32 0.0, %v3653
        %v3655 = vpop.f32.mrf.mxu0
        %v3656 = vadd.f32 0.0, %v3655
        %3657 = vdwg.mxu0
        %3658 = vmatprep.subr.bf16.mxu0 0
        %3659 = vmatpush1.bf16.msra.mxu0 0
        %3660 = vmatprep.subr.bf16.mxu0 0
        %3661 = vmatpush1.bf16.msra.mxu0 0
        %3662 = vmatprep.subr.bf16.mxu0 0
        %3663 = vmatpush1.bf16.msra.mxu0 0
        %3664 = vmatprep.subr.bf16.mxu0 0
        %3665 = vmatpush1.bf16.msra.mxu0 0
        %3666 = vmatprep.subr.bf16.mxu0 0
        %3667 = vmatpush1.bf16.msra.mxu0 0
        %3668 = vmatprep.subr.bf16.mxu0 0
        %3669 = vmatpush1.bf16.msra.mxu0 0
        %3670 = vmatprep.subr.bf16.mxu0 0
        %3671 = vmatpush1.bf16.msra.mxu0 0
        %3672 = vmatprep.subr.bf16.mxu0 %v3113
        %3673 = vmatpush1.bf16.msra.mxu0 %v3112
        %3674 = vmatprep.subr.bf16.mxu0 0
        %3675 = vmatpush2.bf16.msra.mxu0 0
        %3676 = vmatprep.subr.bf16.mxu0 0
        %3677 = vmatpush2.bf16.msra.mxu0 0
        %3678 = vmatprep.subr.bf16.mxu0 0
        %3679 = vmatpush2.bf16.msra.mxu0 0
        %3680 = vmatprep.subr.bf16.mxu0 0
        %3681 = vmatpush2.bf16.msra.mxu0 0
        %3682 = vmatprep.subr.bf16.mxu0 0
        %3683 = vmatpush2.bf16.msra.mxu0 0
        %3684 = vmatprep.subr.bf16.mxu0 0
        %3685 = vmatpush2.bf16.msra.mxu0 0
        %3686 = vmatprep.subr.bf16.mxu0 0
        %3687 = vmatpush2.bf16.msra.mxu0 0
        %3688 = vmatprep.subr.bf16.mxu0 0
        %3689 = vmatpush2.bf16.msra.mxu0 0
        %3690 = vmatprep.mubr.bf16.mxu0 0
        %3691 = vmatmul.mubr.bf16.gmra.mxu0 %v3136
        %v3692 = vpop.f32.mrf.mxu0
        %v3693 = vadd.f32 0.0, %v3692
        %v3694 = vpop.f32.mrf.mxu0
        %v3695 = vadd.f32 0.0, %v3694
        %v3696 = vpop.f32.mrf.mxu0
        %v3697 = vadd.f32 0.0, %v3696
        %v3698 = vpop.f32.mrf.mxu0
        %v3699 = vadd.f32 0.0, %v3698
        %3700 = vmatprep.mubr.bf16.mxu0 0
        %3701 = vmatmul.mubr.bf16.gmra.mxu0 %v3139
        %v3702 = vpop.f32.mrf.mxu0
        %v3703 = vadd.f32 0.0, %v3702
        %v3704 = vpop.f32.mrf.mxu0
        %v3705 = vadd.f32 0.0, %v3704
        %v3706 = vpop.f32.mrf.mxu0
        %v3707 = vadd.f32 0.0, %v3706
        %v3708 = vpop.f32.mrf.mxu0
        %v3709 = vadd.f32 0.0, %v3708
        %3710 = vmatprep.mubr.bf16.mxu0 0
        %3711 = vmatmul.mubr.bf16.gmra.mxu0 %v3142
        %v3712 = vpop.f32.mrf.mxu0
        %v3713 = vadd.f32 0.0, %v3712
        %v3714 = vpop.f32.mrf.mxu0
        %v3715 = vadd.f32 0.0, %v3714
        %v3716 = vpop.f32.mrf.mxu0
        %v3717 = vadd.f32 0.0, %v3716
        %v3718 = vpop.f32.mrf.mxu0
        %v3719 = vadd.f32 0.0, %v3718
        %3720 = vmatprep.mubr.bf16.mxu0 0
        %3721 = vmatmul.mubr.bf16.gmra.mxu0 %v3145
        %v3722 = vpop.f32.mrf.mxu0
        %v3723 = vadd.f32 0.0, %v3722
        %v3724 = vpop.f32.mrf.mxu0
        %v3725 = vadd.f32 0.0, %v3724
        %v3726 = vpop.f32.mrf.mxu0
        %v3727 = vadd.f32 0.0, %v3726
        %v3728 = vpop.f32.mrf.mxu0
        %v3729 = vadd.f32 0.0, %v3728
        %3730 = vdwg.mxu0
        %v3731 = vadd.f32 %v995, %v3182
        %v3732 = vadd.f32 %v997, %v3184
        %v3733 = vadd.f32 %v1108, %v3255
        %v3734 = vadd.f32 %v1110, %v3257
        %v3735 = vadd.f32 %v1221, %v3328
        %v3736 = vadd.f32 %v1223, %v3330
        %v3737 = vadd.f32 %v1334, %v3401
        %v3738 = vadd.f32 %v1336, %v3403
        %v3739 = vadd.f32 %v1447, %v3474
        %v3740 = vadd.f32 %v1449, %v3476
        %v3741 = vadd.f32 %v1560, %v3547
        %v3742 = vadd.f32 %v1562, %v3549
        %v3743 = vadd.f32 %v1673, %v3620
        %v3744 = vadd.f32 %v1675, %v3622
        %v3745 = vadd.f32 %v1786, %v3693
        %v3746 = vadd.f32 %v1788, %v3695
        %v3747 = vadd.f32 %v999, %v3186
        %v3748 = vadd.f32 %v1001, %v3188
        %v3749 = vadd.f32 %v1112, %v3259
        %v3750 = vadd.f32 %v1114, %v3261
        %v3751 = vadd.f32 %v1225, %v3332
        %v3752 = vadd.f32 %v1227, %v3334
        %v3753 = vadd.f32 %v1338, %v3405
        %v3754 = vadd.f32 %v1340, %v3407
        %v3755 = vadd.f32 %v1451, %v3478
        %v3756 = vadd.f32 %v1453, %v3480
        %v3757 = vadd.f32 %v1564, %v3551
        %v3758 = vadd.f32 %v1566, %v3553
        %v3759 = vadd.f32 %v1677, %v3624
        %v3760 = vadd.f32 %v1679, %v3626
        %v3761 = vadd.f32 %v1790, %v3697
        %v3762 = vadd.f32 %v1792, %v3699
        %v3763 = vadd.f32 %v1005, %v3192
        %v3764 = vadd.f32 %v1007, %v3194
        %v3765 = vadd.f32 %v1118, %v3265
        %v3766 = vadd.f32 %v1120, %v3267
        %v3767 = vadd.f32 %v1231, %v3338
        %v3768 = vadd.f32 %v1233, %v3340
        %v3769 = vadd.f32 %v1344, %v3411
        %v3770 = vadd.f32 %v1346, %v3413
        %v3771 = vadd.f32 %v1457, %v3484
        %v3772 = vadd.f32 %v1459, %v3486
        %v3773 = vadd.f32 %v1570, %v3557
        %v3774 = vadd.f32 %v1572, %v3559
        %v3775 = vadd.f32 %v1683, %v3630
        %v3776 = vadd.f32 %v1685, %v3632
        %v3777 = vadd.f32 %v1796, %v3703
        %v3778 = vadd.f32 %v1798, %v3705
        %v3779 = vadd.f32 %v1009, %v3196
        %v3780 = vadd.f32 %v1011, %v3198
        %v3781 = vadd.f32 %v1122, %v3269
        %v3782 = vadd.f32 %v1124, %v3271
        %v3783 = vadd.f32 %v1235, %v3342
        %v3784 = vadd.f32 %v1237, %v3344
        %v3785 = vadd.f32 %v1348, %v3415
        %v3786 = vadd.f32 %v1350, %v3417
        %v3787 = vadd.f32 %v1461, %v3488
        %v3788 = vadd.f32 %v1463, %v3490
        %v3789 = vadd.f32 %v1574, %v3561
        %v3790 = vadd.f32 %v1576, %v3563
        %v3791 = vadd.f32 %v1687, %v3634
        %v3792 = vadd.f32 %v1689, %v3636
        %v3793 = vadd.f32 %v1800, %v3707
        %v3794 = vadd.f32 %v1802, %v3709
        %v3795 = vadd.f32 %v1015, %v3202
        %v3796 = vadd.f32 %v1017, %v3204
        %v3797 = vadd.f32 %v1128, %v3275
        %v3798 = vadd.f32 %v1130, %v3277
        %v3799 = vadd.f32 %v1241, %v3348
        %v3800 = vadd.f32 %v1243, %v3350
        %v3801 = vadd.f32 %v1354, %v3421
        %v3802 = vadd.f32 %v1356, %v3423
        %v3803 = vadd.f32 %v1467, %v3494
        %v3804 = vadd.f32 %v1469, %v3496
        %v3805 = vadd.f32 %v1580, %v3567
        %v3806 = vadd.f32 %v1582, %v3569
        %v3807 = vadd.f32 %v1693, %v3640
        %v3808 = vadd.f32 %v1695, %v3642
        %v3809 = vadd.f32 %v1806, %v3713
        %v3810 = vadd.f32 %v1808, %v3715
        %v3811 = vadd.f32 %v1019, %v3206
        %v3812 = vadd.f32 %v1021, %v3208
        %v3813 = vadd.f32 %v1132, %v3279
        %v3814 = vadd.f32 %v1134, %v3281
        %v3815 = vadd.f32 %v1245, %v3352
        %v3816 = vadd.f32 %v1247, %v3354
        %v3817 = vadd.f32 %v1358, %v3425
        %v3818 = vadd.f32 %v1360, %v3427
        %v3819 = vadd.f32 %v1471, %v3498
        %v3820 = vadd.f32 %v1473, %v3500
        %v3821 = vadd.f32 %v1584, %v3571
        %v3822 = vadd.f32 %v1586, %v3573
        %v3823 = vadd.f32 %v1697, %v3644
        %v3824 = vadd.f32 %v1699, %v3646
        %v3825 = vadd.f32 %v1810, %v3717
        %v3826 = vadd.f32 %v1812, %v3719
        %v3827 = vadd.f32 %v1025, %v3212
        %v3828 = vadd.f32 %v1027, %v3214
        %v3829 = vadd.f32 %v1138, %v3285
        %v3830 = vadd.f32 %v1140, %v3287
        %v3831 = vadd.f32 %v1251, %v3358
        %v3832 = vadd.f32 %v1253, %v3360
        %v3833 = vadd.f32 %v1364, %v3431
        %v3834 = vadd.f32 %v1366, %v3433
        %v3835 = vadd.f32 %v1477, %v3504
        %v3836 = vadd.f32 %v1479, %v3506
        %v3837 = vadd.f32 %v1590, %v3577
        %v3838 = vadd.f32 %v1592, %v3579
        %v3839 = vadd.f32 %v1703, %v3650
        %v3840 = vadd.f32 %v1705, %v3652
        %v3841 = vadd.f32 %v1816, %v3723
        %v3842 = vadd.f32 %v1818, %v3725
        %v3843 = vadd.f32 %v1029, %v3216
        %v3844 = vadd.f32 %v1031, %v3218
        %v3845 = vadd.f32 %v1142, %v3289
        %v3846 = vadd.f32 %v1144, %v3291
        %v3847 = vadd.f32 %v1255, %v3362
        %v3848 = vadd.f32 %v1257, %v3364
        %v3849 = vadd.f32 %v1368, %v3435
        %v3850 = vadd.f32 %v1370, %v3437
        %v3851 = vadd.f32 %v1481, %v3508
        %v3852 = vadd.f32 %v1483, %v3510
        %v3853 = vadd.f32 %v1594, %v3581
        %v3854 = vadd.f32 %v1596, %v3583
        %v3855 = vadd.f32 %v1707, %v3654
        %v3856 = vadd.f32 %v1709, %v3656
        %v3857 = vadd.f32 %v1820, %v3727
        %v3858 = vadd.f32 %v1822, %v3729
        %v3859 = vpack.c.bf16 %v3747, %v3731
        %v3860 = vpack.c.bf16 %v3748, %v3732
        %v3861 = vpack.c.bf16 %v3749, %v3733
        %v3862 = vpack.c.bf16 %v3750, %v3734
        %v3863 = vpack.c.bf16 %v3751, %v3735
        %v3864 = vpack.c.bf16 %v3752, %v3736
        %v3865 = vpack.c.bf16 %v3753, %v3737
        %v3866 = vpack.c.bf16 %v3754, %v3738
        %v3867 = vpack.c.bf16 %v3755, %v3739
        %v3868 = vpack.c.bf16 %v3756, %v3740
        %v3869 = vpack.c.bf16 %v3757, %v3741
        %v3870 = vpack.c.bf16 %v3758, %v3742
        %v3871 = vpack.c.bf16 %v3759, %v3743
        %v3872 = vpack.c.bf16 %v3760, %v3744
        %v3873 = vpack.c.bf16 %v3761, %v3745
        %v3874 = vpack.c.bf16 %v3762, %v3746
        %v3875 = vpack.c.bf16 %v3779, %v3763
        %v3876 = vpack.c.bf16 %v3780, %v3764
        %v3877 = vpack.c.bf16 %v3781, %v3765
        %v3878 = vpack.c.bf16 %v3782, %v3766
        %v3879 = vpack.c.bf16 %v3783, %v3767
        %v3880 = vpack.c.bf16 %v3784, %v3768
        %v3881 = vpack.c.bf16 %v3785, %v3769
        %v3882 = vpack.c.bf16 %v3786, %v3770
        %v3883 = vpack.c.bf16 %v3787, %v3771
        %v3884 = vpack.c.bf16 %v3788, %v3772
        %v3885 = vpack.c.bf16 %v3789, %v3773
        %v3886 = vpack.c.bf16 %v3790, %v3774
        %v3887 = vpack.c.bf16 %v3791, %v3775
        %v3888 = vpack.c.bf16 %v3792, %v3776
        %v3889 = vpack.c.bf16 %v3793, %v3777
        %v3890 = vpack.c.bf16 %v3794, %v3778
        %v3891 = vpack.c.bf16 %v3811, %v3795
        %v3892 = vpack.c.bf16 %v3812, %v3796
        %v3893 = vpack.c.bf16 %v3813, %v3797
        %v3894 = vpack.c.bf16 %v3814, %v3798
        %v3895 = vpack.c.bf16 %v3815, %v3799
        %v3896 = vpack.c.bf16 %v3816, %v3800
        %v3897 = vpack.c.bf16 %v3817, %v3801
        %v3898 = vpack.c.bf16 %v3818, %v3802
        %v3899 = vpack.c.bf16 %v3819, %v3803
        %v3900 = vpack.c.bf16 %v3820, %v3804
        %v3901 = vpack.c.bf16 %v3821, %v3805
        %v3902 = vpack.c.bf16 %v3822, %v3806
        %v3903 = vpack.c.bf16 %v3823, %v3807
        %v3904 = vpack.c.bf16 %v3824, %v3808
        %v3905 = vpack.c.bf16 %v3825, %v3809
        %v3906 = vpack.c.bf16 %v3826, %v3810
        %v3907 = vpack.c.bf16 %v3843, %v3827
        %v3908 = vpack.c.bf16 %v3844, %v3828
        %v3909 = vpack.c.bf16 %v3845, %v3829
        %v3910 = vpack.c.bf16 %v3846, %v3830
        %v3911 = vpack.c.bf16 %v3847, %v3831
        %v3912 = vpack.c.bf16 %v3848, %v3832
        %v3913 = vpack.c.bf16 %v3849, %v3833
        %v3914 = vpack.c.bf16 %v3850, %v3834
        %v3915 = vpack.c.bf16 %v3851, %v3835
        %v3916 = vpack.c.bf16 %v3852, %v3836
        %v3917 = vpack.c.bf16 %v3853, %v3837
        %v3918 = vpack.c.bf16 %v3854, %v3838
        %v3919 = vpack.c.bf16 %v3855, %v3839
        %v3920 = vpack.c.bf16 %v3856, %v3840
        %v3921 = vpack.c.bf16 %v3857, %v3841
        %v3922 = vpack.c.bf16 %v3858, %v3842
        %v3923 = vmax.bf16 %v3859, 0
        %v3924 = vmax.bf16 %v3860, 0
        %v3925 = vmax.bf16 %v3861, 0
        %v3926 = vmax.bf16 %v3862, 0
        %v3927 = vmax.bf16 %v3863, 0
        %v3928 = vmax.bf16 %v3864, 0
        %v3929 = vmax.bf16 %v3865, 0
        %v3930 = vmax.bf16 %v3866, 0
        %v3931 = vmax.bf16 %v3867, 0
        %v3932 = vmax.bf16 %v3868, 0
        %v3933 = vmax.bf16 %v3869, 0
        %v3934 = vmax.bf16 %v3870, 0
        %v3935 = vmax.bf16 %v3871, 0
        %v3936 = vmax.bf16 %v3872, 0
        %v3937 = vmax.bf16 %v3873, 0
        %v3938 = vmax.bf16 %v3874, 0
        %v3939 = vmax.bf16 %v3875, 0
        %v3940 = vmax.bf16 %v3876, 0
        %v3941 = vmax.bf16 %v3877, 0
        %v3942 = vmax.bf16 %v3878, 0
        %v3943 = vmax.bf16 %v3879, 0
        %v3944 = vmax.bf16 %v3880, 0
        %v3945 = vmax.bf16 %v3881, 0
        %v3946 = vmax.bf16 %v3882, 0
        %v3947 = vmax.bf16 %v3883, 0
        %v3948 = vmax.bf16 %v3884, 0
        %v3949 = vmax.bf16 %v3885, 0
        %v3950 = vmax.bf16 %v3886, 0
        %v3951 = vmax.bf16 %v3887, 0
        %v3952 = vmax.bf16 %v3888, 0
        %v3953 = vmax.bf16 %v3889, 0
        %v3954 = vmax.bf16 %v3890, 0
        %v3955 = vmax.bf16 %v3891, 0
        %v3956 = vmax.bf16 %v3892, 0
        %v3957 = vmax.bf16 %v3893, 0
        %v3958 = vmax.bf16 %v3894, 0
        %v3959 = vmax.bf16 %v3895, 0
        %v3960 = vmax.bf16 %v3896, 0
        %v3961 = vmax.bf16 %v3897, 0
        %v3962 = vmax.bf16 %v3898, 0
        %v3963 = vmax.bf16 %v3899, 0
        %v3964 = vmax.bf16 %v3900, 0
        %v3965 = vmax.bf16 %v3901, 0
        %v3966 = vmax.bf16 %v3902, 0
        %v3967 = vmax.bf16 %v3903, 0
        %v3968 = vmax.bf16 %v3904, 0
        %v3969 = vmax.bf16 %v3905, 0
        %v3970 = vmax.bf16 %v3906, 0
        %v3971 = vmax.bf16 %v3907, 0
        %v3972 = vmax.bf16 %v3908, 0
        %v3973 = vmax.bf16 %v3909, 0
        %v3974 = vmax.bf16 %v3910, 0
        %v3975 = vmax.bf16 %v3911, 0
        %v3976 = vmax.bf16 %v3912, 0
        %v3977 = vmax.bf16 %v3913, 0
        %v3978 = vmax.bf16 %v3914, 0
        %v3979 = vmax.bf16 %v3915, 0
        %v3980 = vmax.bf16 %v3916, 0
        %v3981 = vmax.bf16 %v3917, 0
        %v3982 = vmax.bf16 %v3918, 0
        %v3983 = vmax.bf16 %v3919, 0
        %v3984 = vmax.bf16 %v3920, 0
        %v3985 = vmax.bf16 %v3921, 0
        %v3986 = vmax.bf16 %v3922, 0
        %v3987 = vld [vmem:[%s5] sm:$0xf]
        %v3988 = vld [vmem:[%s5 + $0x4] sm:$0xf]
        %v3989 = vld [vmem:[%s5 + $0x8] sm:$0xf]
        %v3990 = vld [vmem:[%s5 + $0xc] sm:$0xf]
        %v3991 = vld [vmem:[%s5 + $0x10] sm:$0xf]
        %v3992 = vld [vmem:[%s5 + $0x14] sm:$0xf]
        %v3993 = vld [vmem:[%s5 + $0x18] sm:$0xf]
        %v3994 = vld [vmem:[%s5 + $0x1c] sm:$0xf]
        %v4003 = vunpack.c.l.b16 %v3987
        %v4004 = vunpack.c.l.b16 %v3988
        %v4005 = vunpack.c.l.b16 %v3989
        %v4006 = vunpack.c.l.b16 %v3990
        %v4007 = vunpack.c.l.b16 %v3991
        %v4008 = vunpack.c.l.b16 %v3992
        %v4009 = vunpack.c.l.b16 %v3993
        %v4010 = vunpack.c.l.b16 %v3994
        %v4011 = vpack.c.b16 %v4004, %v4003
        %v4012 = vpack.c.b16 %v4006, %v4005
        %v4013 = vpack.c.b16 %v4008, %v4007
        %v4014 = vpack.c.b16 %v4010, %v4009
        %v4016 = vsel %vm895, %v4011, 0
        %v4019 = vsel %vm895, %v4012, 0
        %v4022 = vsel %vm895, %v4013, 0
        %v4025 = vsel %vm895, %v4014, 0
        %4027 = vmatprep.subr.bf16.mxu0 0
        %4028 = vmatpush1.bf16.msra.mxu0 0
        %4029 = vmatprep.subr.bf16.mxu0 0
        %4030 = vmatpush1.bf16.msra.mxu0 0
        %4031 = vmatprep.subr.bf16.mxu0 0
        %4032 = vmatpush1.bf16.msra.mxu0 0
        %4033 = vmatprep.subr.bf16.mxu0 0
        %4034 = vmatpush1.bf16.msra.mxu0 0
        %4035 = vmatprep.subr.bf16.mxu0 %v3972
        %4036 = vmatpush1.bf16.msra.mxu0 %v3971
        %4037 = vmatprep.subr.bf16.mxu0 %v3956
        %4038 = vmatpush1.bf16.msra.mxu0 %v3955
        %4039 = vmatprep.subr.bf16.mxu0 %v3940
        %4040 = vmatpush1.bf16.msra.mxu0 %v3939
        %4041 = vmatprep.subr.bf16.mxu0 %v3924
        %4042 = vmatpush1.bf16.msra.mxu0 %v3923
        %4043 = vmatprep.subr.bf16.mxu0 0
        %4044 = vmatpush2.bf16.msra.mxu0 0
        %4045 = vmatprep.subr.bf16.mxu0 0
        %4046 = vmatpush2.bf16.msra.mxu0 0
        %4047 = vmatprep.subr.bf16.mxu0 0
        %4048 = vmatpush2.bf16.msra.mxu0 0
        %4049 = vmatprep.subr.bf16.mxu0 0
        %4050 = vmatpush2.bf16.msra.mxu0 0
        %4051 = vmatprep.subr.bf16.mxu0 0
        %4052 = vmatpush2.bf16.msra.mxu0 0
        %4053 = vmatprep.subr.bf16.mxu0 0
        %4054 = vmatpush2.bf16.msra.mxu0 0
        %4055 = vmatprep.subr.bf16.mxu0 0
        %4056 = vmatpush2.bf16.msra.mxu0 0
        %4057 = vmatprep.subr.bf16.mxu0 0
        %4058 = vmatpush2.bf16.msra.mxu0 0
        %4059 = vmatprep.mubr.bf16.mxu0 0
        %4060 = vmatmul.mubr.bf16.gmra.mxu0 %v4016
        %v4061 = vpop.f32.mrf.mxu0
        %v4062 = vadd.f32 0.0, %v4061
        %v4063 = vpop.f32.mrf.mxu0
        %v4064 = vadd.f32 0.0, %v4063
        %v4065 = vpop.f32.mrf.mxu0
        %v4066 = vadd.f32 0.0, %v4065
        %v4067 = vpop.f32.mrf.mxu0
        %v4068 = vadd.f32 0.0, %v4067
        %4069 = vmatprep.mubr.bf16.mxu0 0
        %4070 = vmatmul.mubr.bf16.gmra.mxu0 %v4019
        %v4071 = vpop.f32.mrf.mxu0
        %v4072 = vadd.f32 0.0, %v4071
        %v4073 = vpop.f32.mrf.mxu0
        %v4074 = vadd.f32 0.0, %v4073
        %v4075 = vpop.f32.mrf.mxu0
        %v4076 = vadd.f32 0.0, %v4075
        %v4077 = vpop.f32.mrf.mxu0
        %v4078 = vadd.f32 0.0, %v4077
        %4079 = vmatprep.mubr.bf16.mxu0 0
        %4080 = vmatmul.mubr.bf16.gmra.mxu0 %v4022
        %v4081 = vpop.f32.mrf.mxu0
        %v4082 = vadd.f32 0.0, %v4081
        %v4083 = vpop.f32.mrf.mxu0
        %v4084 = vadd.f32 0.0, %v4083
        %v4085 = vpop.f32.mrf.mxu0
        %v4086 = vadd.f32 0.0, %v4085
        %v4087 = vpop.f32.mrf.mxu0
        %v4088 = vadd.f32 0.0, %v4087
        %4089 = vmatprep.mubr.bf16.mxu0 0
        %4090 = vmatmul.mubr.bf16.gmra.mxu0 %v4025
        %v4091 = vpop.f32.mrf.mxu0
        %v4092 = vadd.f32 0.0, %v4091
        %v4093 = vpop.f32.mrf.mxu0
        %v4094 = vadd.f32 0.0, %v4093
        %v4095 = vpop.f32.mrf.mxu0
        %v4096 = vadd.f32 0.0, %v4095
        %v4097 = vpop.f32.mrf.mxu0
        %v4098 = vadd.f32 0.0, %v4097
        %4099 = vdwg.mxu0
        %4100 = vmatprep.subr.bf16.mxu0 0
        %4101 = vmatpush1.bf16.msra.mxu0 0
        %4102 = vmatprep.subr.bf16.mxu0 0
        %4103 = vmatpush1.bf16.msra.mxu0 0
        %4104 = vmatprep.subr.bf16.mxu0 0
        %4105 = vmatpush1.bf16.msra.mxu0 0
        %4106 = vmatprep.subr.bf16.mxu0 0
        %4107 = vmatpush1.bf16.msra.mxu0 0
        %4108 = vmatprep.subr.bf16.mxu0 %v3974
        %4109 = vmatpush1.bf16.msra.mxu0 %v3973
        %4110 = vmatprep.subr.bf16.mxu0 %v3958
        %4111 = vmatpush1.bf16.msra.mxu0 %v3957
        %4112 = vmatprep.subr.bf16.mxu0 %v3942
        %4113 = vmatpush1.bf16.msra.mxu0 %v3941
        %4114 = vmatprep.subr.bf16.mxu0 %v3926
        %4115 = vmatpush1.bf16.msra.mxu0 %v3925
        %4116 = vmatprep.subr.bf16.mxu0 0
        %4117 = vmatpush2.bf16.msra.mxu0 0
        %4118 = vmatprep.subr.bf16.mxu0 0
        %4119 = vmatpush2.bf16.msra.mxu0 0
        %4120 = vmatprep.subr.bf16.mxu0 0
        %4121 = vmatpush2.bf16.msra.mxu0 0
        %4122 = vmatprep.subr.bf16.mxu0 0
        %4123 = vmatpush2.bf16.msra.mxu0 0
        %4124 = vmatprep.subr.bf16.mxu0 0
        %4125 = vmatpush2.bf16.msra.mxu0 0
        %4126 = vmatprep.subr.bf16.mxu0 0
        %4127 = vmatpush2.bf16.msra.mxu0 0
        %4128 = vmatprep.subr.bf16.mxu0 0
        %4129 = vmatpush2.bf16.msra.mxu0 0
        %4130 = vmatprep.subr.bf16.mxu0 0
        %4131 = vmatpush2.bf16.msra.mxu0 0
        %4132 = vmatprep.mubr.bf16.mxu0 0
        %4133 = vmatmul.mubr.bf16.gmra.mxu0 %v4016
        %v4134 = vpop.f32.mrf.mxu0
        %v4135 = vadd.f32 0.0, %v4134
        %v4136 = vpop.f32.mrf.mxu0
        %v4137 = vadd.f32 0.0, %v4136
        %v4138 = vpop.f32.mrf.mxu0
        %v4139 = vadd.f32 0.0, %v4138
        %v4140 = vpop.f32.mrf.mxu0
        %v4141 = vadd.f32 0.0, %v4140
        %4142 = vmatprep.mubr.bf16.mxu0 0
        %4143 = vmatmul.mubr.bf16.gmra.mxu0 %v4019
        %v4144 = vpop.f32.mrf.mxu0
        %v4145 = vadd.f32 0.0, %v4144
        %v4146 = vpop.f32.mrf.mxu0
        %v4147 = vadd.f32 0.0, %v4146
        %v4148 = vpop.f32.mrf.mxu0
        %v4149 = vadd.f32 0.0, %v4148
        %v4150 = vpop.f32.mrf.mxu0
        %v4151 = vadd.f32 0.0, %v4150
        %4152 = vmatprep.mubr.bf16.mxu0 0
        %4153 = vmatmul.mubr.bf16.gmra.mxu0 %v4022
        %v4154 = vpop.f32.mrf.mxu0
        %v4155 = vadd.f32 0.0, %v4154
        %v4156 = vpop.f32.mrf.mxu0
        %v4157 = vadd.f32 0.0, %v4156
        %v4158 = vpop.f32.mrf.mxu0
        %v4159 = vadd.f32 0.0, %v4158
        %v4160 = vpop.f32.mrf.mxu0
        %v4161 = vadd.f32 0.0, %v4160
        %4162 = vmatprep.mubr.bf16.mxu0 0
        %4163 = vmatmul.mubr.bf16.gmra.mxu0 %v4025
        %v4164 = vpop.f32.mrf.mxu0
        %v4165 = vadd.f32 0.0, %v4164
        %v4166 = vpop.f32.mrf.mxu0
        %v4167 = vadd.f32 0.0, %v4166
        %v4168 = vpop.f32.mrf.mxu0
        %v4169 = vadd.f32 0.0, %v4168
        %v4170 = vpop.f32.mrf.mxu0
        %v4171 = vadd.f32 0.0, %v4170
        %4172 = vdwg.mxu0
        %4173 = vmatprep.subr.bf16.mxu0 0
        %4174 = vmatpush1.bf16.msra.mxu0 0
        %4175 = vmatprep.subr.bf16.mxu0 0
        %4176 = vmatpush1.bf16.msra.mxu0 0
        %4177 = vmatprep.subr.bf16.mxu0 0
        %4178 = vmatpush1.bf16.msra.mxu0 0
        %4179 = vmatprep.subr.bf16.mxu0 0
        %4180 = vmatpush1.bf16.msra.mxu0 0
        %4181 = vmatprep.subr.bf16.mxu0 %v3976
        %4182 = vmatpush1.bf16.msra.mxu0 %v3975
        %4183 = vmatprep.subr.bf16.mxu0 %v3960
        %4184 = vmatpush1.bf16.msra.mxu0 %v3959
        %4185 = vmatprep.subr.bf16.mxu0 %v3944
        %4186 = vmatpush1.bf16.msra.mxu0 %v3943
        %4187 = vmatprep.subr.bf16.mxu0 %v3928
        %4188 = vmatpush1.bf16.msra.mxu0 %v3927
        %4189 = vmatprep.subr.bf16.mxu0 0
        %4190 = vmatpush2.bf16.msra.mxu0 0
        %4191 = vmatprep.subr.bf16.mxu0 0
        %4192 = vmatpush2.bf16.msra.mxu0 0
        %4193 = vmatprep.subr.bf16.mxu0 0
        %4194 = vmatpush2.bf16.msra.mxu0 0
        %4195 = vmatprep.subr.bf16.mxu0 0
        %4196 = vmatpush2.bf16.msra.mxu0 0
        %4197 = vmatprep.subr.bf16.mxu0 0
        %4198 = vmatpush2.bf16.msra.mxu0 0
        %4199 = vmatprep.subr.bf16.mxu0 0
        %4200 = vmatpush2.bf16.msra.mxu0 0
        %4201 = vmatprep.subr.bf16.mxu0 0
        %4202 = vmatpush2.bf16.msra.mxu0 0
        %4203 = vmatprep.subr.bf16.mxu0 0
        %4204 = vmatpush2.bf16.msra.mxu0 0
        %4205 = vmatprep.mubr.bf16.mxu0 0
        %4206 = vmatmul.mubr.bf16.gmra.mxu0 %v4016
        %v4207 = vpop.f32.mrf.mxu0
        %v4208 = vadd.f32 0.0, %v4207
        %v4209 = vpop.f32.mrf.mxu0
        %v4210 = vadd.f32 0.0, %v4209
        %v4211 = vpop.f32.mrf.mxu0
        %v4212 = vadd.f32 0.0, %v4211
        %v4213 = vpop.f32.mrf.mxu0
        %v4214 = vadd.f32 0.0, %v4213
        %4215 = vmatprep.mubr.bf16.mxu0 0
        %4216 = vmatmul.mubr.bf16.gmra.mxu0 %v4019
        %v4217 = vpop.f32.mrf.mxu0
        %v4218 = vadd.f32 0.0, %v4217
        %v4219 = vpop.f32.mrf.mxu0
        %v4220 = vadd.f32 0.0, %v4219
        %v4221 = vpop.f32.mrf.mxu0
        %v4222 = vadd.f32 0.0, %v4221
        %v4223 = vpop.f32.mrf.mxu0
        %v4224 = vadd.f32 0.0, %v4223
        %4225 = vmatprep.mubr.bf16.mxu0 0
        %4226 = vmatmul.mubr.bf16.gmra.mxu0 %v4022
        %v4227 = vpop.f32.mrf.mxu0
        %v4228 = vadd.f32 0.0, %v4227
        %v4229 = vpop.f32.mrf.mxu0
        %v4230 = vadd.f32 0.0, %v4229
        %v4231 = vpop.f32.mrf.mxu0
        %v4232 = vadd.f32 0.0, %v4231
        %v4233 = vpop.f32.mrf.mxu0
        %v4234 = vadd.f32 0.0, %v4233
        %4235 = vmatprep.mubr.bf16.mxu0 0
        %4236 = vmatmul.mubr.bf16.gmra.mxu0 %v4025
        %v4237 = vpop.f32.mrf.mxu0
        %v4238 = vadd.f32 0.0, %v4237
        %v4239 = vpop.f32.mrf.mxu0
        %v4240 = vadd.f32 0.0, %v4239
        %v4241 = vpop.f32.mrf.mxu0
        %v4242 = vadd.f32 0.0, %v4241
        %v4243 = vpop.f32.mrf.mxu0
        %v4244 = vadd.f32 0.0, %v4243
        %4245 = vdwg.mxu0
        %4246 = vmatprep.subr.bf16.mxu0 0
        %4247 = vmatpush1.bf16.msra.mxu0 0
        %4248 = vmatprep.subr.bf16.mxu0 0
        %4249 = vmatpush1.bf16.msra.mxu0 0
        %4250 = vmatprep.subr.bf16.mxu0 0
        %4251 = vmatpush1.bf16.msra.mxu0 0
        %4252 = vmatprep.subr.bf16.mxu0 0
        %4253 = vmatpush1.bf16.msra.mxu0 0
        %4254 = vmatprep.subr.bf16.mxu0 %v3978
        %4255 = vmatpush1.bf16.msra.mxu0 %v3977
        %4256 = vmatprep.subr.bf16.mxu0 %v3962
        %4257 = vmatpush1.bf16.msra.mxu0 %v3961
        %4258 = vmatprep.subr.bf16.mxu0 %v3946
        %4259 = vmatpush1.bf16.msra.mxu0 %v3945
        %4260 = vmatprep.subr.bf16.mxu0 %v3930
        %4261 = vmatpush1.bf16.msra.mxu0 %v3929
        %4262 = vmatprep.subr.bf16.mxu0 0
        %4263 = vmatpush2.bf16.msra.mxu0 0
        %4264 = vmatprep.subr.bf16.mxu0 0
        %4265 = vmatpush2.bf16.msra.mxu0 0
        %4266 = vmatprep.subr.bf16.mxu0 0
        %4267 = vmatpush2.bf16.msra.mxu0 0
        %4268 = vmatprep.subr.bf16.mxu0 0
        %4269 = vmatpush2.bf16.msra.mxu0 0
        %4270 = vmatprep.subr.bf16.mxu0 0
        %4271 = vmatpush2.bf16.msra.mxu0 0
        %4272 = vmatprep.subr.bf16.mxu0 0
        %4273 = vmatpush2.bf16.msra.mxu0 0
        %4274 = vmatprep.subr.bf16.mxu0 0
        %4275 = vmatpush2.bf16.msra.mxu0 0
        %4276 = vmatprep.subr.bf16.mxu0 0
        %4277 = vmatpush2.bf16.msra.mxu0 0
        %4278 = vmatprep.mubr.bf16.mxu0 0
        %4279 = vmatmul.mubr.bf16.gmra.mxu0 %v4016
        %v4280 = vpop.f32.mrf.mxu0
        %v4281 = vadd.f32 0.0, %v4280
        %v4282 = vpop.f32.mrf.mxu0
        %v4283 = vadd.f32 0.0, %v4282
        %v4284 = vpop.f32.mrf.mxu0
        %v4285 = vadd.f32 0.0, %v4284
        %v4286 = vpop.f32.mrf.mxu0
        %v4287 = vadd.f32 0.0, %v4286
        %4288 = vmatprep.mubr.bf16.mxu0 0
        %4289 = vmatmul.mubr.bf16.gmra.mxu0 %v4019
        %v4290 = vpop.f32.mrf.mxu0
        %v4291 = vadd.f32 0.0, %v4290
        %v4292 = vpop.f32.mrf.mxu0
        %v4293 = vadd.f32 0.0, %v4292
        %v4294 = vpop.f32.mrf.mxu0
        %v4295 = vadd.f32 0.0, %v4294
        %v4296 = vpop.f32.mrf.mxu0
        %v4297 = vadd.f32 0.0, %v4296
        %4298 = vmatprep.mubr.bf16.mxu0 0
        %4299 = vmatmul.mubr.bf16.gmra.mxu0 %v4022
        %v4300 = vpop.f32.mrf.mxu0
        %v4301 = vadd.f32 0.0, %v4300
        %v4302 = vpop.f32.mrf.mxu0
        %v4303 = vadd.f32 0.0, %v4302
        %v4304 = vpop.f32.mrf.mxu0
        %v4305 = vadd.f32 0.0, %v4304
        %v4306 = vpop.f32.mrf.mxu0
        %v4307 = vadd.f32 0.0, %v4306
        %4308 = vmatprep.mubr.bf16.mxu0 0
        %4309 = vmatmul.mubr.bf16.gmra.mxu0 %v4025
        %v4310 = vpop.f32.mrf.mxu0
        %v4311 = vadd.f32 0.0, %v4310
        %v4312 = vpop.f32.mrf.mxu0
        %v4313 = vadd.f32 0.0, %v4312
        %v4314 = vpop.f32.mrf.mxu0
        %v4315 = vadd.f32 0.0, %v4314
        %v4316 = vpop.f32.mrf.mxu0
        %v4317 = vadd.f32 0.0, %v4316
        %4318 = vdwg.mxu0
        %4319 = vmatprep.subr.bf16.mxu0 0
        %4320 = vmatpush1.bf16.msra.mxu0 0
        %4321 = vmatprep.subr.bf16.mxu0 0
        %4322 = vmatpush1.bf16.msra.mxu0 0
        %4323 = vmatprep.subr.bf16.mxu0 0
        %4324 = vmatpush1.bf16.msra.mxu0 0
        %4325 = vmatprep.subr.bf16.mxu0 0
        %4326 = vmatpush1.bf16.msra.mxu0 0
        %4327 = vmatprep.subr.bf16.mxu0 %v3980
        %4328 = vmatpush1.bf16.msra.mxu0 %v3979
        %4329 = vmatprep.subr.bf16.mxu0 %v3964
        %4330 = vmatpush1.bf16.msra.mxu0 %v3963
        %4331 = vmatprep.subr.bf16.mxu0 %v3948
        %4332 = vmatpush1.bf16.msra.mxu0 %v3947
        %4333 = vmatprep.subr.bf16.mxu0 %v3932
        %4334 = vmatpush1.bf16.msra.mxu0 %v3931
        %4335 = vmatprep.subr.bf16.mxu0 0
        %4336 = vmatpush2.bf16.msra.mxu0 0
        %4337 = vmatprep.subr.bf16.mxu0 0
        %4338 = vmatpush2.bf16.msra.mxu0 0
        %4339 = vmatprep.subr.bf16.mxu0 0
        %4340 = vmatpush2.bf16.msra.mxu0 0
        %4341 = vmatprep.subr.bf16.mxu0 0
        %4342 = vmatpush2.bf16.msra.mxu0 0
        %4343 = vmatprep.subr.bf16.mxu0 0
        %4344 = vmatpush2.bf16.msra.mxu0 0
        %4345 = vmatprep.subr.bf16.mxu0 0
        %4346 = vmatpush2.bf16.msra.mxu0 0
        %4347 = vmatprep.subr.bf16.mxu0 0
        %4348 = vmatpush2.bf16.msra.mxu0 0
        %4349 = vmatprep.subr.bf16.mxu0 0
        %4350 = vmatpush2.bf16.msra.mxu0 0
        %4351 = vmatprep.mubr.bf16.mxu0 0
        %4352 = vmatmul.mubr.bf16.gmra.mxu0 %v4016
        %v4353 = vpop.f32.mrf.mxu0
        %v4354 = vadd.f32 0.0, %v4353
        %v4355 = vpop.f32.mrf.mxu0
        %v4356 = vadd.f32 0.0, %v4355
        %v4357 = vpop.f32.mrf.mxu0
        %v4358 = vadd.f32 0.0, %v4357
        %v4359 = vpop.f32.mrf.mxu0
        %v4360 = vadd.f32 0.0, %v4359
        %4361 = vmatprep.mubr.bf16.mxu0 0
        %4362 = vmatmul.mubr.bf16.gmra.mxu0 %v4019
        %v4363 = vpop.f32.mrf.mxu0
        %v4364 = vadd.f32 0.0, %v4363
        %v4365 = vpop.f32.mrf.mxu0
        %v4366 = vadd.f32 0.0, %v4365
        %v4367 = vpop.f32.mrf.mxu0
        %v4368 = vadd.f32 0.0, %v4367
        %v4369 = vpop.f32.mrf.mxu0
        %v4370 = vadd.f32 0.0, %v4369
        %4371 = vmatprep.mubr.bf16.mxu0 0
        %4372 = vmatmul.mubr.bf16.gmra.mxu0 %v4022
        %v4373 = vpop.f32.mrf.mxu0
        %v4374 = vadd.f32 0.0, %v4373
        %v4375 = vpop.f32.mrf.mxu0
        %v4376 = vadd.f32 0.0, %v4375
        %v4377 = vpop.f32.mrf.mxu0
        %v4378 = vadd.f32 0.0, %v4377
        %v4379 = vpop.f32.mrf.mxu0
        %v4380 = vadd.f32 0.0, %v4379
        %4381 = vmatprep.mubr.bf16.mxu0 0
        %4382 = vmatmul.mubr.bf16.gmra.mxu0 %v4025
        %v4383 = vpop.f32.mrf.mxu0
        %v4384 = vadd.f32 0.0, %v4383
        %v4385 = vpop.f32.mrf.mxu0
        %v4386 = vadd.f32 0.0, %v4385
        %v4387 = vpop.f32.mrf.mxu0
        %v4388 = vadd.f32 0.0, %v4387
        %v4389 = vpop.f32.mrf.mxu0
        %v4390 = vadd.f32 0.0, %v4389
        %4391 = vdwg.mxu0
        %4392 = vmatprep.subr.bf16.mxu0 0
        %4393 = vmatpush1.bf16.msra.mxu0 0
        %4394 = vmatprep.subr.bf16.mxu0 0
        %4395 = vmatpush1.bf16.msra.mxu0 0
        %4396 = vmatprep.subr.bf16.mxu0 0
        %4397 = vmatpush1.bf16.msra.mxu0 0
        %4398 = vmatprep.subr.bf16.mxu0 0
        %4399 = vmatpush1.bf16.msra.mxu0 0
        %4400 = vmatprep.subr.bf16.mxu0 %v3982
        %4401 = vmatpush1.bf16.msra.mxu0 %v3981
        %4402 = vmatprep.subr.bf16.mxu0 %v3966
        %4403 = vmatpush1.bf16.msra.mxu0 %v3965
        %4404 = vmatprep.subr.bf16.mxu0 %v3950
        %4405 = vmatpush1.bf16.msra.mxu0 %v3949
        %4406 = vmatprep.subr.bf16.mxu0 %v3934
        %4407 = vmatpush1.bf16.msra.mxu0 %v3933
        %4408 = vmatprep.subr.bf16.mxu0 0
        %4409 = vmatpush2.bf16.msra.mxu0 0
        %4410 = vmatprep.subr.bf16.mxu0 0
        %4411 = vmatpush2.bf16.msra.mxu0 0
        %4412 = vmatprep.subr.bf16.mxu0 0
        %4413 = vmatpush2.bf16.msra.mxu0 0
        %4414 = vmatprep.subr.bf16.mxu0 0
        %4415 = vmatpush2.bf16.msra.mxu0 0
        %4416 = vmatprep.subr.bf16.mxu0 0
        %4417 = vmatpush2.bf16.msra.mxu0 0
        %4418 = vmatprep.subr.bf16.mxu0 0
        %4419 = vmatpush2.bf16.msra.mxu0 0
        %4420 = vmatprep.subr.bf16.mxu0 0
        %4421 = vmatpush2.bf16.msra.mxu0 0
        %4422 = vmatprep.subr.bf16.mxu0 0
        %4423 = vmatpush2.bf16.msra.mxu0 0
        %4424 = vmatprep.mubr.bf16.mxu0 0
        %4425 = vmatmul.mubr.bf16.gmra.mxu0 %v4016
        %v4426 = vpop.f32.mrf.mxu0
        %v4427 = vadd.f32 0.0, %v4426
        %v4428 = vpop.f32.mrf.mxu0
        %v4429 = vadd.f32 0.0, %v4428
        %v4430 = vpop.f32.mrf.mxu0
        %v4431 = vadd.f32 0.0, %v4430
        %v4432 = vpop.f32.mrf.mxu0
        %v4433 = vadd.f32 0.0, %v4432
        %4434 = vmatprep.mubr.bf16.mxu0 0
        %4435 = vmatmul.mubr.bf16.gmra.mxu0 %v4019
        %v4436 = vpop.f32.mrf.mxu0
        %v4437 = vadd.f32 0.0, %v4436
        %v4438 = vpop.f32.mrf.mxu0
        %v4439 = vadd.f32 0.0, %v4438
        %v4440 = vpop.f32.mrf.mxu0
        %v4441 = vadd.f32 0.0, %v4440
        %v4442 = vpop.f32.mrf.mxu0
        %v4443 = vadd.f32 0.0, %v4442
        %4444 = vmatprep.mubr.bf16.mxu0 0
        %4445 = vmatmul.mubr.bf16.gmra.mxu0 %v4022
        %v4446 = vpop.f32.mrf.mxu0
        %v4447 = vadd.f32 0.0, %v4446
        %v4448 = vpop.f32.mrf.mxu0
        %v4449 = vadd.f32 0.0, %v4448
        %v4450 = vpop.f32.mrf.mxu0
        %v4451 = vadd.f32 0.0, %v4450
        %v4452 = vpop.f32.mrf.mxu0
        %v4453 = vadd.f32 0.0, %v4452
        %4454 = vmatprep.mubr.bf16.mxu0 0
        %4455 = vmatmul.mubr.bf16.gmra.mxu0 %v4025
        %v4456 = vpop.f32.mrf.mxu0
        %v4457 = vadd.f32 0.0, %v4456
        %v4458 = vpop.f32.mrf.mxu0
        %v4459 = vadd.f32 0.0, %v4458
        %v4460 = vpop.f32.mrf.mxu0
        %v4461 = vadd.f32 0.0, %v4460
        %v4462 = vpop.f32.mrf.mxu0
        %v4463 = vadd.f32 0.0, %v4462
        %4464 = vdwg.mxu0
        %4465 = vmatprep.subr.bf16.mxu0 0
        %4466 = vmatpush1.bf16.msra.mxu0 0
        %4467 = vmatprep.subr.bf16.mxu0 0
        %4468 = vmatpush1.bf16.msra.mxu0 0
        %4469 = vmatprep.subr.bf16.mxu0 0
        %4470 = vmatpush1.bf16.msra.mxu0 0
        %4471 = vmatprep.subr.bf16.mxu0 0
        %4472 = vmatpush1.bf16.msra.mxu0 0
        %4473 = vmatprep.subr.bf16.mxu0 %v3984
        %4474 = vmatpush1.bf16.msra.mxu0 %v3983
        %4475 = vmatprep.subr.bf16.mxu0 %v3968
        %4476 = vmatpush1.bf16.msra.mxu0 %v3967
        %4477 = vmatprep.subr.bf16.mxu0 %v3952
        %4478 = vmatpush1.bf16.msra.mxu0 %v3951
        %4479 = vmatprep.subr.bf16.mxu0 %v3936
        %4480 = vmatpush1.bf16.msra.mxu0 %v3935
        %4481 = vmatprep.subr.bf16.mxu0 0
        %4482 = vmatpush2.bf16.msra.mxu0 0
        %4483 = vmatprep.subr.bf16.mxu0 0
        %4484 = vmatpush2.bf16.msra.mxu0 0
        %4485 = vmatprep.subr.bf16.mxu0 0
        %4486 = vmatpush2.bf16.msra.mxu0 0
        %4487 = vmatprep.subr.bf16.mxu0 0
        %4488 = vmatpush2.bf16.msra.mxu0 0
        %4489 = vmatprep.subr.bf16.mxu0 0
        %4490 = vmatpush2.bf16.msra.mxu0 0
        %4491 = vmatprep.subr.bf16.mxu0 0
        %4492 = vmatpush2.bf16.msra.mxu0 0
        %4493 = vmatprep.subr.bf16.mxu0 0
        %4494 = vmatpush2.bf16.msra.mxu0 0
        %4495 = vmatprep.subr.bf16.mxu0 0
        %4496 = vmatpush2.bf16.msra.mxu0 0
        %4497 = vmatprep.mubr.bf16.mxu0 0
        %4498 = vmatmul.mubr.bf16.gmra.mxu0 %v4016
        %v4499 = vpop.f32.mrf.mxu0
        %v4500 = vadd.f32 0.0, %v4499
        %v4501 = vpop.f32.mrf.mxu0
        %v4502 = vadd.f32 0.0, %v4501
        %v4503 = vpop.f32.mrf.mxu0
        %v4504 = vadd.f32 0.0, %v4503
        %v4505 = vpop.f32.mrf.mxu0
        %v4506 = vadd.f32 0.0, %v4505
        %4507 = vmatprep.mubr.bf16.mxu0 0
        %4508 = vmatmul.mubr.bf16.gmra.mxu0 %v4019
        %v4509 = vpop.f32.mrf.mxu0
        %v4510 = vadd.f32 0.0, %v4509
        %v4511 = vpop.f32.mrf.mxu0
        %v4512 = vadd.f32 0.0, %v4511
        %v4513 = vpop.f32.mrf.mxu0
        %v4514 = vadd.f32 0.0, %v4513
        %v4515 = vpop.f32.mrf.mxu0
        %v4516 = vadd.f32 0.0, %v4515
        %4517 = vmatprep.mubr.bf16.mxu0 0
        %4518 = vmatmul.mubr.bf16.gmra.mxu0 %v4022
        %v4519 = vpop.f32.mrf.mxu0
        %v4520 = vadd.f32 0.0, %v4519
        %v4521 = vpop.f32.mrf.mxu0
        %v4522 = vadd.f32 0.0, %v4521
        %v4523 = vpop.f32.mrf.mxu0
        %v4524 = vadd.f32 0.0, %v4523
        %v4525 = vpop.f32.mrf.mxu0
        %v4526 = vadd.f32 0.0, %v4525
        %4527 = vmatprep.mubr.bf16.mxu0 0
        %4528 = vmatmul.mubr.bf16.gmra.mxu0 %v4025
        %v4529 = vpop.f32.mrf.mxu0
        %v4530 = vadd.f32 0.0, %v4529
        %v4531 = vpop.f32.mrf.mxu0
        %v4532 = vadd.f32 0.0, %v4531
        %v4533 = vpop.f32.mrf.mxu0
        %v4534 = vadd.f32 0.0, %v4533
        %v4535 = vpop.f32.mrf.mxu0
        %v4536 = vadd.f32 0.0, %v4535
        %4537 = vdwg.mxu0
        %4538 = vmatprep.subr.bf16.mxu0 0
        %4539 = vmatpush1.bf16.msra.mxu0 0
        %4540 = vmatprep.subr.bf16.mxu0 0
        %4541 = vmatpush1.bf16.msra.mxu0 0
        %4542 = vmatprep.subr.bf16.mxu0 0
        %4543 = vmatpush1.bf16.msra.mxu0 0
        %4544 = vmatprep.subr.bf16.mxu0 0
        %4545 = vmatpush1.bf16.msra.mxu0 0
        %4546 = vmatprep.subr.bf16.mxu0 %v3986
        %4547 = vmatpush1.bf16.msra.mxu0 %v3985
        %4548 = vmatprep.subr.bf16.mxu0 %v3970
        %4549 = vmatpush1.bf16.msra.mxu0 %v3969
        %4550 = vmatprep.subr.bf16.mxu0 %v3954
        %4551 = vmatpush1.bf16.msra.mxu0 %v3953
        %4552 = vmatprep.subr.bf16.mxu0 %v3938
        %4553 = vmatpush1.bf16.msra.mxu0 %v3937
        %4554 = vmatprep.subr.bf16.mxu0 0
        %4555 = vmatpush2.bf16.msra.mxu0 0
        %4556 = vmatprep.subr.bf16.mxu0 0
        %4557 = vmatpush2.bf16.msra.mxu0 0
        %4558 = vmatprep.subr.bf16.mxu0 0
        %4559 = vmatpush2.bf16.msra.mxu0 0
        %4560 = vmatprep.subr.bf16.mxu0 0
        %4561 = vmatpush2.bf16.msra.mxu0 0
        %4562 = vmatprep.subr.bf16.mxu0 0
        %4563 = vmatpush2.bf16.msra.mxu0 0
        %4564 = vmatprep.subr.bf16.mxu0 0
        %4565 = vmatpush2.bf16.msra.mxu0 0
        %4566 = vmatprep.subr.bf16.mxu0 0
        %4567 = vmatpush2.bf16.msra.mxu0 0
        %4568 = vmatprep.subr.bf16.mxu0 0
        %4569 = vmatpush2.bf16.msra.mxu0 0
        %4570 = vmatprep.mubr.bf16.mxu0 0
        %4571 = vmatmul.mubr.bf16.gmra.mxu0 %v4016
        %v4572 = vpop.f32.mrf.mxu0
        %v4573 = vadd.f32 0.0, %v4572
        %v4574 = vpop.f32.mrf.mxu0
        %v4575 = vadd.f32 0.0, %v4574
        %v4576 = vpop.f32.mrf.mxu0
        %v4577 = vadd.f32 0.0, %v4576
        %v4578 = vpop.f32.mrf.mxu0
        %v4579 = vadd.f32 0.0, %v4578
        %4580 = vmatprep.mubr.bf16.mxu0 0
        %4581 = vmatmul.mubr.bf16.gmra.mxu0 %v4019
        %v4582 = vpop.f32.mrf.mxu0
        %v4583 = vadd.f32 0.0, %v4582
        %v4584 = vpop.f32.mrf.mxu0
        %v4585 = vadd.f32 0.0, %v4584
        %v4586 = vpop.f32.mrf.mxu0
        %v4587 = vadd.f32 0.0, %v4586
        %v4588 = vpop.f32.mrf.mxu0
        %v4589 = vadd.f32 0.0, %v4588
        %4590 = vmatprep.mubr.bf16.mxu0 0
        %4591 = vmatmul.mubr.bf16.gmra.mxu0 %v4022
        %v4592 = vpop.f32.mrf.mxu0
        %v4593 = vadd.f32 0.0, %v4592
        %v4594 = vpop.f32.mrf.mxu0
        %v4595 = vadd.f32 0.0, %v4594
        %v4596 = vpop.f32.mrf.mxu0
        %v4597 = vadd.f32 0.0, %v4596
        %v4598 = vpop.f32.mrf.mxu0
        %v4599 = vadd.f32 0.0, %v4598
        %4600 = vmatprep.mubr.bf16.mxu0 0
        %4601 = vmatmul.mubr.bf16.gmra.mxu0 %v4025
        %v4602 = vpop.f32.mrf.mxu0
        %v4603 = vadd.f32 0.0, %v4602
        %v4604 = vpop.f32.mrf.mxu0
        %v4605 = vadd.f32 0.0, %v4604
        %v4606 = vpop.f32.mrf.mxu0
        %v4607 = vadd.f32 0.0, %v4606
        %v4608 = vpop.f32.mrf.mxu0
        %v4609 = vadd.f32 0.0, %v4608
        %4610 = vdwg.mxu0
        %v4611 = vpack.c.bf16 %v4066, %v4062
        %v4612 = vpack.c.bf16 %v4068, %v4064
        %v4613 = vpack.c.bf16 %v4139, %v4135
        %v4614 = vpack.c.bf16 %v4141, %v4137
        %v4615 = vpack.c.bf16 %v4212, %v4208
        %v4616 = vpack.c.bf16 %v4214, %v4210
        %v4617 = vpack.c.bf16 %v4285, %v4281
        %v4618 = vpack.c.bf16 %v4287, %v4283
        %v4619 = vpack.c.bf16 %v4358, %v4354
        %v4620 = vpack.c.bf16 %v4360, %v4356
        %v4621 = vpack.c.bf16 %v4431, %v4427
        %v4622 = vpack.c.bf16 %v4433, %v4429
        %v4623 = vpack.c.bf16 %v4504, %v4500
        %v4624 = vpack.c.bf16 %v4506, %v4502
        %v4625 = vpack.c.bf16 %v4577, %v4573
        %v4626 = vpack.c.bf16 %v4579, %v4575
        %v4627 = vpack.c.bf16 %v4076, %v4072
        %v4628 = vpack.c.bf16 %v4078, %v4074
        %v4629 = vpack.c.bf16 %v4149, %v4145
        %v4630 = vpack.c.bf16 %v4151, %v4147
        %v4631 = vpack.c.bf16 %v4222, %v4218
        %v4632 = vpack.c.bf16 %v4224, %v4220
        %v4633 = vpack.c.bf16 %v4295, %v4291
        %v4634 = vpack.c.bf16 %v4297, %v4293
        %v4635 = vpack.c.bf16 %v4368, %v4364
        %v4636 = vpack.c.bf16 %v4370, %v4366
        %v4637 = vpack.c.bf16 %v4441, %v4437
        %v4638 = vpack.c.bf16 %v4443, %v4439
        %v4639 = vpack.c.bf16 %v4514, %v4510
        %v4640 = vpack.c.bf16 %v4516, %v4512
        %v4641 = vpack.c.bf16 %v4587, %v4583
        %v4642 = vpack.c.bf16 %v4589, %v4585
        %v4643 = vpack.c.bf16 %v4086, %v4082
        %v4644 = vpack.c.bf16 %v4088, %v4084
        %v4645 = vpack.c.bf16 %v4159, %v4155
        %v4646 = vpack.c.bf16 %v4161, %v4157
        %v4647 = vpack.c.bf16 %v4232, %v4228
        %v4648 = vpack.c.bf16 %v4234, %v4230
        %v4649 = vpack.c.bf16 %v4305, %v4301
        %v4650 = vpack.c.bf16 %v4307, %v4303
        %v4651 = vpack.c.bf16 %v4378, %v4374
        %v4652 = vpack.c.bf16 %v4380, %v4376
        %v4653 = vpack.c.bf16 %v4451, %v4447
        %v4654 = vpack.c.bf16 %v4453, %v4449
        %v4655 = vpack.c.bf16 %v4524, %v4520
        %v4656 = vpack.c.bf16 %v4526, %v4522
        %v4657 = vpack.c.bf16 %v4597, %v4593
        %v4658 = vpack.c.bf16 %v4599, %v4595
        %v4659 = vpack.c.bf16 %v4096, %v4092
        %v4660 = vpack.c.bf16 %v4098, %v4094
        %v4661 = vpack.c.bf16 %v4169, %v4165
        %v4662 = vpack.c.bf16 %v4171, %v4167
        %v4663 = vpack.c.bf16 %v4242, %v4238
        %v4664 = vpack.c.bf16 %v4244, %v4240
        %v4665 = vpack.c.bf16 %v4315, %v4311
        %v4666 = vpack.c.bf16 %v4317, %v4313
        %v4667 = vpack.c.bf16 %v4388, %v4384
        %v4668 = vpack.c.bf16 %v4390, %v4386
        %v4669 = vpack.c.bf16 %v4461, %v4457
        %v4670 = vpack.c.bf16 %v4463, %v4459
        %v4671 = vpack.c.bf16 %v4534, %v4530
        %v4672 = vpack.c.bf16 %v4536, %v4532
        %v4673 = vpack.c.bf16 %v4607, %v4603
        %v4674 = vpack.c.bf16 %v4609, %v4605
        %v4675 = vmax.bf16 %v4611, 0
        %v4676 = vmax.bf16 %v4612, 0
        %v4677 = vmax.bf16 %v4613, 0
        %v4678 = vmax.bf16 %v4614, 0
        %v4679 = vmax.bf16 %v4615, 0
        %v4680 = vmax.bf16 %v4616, 0
        %v4681 = vmax.bf16 %v4617, 0
        %v4682 = vmax.bf16 %v4618, 0
        %v4683 = vmax.bf16 %v4619, 0
        %v4684 = vmax.bf16 %v4620, 0
        %v4685 = vmax.bf16 %v4621, 0
        %v4686 = vmax.bf16 %v4622, 0
        %v4687 = vmax.bf16 %v4623, 0
        %v4688 = vmax.bf16 %v4624, 0
        %v4689 = vmax.bf16 %v4625, 0
        %v4690 = vmax.bf16 %v4626, 0
        %v4691 = vmax.bf16 %v4627, 0
        %v4692 = vmax.bf16 %v4628, 0
        %v4693 = vmax.bf16 %v4629, 0
        %v4694 = vmax.bf16 %v4630, 0
        %v4695 = vmax.bf16 %v4631, 0
        %v4696 = vmax.bf16 %v4632, 0
        %v4697 = vmax.bf16 %v4633, 0
        %v4698 = vmax.bf16 %v4634, 0
        %v4699 = vmax.bf16 %v4635, 0
        %v4700 = vmax.bf16 %v4636, 0
        %v4701 = vmax.bf16 %v4637, 0
        %v4702 = vmax.bf16 %v4638, 0
        %v4703 = vmax.bf16 %v4639, 0
        %v4704 = vmax.bf16 %v4640, 0
        %v4705 = vmax.bf16 %v4641, 0
        %v4706 = vmax.bf16 %v4642, 0
        %v4707 = vmax.bf16 %v4643, 0
        %v4708 = vmax.bf16 %v4644, 0
        %v4709 = vmax.bf16 %v4645, 0
        %v4710 = vmax.bf16 %v4646, 0
        %v4711 = vmax.bf16 %v4647, 0
        %v4712 = vmax.bf16 %v4648, 0
        %v4713 = vmax.bf16 %v4649, 0
        %v4714 = vmax.bf16 %v4650, 0
        %v4715 = vmax.bf16 %v4651, 0
        %v4716 = vmax.bf16 %v4652, 0
        %v4717 = vmax.bf16 %v4653, 0
        %v4718 = vmax.bf16 %v4654, 0
        %v4719 = vmax.bf16 %v4655, 0
        %v4720 = vmax.bf16 %v4656, 0
        %v4721 = vmax.bf16 %v4657, 0
        %v4722 = vmax.bf16 %v4658, 0
        %v4723 = vmax.bf16 %v4659, 0
        %v4724 = vmax.bf16 %v4660, 0
        %v4725 = vmax.bf16 %v4661, 0
        %v4726 = vmax.bf16 %v4662, 0
        %v4727 = vmax.bf16 %v4663, 0
        %v4728 = vmax.bf16 %v4664, 0
        %v4729 = vmax.bf16 %v4665, 0
        %v4730 = vmax.bf16 %v4666, 0
        %v4731 = vmax.bf16 %v4667, 0
        %v4732 = vmax.bf16 %v4668, 0
        %v4733 = vmax.bf16 %v4669, 0
        %v4734 = vmax.bf16 %v4670, 0
        %v4735 = vmax.bf16 %v4671, 0
        %v4736 = vmax.bf16 %v4672, 0
        %v4737 = vmax.bf16 %v4673, 0
        %v4738 = vmax.bf16 %v4674, 0
        %v4739 = vld [vmem:[%s6] sm:$0xf]
        %v4740 = vld [vmem:[%s6 + $0x4] sm:$0xf]
        %v4741 = vld [vmem:[%s6 + $0x8] sm:$0xf]
        %v4742 = vld [vmem:[%s6 + $0xc] sm:$0xf]
        %v4743 = vld [vmem:[%s6 + $0x10] sm:$0xf]
        %v4744 = vld [vmem:[%s6 + $0x14] sm:$0xf]
        %v4745 = vld [vmem:[%s6 + $0x18] sm:$0xf]
        %v4746 = vld [vmem:[%s6 + $0x1c] sm:$0xf]
        %v4755 = vunpack.c.l.b16 %v4739
        %v4756 = vunpack.c.l.b16 %v4740
        %v4757 = vunpack.c.l.b16 %v4741
        %v4758 = vunpack.c.l.b16 %v4742
        %v4759 = vunpack.c.l.b16 %v4743
        %v4760 = vunpack.c.l.b16 %v4744
        %v4761 = vunpack.c.l.b16 %v4745
        %v4762 = vunpack.c.l.b16 %v4746
        %v4763 = vpack.c.b16 %v4756, %v4755
        %v4764 = vpack.c.b16 %v4758, %v4757
        %v4765 = vpack.c.b16 %v4760, %v4759
        %v4766 = vpack.c.b16 %v4762, %v4761
        %v4768 = vsel %vm895, %v4763, 0
        %v4771 = vsel %vm895, %v4764, 0
        %v4774 = vsel %vm895, %v4765, 0
        %v4777 = vsel %vm895, %v4766, 0
        %4779 = vmatprep.subr.bf16.mxu0 0
        %4780 = vmatpush1.bf16.msra.mxu0 0
        %4781 = vmatprep.subr.bf16.mxu0 0
        %4782 = vmatpush1.bf16.msra.mxu0 0
        %4783 = vmatprep.subr.bf16.mxu0 0
        %4784 = vmatpush1.bf16.msra.mxu0 0
        %4785 = vmatprep.subr.bf16.mxu0 0
        %4786 = vmatpush1.bf16.msra.mxu0 0
        %4787 = vmatprep.subr.bf16.mxu0 %v4724
        %4788 = vmatpush1.bf16.msra.mxu0 %v4723
        %4789 = vmatprep.subr.bf16.mxu0 %v4708
        %4790 = vmatpush1.bf16.msra.mxu0 %v4707
        %4791 = vmatprep.subr.bf16.mxu0 %v4692
        %4792 = vmatpush1.bf16.msra.mxu0 %v4691
        %4793 = vmatprep.subr.bf16.mxu0 %v4676
        %4794 = vmatpush1.bf16.msra.mxu0 %v4675
        %4795 = vmatprep.subr.bf16.mxu0 0
        %4796 = vmatpush2.bf16.msra.mxu0 0
        %4797 = vmatprep.subr.bf16.mxu0 0
        %4798 = vmatpush2.bf16.msra.mxu0 0
        %4799 = vmatprep.subr.bf16.mxu0 0
        %4800 = vmatpush2.bf16.msra.mxu0 0
        %4801 = vmatprep.subr.bf16.mxu0 0
        %4802 = vmatpush2.bf16.msra.mxu0 0
        %4803 = vmatprep.subr.bf16.mxu0 0
        %4804 = vmatpush2.bf16.msra.mxu0 0
        %4805 = vmatprep.subr.bf16.mxu0 0
        %4806 = vmatpush2.bf16.msra.mxu0 0
        %4807 = vmatprep.subr.bf16.mxu0 0
        %4808 = vmatpush2.bf16.msra.mxu0 0
        %4809 = vmatprep.subr.bf16.mxu0 0
        %4810 = vmatpush2.bf16.msra.mxu0 0
        %4811 = vmatprep.mubr.bf16.mxu0 0
        %4812 = vmatmul.mubr.bf16.gmra.mxu0 %v4768
        %v4813 = vpop.f32.mrf.mxu0
        %v4814 = vadd.f32 0.0, %v4813
        %v4815 = vpop.f32.mrf.mxu0
        %v4816 = vadd.f32 0.0, %v4815
        %v4817 = vpop.f32.mrf.mxu0
        %v4818 = vadd.f32 0.0, %v4817
        %v4819 = vpop.f32.mrf.mxu0
        %v4820 = vadd.f32 0.0, %v4819
        %4821 = vmatprep.mubr.bf16.mxu0 0
        %4822 = vmatmul.mubr.bf16.gmra.mxu0 %v4771
        %v4823 = vpop.f32.mrf.mxu0
        %v4824 = vadd.f32 0.0, %v4823
        %v4825 = vpop.f32.mrf.mxu0
        %v4826 = vadd.f32 0.0, %v4825
        %v4827 = vpop.f32.mrf.mxu0
        %v4828 = vadd.f32 0.0, %v4827
        %v4829 = vpop.f32.mrf.mxu0
        %v4830 = vadd.f32 0.0, %v4829
        %4831 = vmatprep.mubr.bf16.mxu0 0
        %4832 = vmatmul.mubr.bf16.gmra.mxu0 %v4774
        %v4833 = vpop.f32.mrf.mxu0
        %v4834 = vadd.f32 0.0, %v4833
        %v4835 = vpop.f32.mrf.mxu0
        %v4836 = vadd.f32 0.0, %v4835
        %v4837 = vpop.f32.mrf.mxu0
        %v4838 = vadd.f32 0.0, %v4837
        %v4839 = vpop.f32.mrf.mxu0
        %v4840 = vadd.f32 0.0, %v4839
        %4841 = vmatprep.mubr.bf16.mxu0 0
        %4842 = vmatmul.mubr.bf16.gmra.mxu0 %v4777
        %v4843 = vpop.f32.mrf.mxu0
        %v4844 = vadd.f32 0.0, %v4843
        %v4845 = vpop.f32.mrf.mxu0
        %v4846 = vadd.f32 0.0, %v4845
        %v4847 = vpop.f32.mrf.mxu0
        %v4848 = vadd.f32 0.0, %v4847
        %v4849 = vpop.f32.mrf.mxu0
        %v4850 = vadd.f32 0.0, %v4849
        %4851 = vdwg.mxu0
        %4852 = vmatprep.subr.bf16.mxu0 0
        %4853 = vmatpush1.bf16.msra.mxu0 0
        %4854 = vmatprep.subr.bf16.mxu0 0
        %4855 = vmatpush1.bf16.msra.mxu0 0
        %4856 = vmatprep.subr.bf16.mxu0 0
        %4857 = vmatpush1.bf16.msra.mxu0 0
        %4858 = vmatprep.subr.bf16.mxu0 0
        %4859 = vmatpush1.bf16.msra.mxu0 0
        %4860 = vmatprep.subr.bf16.mxu0 %v4726
        %4861 = vmatpush1.bf16.msra.mxu0 %v4725
        %4862 = vmatprep.subr.bf16.mxu0 %v4710
        %4863 = vmatpush1.bf16.msra.mxu0 %v4709
        %4864 = vmatprep.subr.bf16.mxu0 %v4694
        %4865 = vmatpush1.bf16.msra.mxu0 %v4693
        %4866 = vmatprep.subr.bf16.mxu0 %v4678
        %4867 = vmatpush1.bf16.msra.mxu0 %v4677
        %4868 = vmatprep.subr.bf16.mxu0 0
        %4869 = vmatpush2.bf16.msra.mxu0 0
        %4870 = vmatprep.subr.bf16.mxu0 0
        %4871 = vmatpush2.bf16.msra.mxu0 0
        %4872 = vmatprep.subr.bf16.mxu0 0
        %4873 = vmatpush2.bf16.msra.mxu0 0
        %4874 = vmatprep.subr.bf16.mxu0 0
        %4875 = vmatpush2.bf16.msra.mxu0 0
        %4876 = vmatprep.subr.bf16.mxu0 0
        %4877 = vmatpush2.bf16.msra.mxu0 0
        %4878 = vmatprep.subr.bf16.mxu0 0
        %4879 = vmatpush2.bf16.msra.mxu0 0
        %4880 = vmatprep.subr.bf16.mxu0 0
        %4881 = vmatpush2.bf16.msra.mxu0 0
        %4882 = vmatprep.subr.bf16.mxu0 0
        %4883 = vmatpush2.bf16.msra.mxu0 0
        %4884 = vmatprep.mubr.bf16.mxu0 0
        %4885 = vmatmul.mubr.bf16.gmra.mxu0 %v4768
        %v4886 = vpop.f32.mrf.mxu0
        %v4887 = vadd.f32 0.0, %v4886
        %v4888 = vpop.f32.mrf.mxu0
        %v4889 = vadd.f32 0.0, %v4888
        %v4890 = vpop.f32.mrf.mxu0
        %v4891 = vadd.f32 0.0, %v4890
        %v4892 = vpop.f32.mrf.mxu0
        %v4893 = vadd.f32 0.0, %v4892
        %4894 = vmatprep.mubr.bf16.mxu0 0
        %4895 = vmatmul.mubr.bf16.gmra.mxu0 %v4771
        %v4896 = vpop.f32.mrf.mxu0
        %v4897 = vadd.f32 0.0, %v4896
        %v4898 = vpop.f32.mrf.mxu0
        %v4899 = vadd.f32 0.0, %v4898
        %v4900 = vpop.f32.mrf.mxu0
        %v4901 = vadd.f32 0.0, %v4900
        %v4902 = vpop.f32.mrf.mxu0
        %v4903 = vadd.f32 0.0, %v4902
        %4904 = vmatprep.mubr.bf16.mxu0 0
        %4905 = vmatmul.mubr.bf16.gmra.mxu0 %v4774
        %v4906 = vpop.f32.mrf.mxu0
        %v4907 = vadd.f32 0.0, %v4906
        %v4908 = vpop.f32.mrf.mxu0
        %v4909 = vadd.f32 0.0, %v4908
        %v4910 = vpop.f32.mrf.mxu0
        %v4911 = vadd.f32 0.0, %v4910
        %v4912 = vpop.f32.mrf.mxu0
        %v4913 = vadd.f32 0.0, %v4912
        %4914 = vmatprep.mubr.bf16.mxu0 0
        %4915 = vmatmul.mubr.bf16.gmra.mxu0 %v4777
        %v4916 = vpop.f32.mrf.mxu0
        %v4917 = vadd.f32 0.0, %v4916
        %v4918 = vpop.f32.mrf.mxu0
        %v4919 = vadd.f32 0.0, %v4918
        %v4920 = vpop.f32.mrf.mxu0
        %v4921 = vadd.f32 0.0, %v4920
        %v4922 = vpop.f32.mrf.mxu0
        %v4923 = vadd.f32 0.0, %v4922
        %4924 = vdwg.mxu0
        %4925 = vmatprep.subr.bf16.mxu0 0
        %4926 = vmatpush1.bf16.msra.mxu0 0
        %4927 = vmatprep.subr.bf16.mxu0 0
        %4928 = vmatpush1.bf16.msra.mxu0 0
        %4929 = vmatprep.subr.bf16.mxu0 0
        %4930 = vmatpush1.bf16.msra.mxu0 0
        %4931 = vmatprep.subr.bf16.mxu0 0
        %4932 = vmatpush1.bf16.msra.mxu0 0
        %4933 = vmatprep.subr.bf16.mxu0 %v4728
        %4934 = vmatpush1.bf16.msra.mxu0 %v4727
        %4935 = vmatprep.subr.bf16.mxu0 %v4712
        %4936 = vmatpush1.bf16.msra.mxu0 %v4711
        %4937 = vmatprep.subr.bf16.mxu0 %v4696
        %4938 = vmatpush1.bf16.msra.mxu0 %v4695
        %4939 = vmatprep.subr.bf16.mxu0 %v4680
        %4940 = vmatpush1.bf16.msra.mxu0 %v4679
        %4941 = vmatprep.subr.bf16.mxu0 0
        %4942 = vmatpush2.bf16.msra.mxu0 0
        %4943 = vmatprep.subr.bf16.mxu0 0
        %4944 = vmatpush2.bf16.msra.mxu0 0
        %4945 = vmatprep.subr.bf16.mxu0 0
        %4946 = vmatpush2.bf16.msra.mxu0 0
        %4947 = vmatprep.subr.bf16.mxu0 0
        %4948 = vmatpush2.bf16.msra.mxu0 0
        %4949 = vmatprep.subr.bf16.mxu0 0
        %4950 = vmatpush2.bf16.msra.mxu0 0
        %4951 = vmatprep.subr.bf16.mxu0 0
        %4952 = vmatpush2.bf16.msra.mxu0 0
        %4953 = vmatprep.subr.bf16.mxu0 0
        %4954 = vmatpush2.bf16.msra.mxu0 0
        %4955 = vmatprep.subr.bf16.mxu0 0
        %4956 = vmatpush2.bf16.msra.mxu0 0
        %4957 = vmatprep.mubr.bf16.mxu0 0
        %4958 = vmatmul.mubr.bf16.gmra.mxu0 %v4768
        %v4959 = vpop.f32.mrf.mxu0
        %v4960 = vadd.f32 0.0, %v4959
        %v4961 = vpop.f32.mrf.mxu0
        %v4962 = vadd.f32 0.0, %v4961
        %v4963 = vpop.f32.mrf.mxu0
        %v4964 = vadd.f32 0.0, %v4963
        %v4965 = vpop.f32.mrf.mxu0
        %v4966 = vadd.f32 0.0, %v4965
        %4967 = vmatprep.mubr.bf16.mxu0 0
        %4968 = vmatmul.mubr.bf16.gmra.mxu0 %v4771
        %v4969 = vpop.f32.mrf.mxu0
        %v4970 = vadd.f32 0.0, %v4969
        %v4971 = vpop.f32.mrf.mxu0
        %v4972 = vadd.f32 0.0, %v4971
        %v4973 = vpop.f32.mrf.mxu0
        %v4974 = vadd.f32 0.0, %v4973
        %v4975 = vpop.f32.mrf.mxu0
        %v4976 = vadd.f32 0.0, %v4975
        %4977 = vmatprep.mubr.bf16.mxu0 0
        %4978 = vmatmul.mubr.bf16.gmra.mxu0 %v4774
        %v4979 = vpop.f32.mrf.mxu0
        %v4980 = vadd.f32 0.0, %v4979
        %v4981 = vpop.f32.mrf.mxu0
        %v4982 = vadd.f32 0.0, %v4981
        %v4983 = vpop.f32.mrf.mxu0
        %v4984 = vadd.f32 0.0, %v4983
        %v4985 = vpop.f32.mrf.mxu0
        %v4986 = vadd.f32 0.0, %v4985
        %4987 = vmatprep.mubr.bf16.mxu0 0
        %4988 = vmatmul.mubr.bf16.gmra.mxu0 %v4777
        %v4989 = vpop.f32.mrf.mxu0
        %v4990 = vadd.f32 0.0, %v4989
        %v4991 = vpop.f32.mrf.mxu0
        %v4992 = vadd.f32 0.0, %v4991
        %v4993 = vpop.f32.mrf.mxu0
        %v4994 = vadd.f32 0.0, %v4993
        %v4995 = vpop.f32.mrf.mxu0
        %v4996 = vadd.f32 0.0, %v4995
        %4997 = vdwg.mxu0
        %4998 = vmatprep.subr.bf16.mxu0 0
        %4999 = vmatpush1.bf16.msra.mxu0 0
        %5000 = vmatprep.subr.bf16.mxu0 0
        %5001 = vmatpush1.bf16.msra.mxu0 0
        %5002 = vmatprep.subr.bf16.mxu0 0
        %5003 = vmatpush1.bf16.msra.mxu0 0
        %5004 = vmatprep.subr.bf16.mxu0 0
        %5005 = vmatpush1.bf16.msra.mxu0 0
        %5006 = vmatprep.subr.bf16.mxu0 %v4730
        %5007 = vmatpush1.bf16.msra.mxu0 %v4729
        %5008 = vmatprep.subr.bf16.mxu0 %v4714
        %5009 = vmatpush1.bf16.msra.mxu0 %v4713
        %5010 = vmatprep.subr.bf16.mxu0 %v4698
        %5011 = vmatpush1.bf16.msra.mxu0 %v4697
        %5012 = vmatprep.subr.bf16.mxu0 %v4682
        %5013 = vmatpush1.bf16.msra.mxu0 %v4681
        %5014 = vmatprep.subr.bf16.mxu0 0
        %5015 = vmatpush2.bf16.msra.mxu0 0
        %5016 = vmatprep.subr.bf16.mxu0 0
        %5017 = vmatpush2.bf16.msra.mxu0 0
        %5018 = vmatprep.subr.bf16.mxu0 0
        %5019 = vmatpush2.bf16.msra.mxu0 0
        %5020 = vmatprep.subr.bf16.mxu0 0
        %5021 = vmatpush2.bf16.msra.mxu0 0
        %5022 = vmatprep.subr.bf16.mxu0 0
        %5023 = vmatpush2.bf16.msra.mxu0 0
        %5024 = vmatprep.subr.bf16.mxu0 0
        %5025 = vmatpush2.bf16.msra.mxu0 0
        %5026 = vmatprep.subr.bf16.mxu0 0
        %5027 = vmatpush2.bf16.msra.mxu0 0
        %5028 = vmatprep.subr.bf16.mxu0 0
        %5029 = vmatpush2.bf16.msra.mxu0 0
        %5030 = vmatprep.mubr.bf16.mxu0 0
        %5031 = vmatmul.mubr.bf16.gmra.mxu0 %v4768
        %v5032 = vpop.f32.mrf.mxu0
        %v5033 = vadd.f32 0.0, %v5032
        %v5034 = vpop.f32.mrf.mxu0
        %v5035 = vadd.f32 0.0, %v5034
        %v5036 = vpop.f32.mrf.mxu0
        %v5037 = vadd.f32 0.0, %v5036
        %v5038 = vpop.f32.mrf.mxu0
        %v5039 = vadd.f32 0.0, %v5038
        %5040 = vmatprep.mubr.bf16.mxu0 0
        %5041 = vmatmul.mubr.bf16.gmra.mxu0 %v4771
        %v5042 = vpop.f32.mrf.mxu0
        %v5043 = vadd.f32 0.0, %v5042
        %v5044 = vpop.f32.mrf.mxu0
        %v5045 = vadd.f32 0.0, %v5044
        %v5046 = vpop.f32.mrf.mxu0
        %v5047 = vadd.f32 0.0, %v5046
        %v5048 = vpop.f32.mrf.mxu0
        %v5049 = vadd.f32 0.0, %v5048
        %5050 = vmatprep.mubr.bf16.mxu0 0
        %5051 = vmatmul.mubr.bf16.gmra.mxu0 %v4774
        %v5052 = vpop.f32.mrf.mxu0
        %v5053 = vadd.f32 0.0, %v5052
        %v5054 = vpop.f32.mrf.mxu0
        %v5055 = vadd.f32 0.0, %v5054
        %v5056 = vpop.f32.mrf.mxu0
        %v5057 = vadd.f32 0.0, %v5056
        %v5058 = vpop.f32.mrf.mxu0
        %v5059 = vadd.f32 0.0, %v5058
        %5060 = vmatprep.mubr.bf16.mxu0 0
        %5061 = vmatmul.mubr.bf16.gmra.mxu0 %v4777
        %v5062 = vpop.f32.mrf.mxu0
        %v5063 = vadd.f32 0.0, %v5062
        %v5064 = vpop.f32.mrf.mxu0
        %v5065 = vadd.f32 0.0, %v5064
        %v5066 = vpop.f32.mrf.mxu0
        %v5067 = vadd.f32 0.0, %v5066
        %v5068 = vpop.f32.mrf.mxu0
        %v5069 = vadd.f32 0.0, %v5068
        %5070 = vdwg.mxu0
        %5071 = vmatprep.subr.bf16.mxu0 0
        %5072 = vmatpush1.bf16.msra.mxu0 0
        %5073 = vmatprep.subr.bf16.mxu0 0
        %5074 = vmatpush1.bf16.msra.mxu0 0
        %5075 = vmatprep.subr.bf16.mxu0 0
        %5076 = vmatpush1.bf16.msra.mxu0 0
        %5077 = vmatprep.subr.bf16.mxu0 0
        %5078 = vmatpush1.bf16.msra.mxu0 0
        %5079 = vmatprep.subr.bf16.mxu0 %v4732
        %5080 = vmatpush1.bf16.msra.mxu0 %v4731
        %5081 = vmatprep.subr.bf16.mxu0 %v4716
        %5082 = vmatpush1.bf16.msra.mxu0 %v4715
        %5083 = vmatprep.subr.bf16.mxu0 %v4700
        %5084 = vmatpush1.bf16.msra.mxu0 %v4699
        %5085 = vmatprep.subr.bf16.mxu0 %v4684
        %5086 = vmatpush1.bf16.msra.mxu0 %v4683
        %5087 = vmatprep.subr.bf16.mxu0 0
        %5088 = vmatpush2.bf16.msra.mxu0 0
        %5089 = vmatprep.subr.bf16.mxu0 0
        %5090 = vmatpush2.bf16.msra.mxu0 0
        %5091 = vmatprep.subr.bf16.mxu0 0
        %5092 = vmatpush2.bf16.msra.mxu0 0
        %5093 = vmatprep.subr.bf16.mxu0 0
        %5094 = vmatpush2.bf16.msra.mxu0 0
        %5095 = vmatprep.subr.bf16.mxu0 0
        %5096 = vmatpush2.bf16.msra.mxu0 0
        %5097 = vmatprep.subr.bf16.mxu0 0
        %5098 = vmatpush2.bf16.msra.mxu0 0
        %5099 = vmatprep.subr.bf16.mxu0 0
        %5100 = vmatpush2.bf16.msra.mxu0 0
        %5101 = vmatprep.subr.bf16.mxu0 0
        %5102 = vmatpush2.bf16.msra.mxu0 0
        %5103 = vmatprep.mubr.bf16.mxu0 0
        %5104 = vmatmul.mubr.bf16.gmra.mxu0 %v4768
        %v5105 = vpop.f32.mrf.mxu0
        %v5106 = vadd.f32 0.0, %v5105
        %v5107 = vpop.f32.mrf.mxu0
        %v5108 = vadd.f32 0.0, %v5107
        %v5109 = vpop.f32.mrf.mxu0
        %v5110 = vadd.f32 0.0, %v5109
        %v5111 = vpop.f32.mrf.mxu0
        %v5112 = vadd.f32 0.0, %v5111
        %5113 = vmatprep.mubr.bf16.mxu0 0
        %5114 = vmatmul.mubr.bf16.gmra.mxu0 %v4771
        %v5115 = vpop.f32.mrf.mxu0
        %v5116 = vadd.f32 0.0, %v5115
        %v5117 = vpop.f32.mrf.mxu0
        %v5118 = vadd.f32 0.0, %v5117
        %v5119 = vpop.f32.mrf.mxu0
        %v5120 = vadd.f32 0.0, %v5119
        %v5121 = vpop.f32.mrf.mxu0
        %v5122 = vadd.f32 0.0, %v5121
        %5123 = vmatprep.mubr.bf16.mxu0 0
        %5124 = vmatmul.mubr.bf16.gmra.mxu0 %v4774
        %v5125 = vpop.f32.mrf.mxu0
        %v5126 = vadd.f32 0.0, %v5125
        %v5127 = vpop.f32.mrf.mxu0
        %v5128 = vadd.f32 0.0, %v5127
        %v5129 = vpop.f32.mrf.mxu0
        %v5130 = vadd.f32 0.0, %v5129
        %v5131 = vpop.f32.mrf.mxu0
        %v5132 = vadd.f32 0.0, %v5131
        %5133 = vmatprep.mubr.bf16.mxu0 0
        %5134 = vmatmul.mubr.bf16.gmra.mxu0 %v4777
        %v5135 = vpop.f32.mrf.mxu0
        %v5136 = vadd.f32 0.0, %v5135
        %v5137 = vpop.f32.mrf.mxu0
        %v5138 = vadd.f32 0.0, %v5137
        %v5139 = vpop.f32.mrf.mxu0
        %v5140 = vadd.f32 0.0, %v5139
        %v5141 = vpop.f32.mrf.mxu0
        %v5142 = vadd.f32 0.0, %v5141
        %5143 = vdwg.mxu0
        %5144 = vmatprep.subr.bf16.mxu0 0
        %5145 = vmatpush1.bf16.msra.mxu0 0
        %5146 = vmatprep.subr.bf16.mxu0 0
        %5147 = vmatpush1.bf16.msra.mxu0 0
        %5148 = vmatprep.subr.bf16.mxu0 0
        %5149 = vmatpush1.bf16.msra.mxu0 0
        %5150 = vmatprep.subr.bf16.mxu0 0
        %5151 = vmatpush1.bf16.msra.mxu0 0
        %5152 = vmatprep.subr.bf16.mxu0 %v4734
        %5153 = vmatpush1.bf16.msra.mxu0 %v4733
        %5154 = vmatprep.subr.bf16.mxu0 %v4718
        %5155 = vmatpush1.bf16.msra.mxu0 %v4717
        %5156 = vmatprep.subr.bf16.mxu0 %v4702
        %5157 = vmatpush1.bf16.msra.mxu0 %v4701
        %5158 = vmatprep.subr.bf16.mxu0 %v4686
        %5159 = vmatpush1.bf16.msra.mxu0 %v4685
        %5160 = vmatprep.subr.bf16.mxu0 0
        %5161 = vmatpush2.bf16.msra.mxu0 0
        %5162 = vmatprep.subr.bf16.mxu0 0
        %5163 = vmatpush2.bf16.msra.mxu0 0
        %5164 = vmatprep.subr.bf16.mxu0 0
        %5165 = vmatpush2.bf16.msra.mxu0 0
        %5166 = vmatprep.subr.bf16.mxu0 0
        %5167 = vmatpush2.bf16.msra.mxu0 0
        %5168 = vmatprep.subr.bf16.mxu0 0
        %5169 = vmatpush2.bf16.msra.mxu0 0
        %5170 = vmatprep.subr.bf16.mxu0 0
        %5171 = vmatpush2.bf16.msra.mxu0 0
        %5172 = vmatprep.subr.bf16.mxu0 0
        %5173 = vmatpush2.bf16.msra.mxu0 0
        %5174 = vmatprep.subr.bf16.mxu0 0
        %5175 = vmatpush2.bf16.msra.mxu0 0
        %5176 = vmatprep.mubr.bf16.mxu0 0
        %5177 = vmatmul.mubr.bf16.gmra.mxu0 %v4768
        %v5178 = vpop.f32.mrf.mxu0
        %v5179 = vadd.f32 0.0, %v5178
        %v5180 = vpop.f32.mrf.mxu0
        %v5181 = vadd.f32 0.0, %v5180
        %v5182 = vpop.f32.mrf.mxu0
        %v5183 = vadd.f32 0.0, %v5182
        %v5184 = vpop.f32.mrf.mxu0
        %v5185 = vadd.f32 0.0, %v5184
        %5186 = vmatprep.mubr.bf16.mxu0 0
        %5187 = vmatmul.mubr.bf16.gmra.mxu0 %v4771
        %v5188 = vpop.f32.mrf.mxu0
        %v5189 = vadd.f32 0.0, %v5188
        %v5190 = vpop.f32.mrf.mxu0
        %v5191 = vadd.f32 0.0, %v5190
        %v5192 = vpop.f32.mrf.mxu0
        %v5193 = vadd.f32 0.0, %v5192
        %v5194 = vpop.f32.mrf.mxu0
        %v5195 = vadd.f32 0.0, %v5194
        %5196 = vmatprep.mubr.bf16.mxu0 0
        %5197 = vmatmul.mubr.bf16.gmra.mxu0 %v4774
        %v5198 = vpop.f32.mrf.mxu0
        %v5199 = vadd.f32 0.0, %v5198
        %v5200 = vpop.f32.mrf.mxu0
        %v5201 = vadd.f32 0.0, %v5200
        %v5202 = vpop.f32.mrf.mxu0
        %v5203 = vadd.f32 0.0, %v5202
        %v5204 = vpop.f32.mrf.mxu0
        %v5205 = vadd.f32 0.0, %v5204
        %5206 = vmatprep.mubr.bf16.mxu0 0
        %5207 = vmatmul.mubr.bf16.gmra.mxu0 %v4777
        %v5208 = vpop.f32.mrf.mxu0
        %v5209 = vadd.f32 0.0, %v5208
        %v5210 = vpop.f32.mrf.mxu0
        %v5211 = vadd.f32 0.0, %v5210
        %v5212 = vpop.f32.mrf.mxu0
        %v5213 = vadd.f32 0.0, %v5212
        %v5214 = vpop.f32.mrf.mxu0
        %v5215 = vadd.f32 0.0, %v5214
        %5216 = vdwg.mxu0
        %5217 = vmatprep.subr.bf16.mxu0 0
        %5218 = vmatpush1.bf16.msra.mxu0 0
        %5219 = vmatprep.subr.bf16.mxu0 0
        %5220 = vmatpush1.bf16.msra.mxu0 0
        %5221 = vmatprep.subr.bf16.mxu0 0
        %5222 = vmatpush1.bf16.msra.mxu0 0
        %5223 = vmatprep.subr.bf16.mxu0 0
        %5224 = vmatpush1.bf16.msra.mxu0 0
        %5225 = vmatprep.subr.bf16.mxu0 %v4736
        %5226 = vmatpush1.bf16.msra.mxu0 %v4735
        %5227 = vmatprep.subr.bf16.mxu0 %v4720
        %5228 = vmatpush1.bf16.msra.mxu0 %v4719
        %5229 = vmatprep.subr.bf16.mxu0 %v4704
        %5230 = vmatpush1.bf16.msra.mxu0 %v4703
        %5231 = vmatprep.subr.bf16.mxu0 %v4688
        %5232 = vmatpush1.bf16.msra.mxu0 %v4687
        %5233 = vmatprep.subr.bf16.mxu0 0
        %5234 = vmatpush2.bf16.msra.mxu0 0
        %5235 = vmatprep.subr.bf16.mxu0 0
        %5236 = vmatpush2.bf16.msra.mxu0 0
        %5237 = vmatprep.subr.bf16.mxu0 0
        %5238 = vmatpush2.bf16.msra.mxu0 0
        %5239 = vmatprep.subr.bf16.mxu0 0
        %5240 = vmatpush2.bf16.msra.mxu0 0
        %5241 = vmatprep.subr.bf16.mxu0 0
        %5242 = vmatpush2.bf16.msra.mxu0 0
        %5243 = vmatprep.subr.bf16.mxu0 0
        %5244 = vmatpush2.bf16.msra.mxu0 0
        %5245 = vmatprep.subr.bf16.mxu0 0
        %5246 = vmatpush2.bf16.msra.mxu0 0
        %5247 = vmatprep.subr.bf16.mxu0 0
        %5248 = vmatpush2.bf16.msra.mxu0 0
        %5249 = vmatprep.mubr.bf16.mxu0 0
        %5250 = vmatmul.mubr.bf16.gmra.mxu0 %v4768
        %v5251 = vpop.f32.mrf.mxu0
        %v5252 = vadd.f32 0.0, %v5251
        %v5253 = vpop.f32.mrf.mxu0
        %v5254 = vadd.f32 0.0, %v5253
        %v5255 = vpop.f32.mrf.mxu0
        %v5256 = vadd.f32 0.0, %v5255
        %v5257 = vpop.f32.mrf.mxu0
        %v5258 = vadd.f32 0.0, %v5257
        %5259 = vmatprep.mubr.bf16.mxu0 0
        %5260 = vmatmul.mubr.bf16.gmra.mxu0 %v4771
        %v5261 = vpop.f32.mrf.mxu0
        %v5262 = vadd.f32 0.0, %v5261
        %v5263 = vpop.f32.mrf.mxu0
        %v5264 = vadd.f32 0.0, %v5263
        %v5265 = vpop.f32.mrf.mxu0
        %v5266 = vadd.f32 0.0, %v5265
        %v5267 = vpop.f32.mrf.mxu0
        %v5268 = vadd.f32 0.0, %v5267
        %5269 = vmatprep.mubr.bf16.mxu0 0
        %5270 = vmatmul.mubr.bf16.gmra.mxu0 %v4774
        %v5271 = vpop.f32.mrf.mxu0
        %v5272 = vadd.f32 0.0, %v5271
        %v5273 = vpop.f32.mrf.mxu0
        %v5274 = vadd.f32 0.0, %v5273
        %v5275 = vpop.f32.mrf.mxu0
        %v5276 = vadd.f32 0.0, %v5275
        %v5277 = vpop.f32.mrf.mxu0
        %v5278 = vadd.f32 0.0, %v5277
        %5279 = vmatprep.mubr.bf16.mxu0 0
        %5280 = vmatmul.mubr.bf16.gmra.mxu0 %v4777
        %v5281 = vpop.f32.mrf.mxu0
        %v5282 = vadd.f32 0.0, %v5281
        %v5283 = vpop.f32.mrf.mxu0
        %v5284 = vadd.f32 0.0, %v5283
        %v5285 = vpop.f32.mrf.mxu0
        %v5286 = vadd.f32 0.0, %v5285
        %v5287 = vpop.f32.mrf.mxu0
        %v5288 = vadd.f32 0.0, %v5287
        %5289 = vdwg.mxu0
        %5290 = vmatprep.subr.bf16.mxu0 0
        %5291 = vmatpush1.bf16.msra.mxu0 0
        %5292 = vmatprep.subr.bf16.mxu0 0
        %5293 = vmatpush1.bf16.msra.mxu0 0
        %5294 = vmatprep.subr.bf16.mxu0 0
        %5295 = vmatpush1.bf16.msra.mxu0 0
        %5296 = vmatprep.subr.bf16.mxu0 0
        %5297 = vmatpush1.bf16.msra.mxu0 0
        %5298 = vmatprep.subr.bf16.mxu0 %v4738
        %5299 = vmatpush1.bf16.msra.mxu0 %v4737
        %5300 = vmatprep.subr.bf16.mxu0 %v4722
        %5301 = vmatpush1.bf16.msra.mxu0 %v4721
        %5302 = vmatprep.subr.bf16.mxu0 %v4706
        %5303 = vmatpush1.bf16.msra.mxu0 %v4705
        %5304 = vmatprep.subr.bf16.mxu0 %v4690
        %5305 = vmatpush1.bf16.msra.mxu0 %v4689
        %5306 = vmatprep.subr.bf16.mxu0 0
        %5307 = vmatpush2.bf16.msra.mxu0 0
        %5308 = vmatprep.subr.bf16.mxu0 0
        %5309 = vmatpush2.bf16.msra.mxu0 0
        %5310 = vmatprep.subr.bf16.mxu0 0
        %5311 = vmatpush2.bf16.msra.mxu0 0
        %5312 = vmatprep.subr.bf16.mxu0 0
        %5313 = vmatpush2.bf16.msra.mxu0 0
        %5314 = vmatprep.subr.bf16.mxu0 0
        %5315 = vmatpush2.bf16.msra.mxu0 0
        %5316 = vmatprep.subr.bf16.mxu0 0
        %5317 = vmatpush2.bf16.msra.mxu0 0
        %5318 = vmatprep.subr.bf16.mxu0 0
        %5319 = vmatpush2.bf16.msra.mxu0 0
        %5320 = vmatprep.subr.bf16.mxu0 0
        %5321 = vmatpush2.bf16.msra.mxu0 0
        %5322 = vmatprep.mubr.bf16.mxu0 0
        %5323 = vmatmul.mubr.bf16.gmra.mxu0 %v4768
        %v5324 = vpop.f32.mrf.mxu0
        %v5325 = vadd.f32 0.0, %v5324
        %v5326 = vpop.f32.mrf.mxu0
        %v5327 = vadd.f32 0.0, %v5326
        %v5328 = vpop.f32.mrf.mxu0
        %v5329 = vadd.f32 0.0, %v5328
        %v5330 = vpop.f32.mrf.mxu0
        %v5331 = vadd.f32 0.0, %v5330
        %5332 = vmatprep.mubr.bf16.mxu0 0
        %5333 = vmatmul.mubr.bf16.gmra.mxu0 %v4771
        %v5334 = vpop.f32.mrf.mxu0
        %v5335 = vadd.f32 0.0, %v5334
        %v5336 = vpop.f32.mrf.mxu0
        %v5337 = vadd.f32 0.0, %v5336
        %v5338 = vpop.f32.mrf.mxu0
        %v5339 = vadd.f32 0.0, %v5338
        %v5340 = vpop.f32.mrf.mxu0
        %v5341 = vadd.f32 0.0, %v5340
        %5342 = vmatprep.mubr.bf16.mxu0 0
        %5343 = vmatmul.mubr.bf16.gmra.mxu0 %v4774
        %v5344 = vpop.f32.mrf.mxu0
        %v5345 = vadd.f32 0.0, %v5344
        %v5346 = vpop.f32.mrf.mxu0
        %v5347 = vadd.f32 0.0, %v5346
        %v5348 = vpop.f32.mrf.mxu0
        %v5349 = vadd.f32 0.0, %v5348
        %v5350 = vpop.f32.mrf.mxu0
        %v5351 = vadd.f32 0.0, %v5350
        %5352 = vmatprep.mubr.bf16.mxu0 0
        %5353 = vmatmul.mubr.bf16.gmra.mxu0 %v4777
        %v5354 = vpop.f32.mrf.mxu0
        %v5355 = vadd.f32 0.0, %v5354
        %v5356 = vpop.f32.mrf.mxu0
        %v5357 = vadd.f32 0.0, %v5356
        %v5358 = vpop.f32.mrf.mxu0
        %v5359 = vadd.f32 0.0, %v5358
        %v5360 = vpop.f32.mrf.mxu0
        %v5361 = vadd.f32 0.0, %v5360
        %5362 = vdwg.mxu0
        %v5363 = vpack.c.bf16 %v4818, %v4814
        %v5364 = vpack.c.bf16 %v4820, %v4816
        %v5365 = vpack.c.bf16 %v4891, %v4887
        %v5366 = vpack.c.bf16 %v4893, %v4889
        %v5367 = vpack.c.bf16 %v4964, %v4960
        %v5368 = vpack.c.bf16 %v4966, %v4962
        %v5369 = vpack.c.bf16 %v5037, %v5033
        %v5370 = vpack.c.bf16 %v5039, %v5035
        %v5371 = vpack.c.bf16 %v5110, %v5106
        %v5372 = vpack.c.bf16 %v5112, %v5108
        %v5373 = vpack.c.bf16 %v5183, %v5179
        %v5374 = vpack.c.bf16 %v5185, %v5181
        %v5375 = vpack.c.bf16 %v5256, %v5252
        %v5376 = vpack.c.bf16 %v5258, %v5254
        %v5377 = vpack.c.bf16 %v5329, %v5325
        %v5378 = vpack.c.bf16 %v5331, %v5327
        %v5379 = vpack.c.bf16 %v4828, %v4824
        %v5380 = vpack.c.bf16 %v4830, %v4826
        %v5381 = vpack.c.bf16 %v4901, %v4897
        %v5382 = vpack.c.bf16 %v4903, %v4899
        %v5383 = vpack.c.bf16 %v4974, %v4970
        %v5384 = vpack.c.bf16 %v4976, %v4972
        %v5385 = vpack.c.bf16 %v5047, %v5043
        %v5386 = vpack.c.bf16 %v5049, %v5045
        %v5387 = vpack.c.bf16 %v5120, %v5116
        %v5388 = vpack.c.bf16 %v5122, %v5118
        %v5389 = vpack.c.bf16 %v5193, %v5189
        %v5390 = vpack.c.bf16 %v5195, %v5191
        %v5391 = vpack.c.bf16 %v5266, %v5262
        %v5392 = vpack.c.bf16 %v5268, %v5264
        %v5393 = vpack.c.bf16 %v5339, %v5335
        %v5394 = vpack.c.bf16 %v5341, %v5337
        %v5395 = vpack.c.bf16 %v4838, %v4834
        %v5396 = vpack.c.bf16 %v4840, %v4836
        %v5397 = vpack.c.bf16 %v4911, %v4907
        %v5398 = vpack.c.bf16 %v4913, %v4909
        %v5399 = vpack.c.bf16 %v4984, %v4980
        %v5400 = vpack.c.bf16 %v4986, %v4982
        %v5401 = vpack.c.bf16 %v5057, %v5053
        %v5402 = vpack.c.bf16 %v5059, %v5055
        %v5403 = vpack.c.bf16 %v5130, %v5126
        %v5404 = vpack.c.bf16 %v5132, %v5128
        %v5405 = vpack.c.bf16 %v5203, %v5199
        %v5406 = vpack.c.bf16 %v5205, %v5201
        %v5407 = vpack.c.bf16 %v5276, %v5272
        %v5408 = vpack.c.bf16 %v5278, %v5274
        %v5409 = vpack.c.bf16 %v5349, %v5345
        %v5410 = vpack.c.bf16 %v5351, %v5347
        %v5411 = vpack.c.bf16 %v4848, %v4844
        %v5412 = vpack.c.bf16 %v4850, %v4846
        %v5413 = vpack.c.bf16 %v4921, %v4917
        %v5414 = vpack.c.bf16 %v4923, %v4919
        %v5415 = vpack.c.bf16 %v4994, %v4990
        %v5416 = vpack.c.bf16 %v4996, %v4992
        %v5417 = vpack.c.bf16 %v5067, %v5063
        %v5418 = vpack.c.bf16 %v5069, %v5065
        %v5419 = vpack.c.bf16 %v5140, %v5136
        %v5420 = vpack.c.bf16 %v5142, %v5138
        %v5421 = vpack.c.bf16 %v5213, %v5209
        %v5422 = vpack.c.bf16 %v5215, %v5211
        %v5423 = vpack.c.bf16 %v5286, %v5282
        %v5424 = vpack.c.bf16 %v5288, %v5284
        %v5425 = vpack.c.bf16 %v5359, %v5355
        %v5426 = vpack.c.bf16 %v5361, %v5357
        %v5427 = vmax.bf16 %v5363, 0
        %v5428 = vmax.bf16 %v5364, 0
        %v5429 = vmax.bf16 %v5365, 0
        %v5430 = vmax.bf16 %v5366, 0
        %v5431 = vmax.bf16 %v5367, 0
        %v5432 = vmax.bf16 %v5368, 0
        %v5433 = vmax.bf16 %v5369, 0
        %v5434 = vmax.bf16 %v5370, 0
        %v5435 = vmax.bf16 %v5371, 0
        %v5436 = vmax.bf16 %v5372, 0
        %v5437 = vmax.bf16 %v5373, 0
        %v5438 = vmax.bf16 %v5374, 0
        %v5439 = vmax.bf16 %v5375, 0
        %v5440 = vmax.bf16 %v5376, 0
        %v5441 = vmax.bf16 %v5377, 0
        %v5442 = vmax.bf16 %v5378, 0
        %v5443 = vmax.bf16 %v5379, 0
        %v5444 = vmax.bf16 %v5380, 0
        %v5445 = vmax.bf16 %v5381, 0
        %v5446 = vmax.bf16 %v5382, 0
        %v5447 = vmax.bf16 %v5383, 0
        %v5448 = vmax.bf16 %v5384, 0
        %v5449 = vmax.bf16 %v5385, 0
        %v5450 = vmax.bf16 %v5386, 0
        %v5451 = vmax.bf16 %v5387, 0
        %v5452 = vmax.bf16 %v5388, 0
        %v5453 = vmax.bf16 %v5389, 0
        %v5454 = vmax.bf16 %v5390, 0
        %v5455 = vmax.bf16 %v5391, 0
        %v5456 = vmax.bf16 %v5392, 0
        %v5457 = vmax.bf16 %v5393, 0
        %v5458 = vmax.bf16 %v5394, 0
        %v5459 = vmax.bf16 %v5395, 0
        %v5460 = vmax.bf16 %v5396, 0
        %v5461 = vmax.bf16 %v5397, 0
        %v5462 = vmax.bf16 %v5398, 0
        %v5463 = vmax.bf16 %v5399, 0
        %v5464 = vmax.bf16 %v5400, 0
        %v5465 = vmax.bf16 %v5401, 0
        %v5466 = vmax.bf16 %v5402, 0
        %v5467 = vmax.bf16 %v5403, 0
        %v5468 = vmax.bf16 %v5404, 0
        %v5469 = vmax.bf16 %v5405, 0
        %v5470 = vmax.bf16 %v5406, 0
        %v5471 = vmax.bf16 %v5407, 0
        %v5472 = vmax.bf16 %v5408, 0
        %v5473 = vmax.bf16 %v5409, 0
        %v5474 = vmax.bf16 %v5410, 0
        %v5475 = vmax.bf16 %v5411, 0
        %v5476 = vmax.bf16 %v5412, 0
        %v5477 = vmax.bf16 %v5413, 0
        %v5478 = vmax.bf16 %v5414, 0
        %v5479 = vmax.bf16 %v5415, 0
        %v5480 = vmax.bf16 %v5416, 0
        %v5481 = vmax.bf16 %v5417, 0
        %v5482 = vmax.bf16 %v5418, 0
        %v5483 = vmax.bf16 %v5419, 0
        %v5484 = vmax.bf16 %v5420, 0
        %v5485 = vmax.bf16 %v5421, 0
        %v5486 = vmax.bf16 %v5422, 0
        %v5487 = vmax.bf16 %v5423, 0
        %v5488 = vmax.bf16 %v5424, 0
        %v5489 = vmax.bf16 %v5425, 0
        %v5490 = vmax.bf16 %v5426, 0
        %v5491 = vld [vmem:[%s7] sm:$0x3]
        %v5493 = vsel %vm895, %v5491, 0
        %5495 = vmatprep.subr.bf16.mxu0 0
        %5496 = vmatpush1.bf16.msra.mxu0 0
        %5497 = vmatprep.subr.bf16.mxu0 0
        %5498 = vmatpush1.bf16.msra.mxu0 0
        %5499 = vmatprep.subr.bf16.mxu0 0
        %5500 = vmatpush1.bf16.msra.mxu0 0
        %5501 = vmatprep.subr.bf16.mxu0 0
        %5502 = vmatpush1.bf16.msra.mxu0 0
        %5503 = vmatprep.subr.bf16.mxu0 %v5476
        %5504 = vmatpush1.bf16.msra.mxu0 %v5475
        %5505 = vmatprep.subr.bf16.mxu0 %v5460
        %5506 = vmatpush1.bf16.msra.mxu0 %v5459
        %5507 = vmatprep.subr.bf16.mxu0 %v5444
        %5508 = vmatpush1.bf16.msra.mxu0 %v5443
        %5509 = vmatprep.subr.bf16.mxu0 %v5428
        %5510 = vmatpush1.bf16.msra.mxu0 %v5427
        %5511 = vmatprep.subr.bf16.mxu0 0
        %5512 = vmatpush2.bf16.msra.mxu0 0
        %5513 = vmatprep.subr.bf16.mxu0 0
        %5514 = vmatpush2.bf16.msra.mxu0 0
        %5515 = vmatprep.subr.bf16.mxu0 0
        %5516 = vmatpush2.bf16.msra.mxu0 0
        %5517 = vmatprep.subr.bf16.mxu0 0
        %5518 = vmatpush2.bf16.msra.mxu0 0
        %5519 = vmatprep.subr.bf16.mxu0 0
        %5520 = vmatpush2.bf16.msra.mxu0 0
        %5521 = vmatprep.subr.bf16.mxu0 0
        %5522 = vmatpush2.bf16.msra.mxu0 0
        %5523 = vmatprep.subr.bf16.mxu0 0
        %5524 = vmatpush2.bf16.msra.mxu0 0
        %5525 = vmatprep.subr.bf16.mxu0 0
        %5526 = vmatpush2.bf16.msra.mxu0 0
        %5527 = vmatprep.mubr.bf16.mxu0 0
        %5528 = vmatmul.mubr.bf16.gmra.mxu0 %v5493
        %v5529 = vpop.f32.mrf.mxu0
        %v5530 = vadd.f32 0.0, %v5529
        %v5531 = vpop.f32.mrf.mxu0
        %v5532 = vadd.f32 0.0, %v5531
        %v5533 = vpop.f32.mrf.mxu0
        %v5534 = vpop.f32.mrf.mxu0
        %5535 = vdwg.mxu0
        %5536 = vmatprep.subr.bf16.mxu0 0
        %5537 = vmatpush1.bf16.msra.mxu0 0
        %5538 = vmatprep.subr.bf16.mxu0 0
        %5539 = vmatpush1.bf16.msra.mxu0 0
        %5540 = vmatprep.subr.bf16.mxu0 0
        %5541 = vmatpush1.bf16.msra.mxu0 0
        %5542 = vmatprep.subr.bf16.mxu0 0
        %5543 = vmatpush1.bf16.msra.mxu0 0
        %5544 = vmatprep.subr.bf16.mxu0 %v5478
        %5545 = vmatpush1.bf16.msra.mxu0 %v5477
        %5546 = vmatprep.subr.bf16.mxu0 %v5462
        %5547 = vmatpush1.bf16.msra.mxu0 %v5461
        %5548 = vmatprep.subr.bf16.mxu0 %v5446
        %5549 = vmatpush1.bf16.msra.mxu0 %v5445
        %5550 = vmatprep.subr.bf16.mxu0 %v5430
        %5551 = vmatpush1.bf16.msra.mxu0 %v5429
        %5552 = vmatprep.subr.bf16.mxu0 0
        %5553 = vmatpush2.bf16.msra.mxu0 0
        %5554 = vmatprep.subr.bf16.mxu0 0
        %5555 = vmatpush2.bf16.msra.mxu0 0
        %5556 = vmatprep.subr.bf16.mxu0 0
        %5557 = vmatpush2.bf16.msra.mxu0 0
        %5558 = vmatprep.subr.bf16.mxu0 0
        %5559 = vmatpush2.bf16.msra.mxu0 0
        %5560 = vmatprep.subr.bf16.mxu0 0
        %5561 = vmatpush2.bf16.msra.mxu0 0
        %5562 = vmatprep.subr.bf16.mxu0 0
        %5563 = vmatpush2.bf16.msra.mxu0 0
        %5564 = vmatprep.subr.bf16.mxu0 0
        %5565 = vmatpush2.bf16.msra.mxu0 0
        %5566 = vmatprep.subr.bf16.mxu0 0
        %5567 = vmatpush2.bf16.msra.mxu0 0
        %5568 = vmatprep.mubr.bf16.mxu0 0
        %5569 = vmatmul.mubr.bf16.gmra.mxu0 %v5493
        %v5570 = vpop.f32.mrf.mxu0
        %v5571 = vadd.f32 0.0, %v5570
        %v5572 = vpop.f32.mrf.mxu0
        %v5573 = vadd.f32 0.0, %v5572
        %v5574 = vpop.f32.mrf.mxu0
        %v5575 = vpop.f32.mrf.mxu0
        %5576 = vdwg.mxu0
        %5577 = vmatprep.subr.bf16.mxu0 0
        %5578 = vmatpush1.bf16.msra.mxu0 0
        %5579 = vmatprep.subr.bf16.mxu0 0
        %5580 = vmatpush1.bf16.msra.mxu0 0
        %5581 = vmatprep.subr.bf16.mxu0 0
        %5582 = vmatpush1.bf16.msra.mxu0 0
        %5583 = vmatprep.subr.bf16.mxu0 0
        %5584 = vmatpush1.bf16.msra.mxu0 0
        %5585 = vmatprep.subr.bf16.mxu0 %v5480
        %5586 = vmatpush1.bf16.msra.mxu0 %v5479
        %5587 = vmatprep.subr.bf16.mxu0 %v5464
        %5588 = vmatpush1.bf16.msra.mxu0 %v5463
        %5589 = vmatprep.subr.bf16.mxu0 %v5448
        %5590 = vmatpush1.bf16.msra.mxu0 %v5447
        %5591 = vmatprep.subr.bf16.mxu0 %v5432
        %5592 = vmatpush1.bf16.msra.mxu0 %v5431
        %5593 = vmatprep.subr.bf16.mxu0 0
        %5594 = vmatpush2.bf16.msra.mxu0 0
        %5595 = vmatprep.subr.bf16.mxu0 0
        %5596 = vmatpush2.bf16.msra.mxu0 0
        %5597 = vmatprep.subr.bf16.mxu0 0
        %5598 = vmatpush2.bf16.msra.mxu0 0
        %5599 = vmatprep.subr.bf16.mxu0 0
        %5600 = vmatpush2.bf16.msra.mxu0 0
        %5601 = vmatprep.subr.bf16.mxu0 0
        %5602 = vmatpush2.bf16.msra.mxu0 0
        %5603 = vmatprep.subr.bf16.mxu0 0
        %5604 = vmatpush2.bf16.msra.mxu0 0
        %5605 = vmatprep.subr.bf16.mxu0 0
        %5606 = vmatpush2.bf16.msra.mxu0 0
        %5607 = vmatprep.subr.bf16.mxu0 0
        %5608 = vmatpush2.bf16.msra.mxu0 0
        %5609 = vmatprep.mubr.bf16.mxu0 0
        %5610 = vmatmul.mubr.bf16.gmra.mxu0 %v5493
        %v5611 = vpop.f32.mrf.mxu0
        %v5612 = vadd.f32 0.0, %v5611
        %v5613 = vpop.f32.mrf.mxu0
        %v5614 = vadd.f32 0.0, %v5613
        %v5615 = vpop.f32.mrf.mxu0
        %v5616 = vpop.f32.mrf.mxu0
        %5617 = vdwg.mxu0
        %5618 = vmatprep.subr.bf16.mxu0 0
        %5619 = vmatpush1.bf16.msra.mxu0 0
        %5620 = vmatprep.subr.bf16.mxu0 0
        %5621 = vmatpush1.bf16.msra.mxu0 0
        %5622 = vmatprep.subr.bf16.mxu0 0
        %5623 = vmatpush1.bf16.msra.mxu0 0
        %5624 = vmatprep.subr.bf16.mxu0 0
        %5625 = vmatpush1.bf16.msra.mxu0 0
        %5626 = vmatprep.subr.bf16.mxu0 %v5482
        %5627 = vmatpush1.bf16.msra.mxu0 %v5481
        %5628 = vmatprep.subr.bf16.mxu0 %v5466
        %5629 = vmatpush1.bf16.msra.mxu0 %v5465
        %5630 = vmatprep.subr.bf16.mxu0 %v5450
        %5631 = vmatpush1.bf16.msra.mxu0 %v5449
        %5632 = vmatprep.subr.bf16.mxu0 %v5434
        %5633 = vmatpush1.bf16.msra.mxu0 %v5433
        %5634 = vmatprep.subr.bf16.mxu0 0
        %5635 = vmatpush2.bf16.msra.mxu0 0
        %5636 = vmatprep.subr.bf16.mxu0 0
        %5637 = vmatpush2.bf16.msra.mxu0 0
        %5638 = vmatprep.subr.bf16.mxu0 0
        %5639 = vmatpush2.bf16.msra.mxu0 0
        %5640 = vmatprep.subr.bf16.mxu0 0
        %5641 = vmatpush2.bf16.msra.mxu0 0
        %5642 = vmatprep.subr.bf16.mxu0 0
        %5643 = vmatpush2.bf16.msra.mxu0 0
        %5644 = vmatprep.subr.bf16.mxu0 0
        %5645 = vmatpush2.bf16.msra.mxu0 0
        %5646 = vmatprep.subr.bf16.mxu0 0
        %5647 = vmatpush2.bf16.msra.mxu0 0
        %5648 = vmatprep.subr.bf16.mxu0 0
        %5649 = vmatpush2.bf16.msra.mxu0 0
        %5650 = vmatprep.mubr.bf16.mxu0 0
        %5651 = vmatmul.mubr.bf16.gmra.mxu0 %v5493
        %v5652 = vpop.f32.mrf.mxu0
        %v5653 = vadd.f32 0.0, %v5652
        %v5654 = vpop.f32.mrf.mxu0
        %v5655 = vadd.f32 0.0, %v5654
        %v5656 = vpop.f32.mrf.mxu0
        %v5657 = vpop.f32.mrf.mxu0
        %5658 = vdwg.mxu0
        %5659 = vmatprep.subr.bf16.mxu0 0
        %5660 = vmatpush1.bf16.msra.mxu0 0
        %5661 = vmatprep.subr.bf16.mxu0 0
        %5662 = vmatpush1.bf16.msra.mxu0 0
        %5663 = vmatprep.subr.bf16.mxu0 0
        %5664 = vmatpush1.bf16.msra.mxu0 0
        %5665 = vmatprep.subr.bf16.mxu0 0
        %5666 = vmatpush1.bf16.msra.mxu0 0
        %5667 = vmatprep.subr.bf16.mxu0 %v5484
        %5668 = vmatpush1.bf16.msra.mxu0 %v5483
        %5669 = vmatprep.subr.bf16.mxu0 %v5468
        %5670 = vmatpush1.bf16.msra.mxu0 %v5467
        %5671 = vmatprep.subr.bf16.mxu0 %v5452
        %5672 = vmatpush1.bf16.msra.mxu0 %v5451
        %5673 = vmatprep.subr.bf16.mxu0 %v5436
        %5674 = vmatpush1.bf16.msra.mxu0 %v5435
        %5675 = vmatprep.subr.bf16.mxu0 0
        %5676 = vmatpush2.bf16.msra.mxu0 0
        %5677 = vmatprep.subr.bf16.mxu0 0
        %5678 = vmatpush2.bf16.msra.mxu0 0
        %5679 = vmatprep.subr.bf16.mxu0 0
        %5680 = vmatpush2.bf16.msra.mxu0 0
        %5681 = vmatprep.subr.bf16.mxu0 0
        %5682 = vmatpush2.bf16.msra.mxu0 0
        %5683 = vmatprep.subr.bf16.mxu0 0
        %5684 = vmatpush2.bf16.msra.mxu0 0
        %5685 = vmatprep.subr.bf16.mxu0 0
        %5686 = vmatpush2.bf16.msra.mxu0 0
        %5687 = vmatprep.subr.bf16.mxu0 0
        %5688 = vmatpush2.bf16.msra.mxu0 0
        %5689 = vmatprep.subr.bf16.mxu0 0
        %5690 = vmatpush2.bf16.msra.mxu0 0
        %5691 = vmatprep.mubr.bf16.mxu0 0
        %5692 = vmatmul.mubr.bf16.gmra.mxu0 %v5493
        %v5693 = vpop.f32.mrf.mxu0
        %v5694 = vadd.f32 0.0, %v5693
        %v5695 = vpop.f32.mrf.mxu0
        %v5696 = vadd.f32 0.0, %v5695
        %v5697 = vpop.f32.mrf.mxu0
        %v5698 = vpop.f32.mrf.mxu0
        %5699 = vdwg.mxu0
        %5700 = vmatprep.subr.bf16.mxu0 0
        %5701 = vmatpush1.bf16.msra.mxu0 0
        %5702 = vmatprep.subr.bf16.mxu0 0
        %5703 = vmatpush1.bf16.msra.mxu0 0
        %5704 = vmatprep.subr.bf16.mxu0 0
        %5705 = vmatpush1.bf16.msra.mxu0 0
        %5706 = vmatprep.subr.bf16.mxu0 0
        %5707 = vmatpush1.bf16.msra.mxu0 0
        %5708 = vmatprep.subr.bf16.mxu0 %v5486
        %5709 = vmatpush1.bf16.msra.mxu0 %v5485
        %5710 = vmatprep.subr.bf16.mxu0 %v5470
        %5711 = vmatpush1.bf16.msra.mxu0 %v5469
        %5712 = vmatprep.subr.bf16.mxu0 %v5454
        %5713 = vmatpush1.bf16.msra.mxu0 %v5453
        %5714 = vmatprep.subr.bf16.mxu0 %v5438
        %5715 = vmatpush1.bf16.msra.mxu0 %v5437
        %5716 = vmatprep.subr.bf16.mxu0 0
        %5717 = vmatpush2.bf16.msra.mxu0 0
        %5718 = vmatprep.subr.bf16.mxu0 0
        %5719 = vmatpush2.bf16.msra.mxu0 0
        %5720 = vmatprep.subr.bf16.mxu0 0
        %5721 = vmatpush2.bf16.msra.mxu0 0
        %5722 = vmatprep.subr.bf16.mxu0 0
        %5723 = vmatpush2.bf16.msra.mxu0 0
        %5724 = vmatprep.subr.bf16.mxu0 0
        %5725 = vmatpush2.bf16.msra.mxu0 0
        %5726 = vmatprep.subr.bf16.mxu0 0
        %5727 = vmatpush2.bf16.msra.mxu0 0
        %5728 = vmatprep.subr.bf16.mxu0 0
        %5729 = vmatpush2.bf16.msra.mxu0 0
        %5730 = vmatprep.subr.bf16.mxu0 0
        %5731 = vmatpush2.bf16.msra.mxu0 0
        %5732 = vmatprep.mubr.bf16.mxu0 0
        %5733 = vmatmul.mubr.bf16.gmra.mxu0 %v5493
        %v5734 = vpop.f32.mrf.mxu0
        %v5735 = vadd.f32 0.0, %v5734
        %v5736 = vpop.f32.mrf.mxu0
        %v5737 = vadd.f32 0.0, %v5736
        %v5738 = vpop.f32.mrf.mxu0
        %v5739 = vpop.f32.mrf.mxu0
        %5740 = vdwg.mxu0
        %5741 = vmatprep.subr.bf16.mxu0 0
        %5742 = vmatpush1.bf16.msra.mxu0 0
        %5743 = vmatprep.subr.bf16.mxu0 0
        %5744 = vmatpush1.bf16.msra.mxu0 0
        %5745 = vmatprep.subr.bf16.mxu0 0
        %5746 = vmatpush1.bf16.msra.mxu0 0
        %5747 = vmatprep.subr.bf16.mxu0 0
        %5748 = vmatpush1.bf16.msra.mxu0 0
        %5749 = vmatprep.subr.bf16.mxu0 %v5488
        %5750 = vmatpush1.bf16.msra.mxu0 %v5487
        %5751 = vmatprep.subr.bf16.mxu0 %v5472
        %5752 = vmatpush1.bf16.msra.mxu0 %v5471
        %5753 = vmatprep.subr.bf16.mxu0 %v5456
        %5754 = vmatpush1.bf16.msra.mxu0 %v5455
        %5755 = vmatprep.subr.bf16.mxu0 %v5440
        %5756 = vmatpush1.bf16.msra.mxu0 %v5439
        %5757 = vmatprep.subr.bf16.mxu0 0
        %5758 = vmatpush2.bf16.msra.mxu0 0
        %5759 = vmatprep.subr.bf16.mxu0 0
        %5760 = vmatpush2.bf16.msra.mxu0 0
        %5761 = vmatprep.subr.bf16.mxu0 0
        %5762 = vmatpush2.bf16.msra.mxu0 0
        %5763 = vmatprep.subr.bf16.mxu0 0
        %5764 = vmatpush2.bf16.msra.mxu0 0
        %5765 = vmatprep.subr.bf16.mxu0 0
        %5766 = vmatpush2.bf16.msra.mxu0 0
        %5767 = vmatprep.subr.bf16.mxu0 0
        %5768 = vmatpush2.bf16.msra.mxu0 0
        %5769 = vmatprep.subr.bf16.mxu0 0
        %5770 = vmatpush2.bf16.msra.mxu0 0
        %5771 = vmatprep.subr.bf16.mxu0 0
        %5772 = vmatpush2.bf16.msra.mxu0 0
        %5773 = vmatprep.mubr.bf16.mxu0 0
        %5774 = vmatmul.mubr.bf16.gmra.mxu0 %v5493
        %v5775 = vpop.f32.mrf.mxu0
        %v5776 = vadd.f32 0.0, %v5775
        %v5777 = vpop.f32.mrf.mxu0
        %v5778 = vadd.f32 0.0, %v5777
        %v5779 = vpop.f32.mrf.mxu0
        %v5780 = vpop.f32.mrf.mxu0
        %5781 = vdwg.mxu0
        %5782 = vmatprep.subr.bf16.mxu0 0
        %5783 = vmatpush1.bf16.msra.mxu0 0
        %5784 = vmatprep.subr.bf16.mxu0 0
        %5785 = vmatpush1.bf16.msra.mxu0 0
        %5786 = vmatprep.subr.bf16.mxu0 0
        %5787 = vmatpush1.bf16.msra.mxu0 0
        %5788 = vmatprep.subr.bf16.mxu0 0
        %5789 = vmatpush1.bf16.msra.mxu0 0
        %5790 = vmatprep.subr.bf16.mxu0 %v5490
        %5791 = vmatpush1.bf16.msra.mxu0 %v5489
        %5792 = vmatprep.subr.bf16.mxu0 %v5474
        %5793 = vmatpush1.bf16.msra.mxu0 %v5473
        %5794 = vmatprep.subr.bf16.mxu0 %v5458
        %5795 = vmatpush1.bf16.msra.mxu0 %v5457
        %5796 = vmatprep.subr.bf16.mxu0 %v5442
        %5797 = vmatpush1.bf16.msra.mxu0 %v5441
        %5798 = vmatprep.subr.bf16.mxu0 0
        %5799 = vmatpush2.bf16.msra.mxu0 0
        %5800 = vmatprep.subr.bf16.mxu0 0
        %5801 = vmatpush2.bf16.msra.mxu0 0
        %5802 = vmatprep.subr.bf16.mxu0 0
        %5803 = vmatpush2.bf16.msra.mxu0 0
        %5804 = vmatprep.subr.bf16.mxu0 0
        %5805 = vmatpush2.bf16.msra.mxu0 0
        %5806 = vmatprep.subr.bf16.mxu0 0
        %5807 = vmatpush2.bf16.msra.mxu0 0
        %5808 = vmatprep.subr.bf16.mxu0 0
        %5809 = vmatpush2.bf16.msra.mxu0 0
        %5810 = vmatprep.subr.bf16.mxu0 0
        %5811 = vmatpush2.bf16.msra.mxu0 0
        %5812 = vmatprep.subr.bf16.mxu0 0
        %5813 = vmatpush2.bf16.msra.mxu0 0
        %5814 = vmatprep.mubr.bf16.mxu0 0
        %5815 = vmatmul.mubr.bf16.gmra.mxu0 %v5493
        %v5816 = vpop.f32.mrf.mxu0
        %v5817 = vadd.f32 0.0, %v5816
        %v5818 = vpop.f32.mrf.mxu0
        %v5819 = vadd.f32 0.0, %v5818
        %v5820 = vpop.f32.mrf.mxu0
        %v5821 = vpop.f32.mrf.mxu0
        %5822 = vdwg.mxu0
        %v5823 = vsub.f32 0.0, %v5530
        %v5824 = vsub.f32 0.0, %v5532
        %v5825 = vsub.f32 0.0, %v5571
        %v5826 = vsub.f32 0.0, %v5573
        %v5827 = vsub.f32 0.0, %v5612
        %v5828 = vsub.f32 0.0, %v5614
        %v5829 = vsub.f32 0.0, %v5653
        %v5830 = vsub.f32 0.0, %v5655
        %v5831 = vsub.f32 0.0, %v5694
        %v5832 = vsub.f32 0.0, %v5696
        %v5833 = vsub.f32 0.0, %v5735
        %v5834 = vsub.f32 0.0, %v5737
        %v5835 = vsub.f32 0.0, %v5776
        %v5836 = vsub.f32 0.0, %v5778
        %v5837 = vsub.f32 0.0, %v5817
        %v5838 = vsub.f32 0.0, %v5819
        %v5839 = vmul.f32 %v5823, 1.442695
        %v5840 = vpow.pop %v5839
        %v5841 = vmul.f32 %v5824, 1.442695
        %v5842 = vpow.pop %v5841
        %v5843 = vmul.f32 %v5825, 1.442695
        %v5844 = vpow.pop %v5843
        %v5845 = vmul.f32 %v5826, 1.442695
        %v5846 = vpow.pop %v5845
        %v5847 = vmul.f32 %v5827, 1.442695
        %v5848 = vpow.pop %v5847
        %v5849 = vmul.f32 %v5828, 1.442695
        %v5850 = vpow.pop %v5849
        %v5851 = vmul.f32 %v5829, 1.442695
        %v5852 = vpow.pop %v5851
        %v5853 = vmul.f32 %v5830, 1.442695
        %v5854 = vpow.pop %v5853
        %v5855 = vmul.f32 %v5831, 1.442695
        %v5856 = vpow.pop %v5855
        %v5857 = vmul.f32 %v5832, 1.442695
        %v5858 = vpow.pop %v5857
        %v5859 = vmul.f32 %v5833, 1.442695
        %v5860 = vpow.pop %v5859
        %v5861 = vmul.f32 %v5834, 1.442695
        %v5862 = vpow.pop %v5861
        %v5863 = vmul.f32 %v5835, 1.442695
        %v5864 = vpow.pop %v5863
        %v5865 = vmul.f32 %v5836, 1.442695
        %v5866 = vpow.pop %v5865
        %v5867 = vmul.f32 %v5837, 1.442695
        %v5868 = vpow.pop %v5867
        %v5869 = vmul.f32 %v5838, 1.442695
        %v5870 = vpow.pop %v5869
        %v5871 = vadd.f32 %v5840, 1.0
        %v5872 = vadd.f32 %v5842, 1.0
        %v5873 = vadd.f32 %v5844, 1.0
        %v5874 = vadd.f32 %v5846, 1.0
        %v5875 = vadd.f32 %v5848, 1.0
        %v5876 = vadd.f32 %v5850, 1.0
        %v5877 = vadd.f32 %v5852, 1.0
        %v5878 = vadd.f32 %v5854, 1.0
        %v5879 = vadd.f32 %v5856, 1.0
        %v5880 = vadd.f32 %v5858, 1.0
        %v5881 = vadd.f32 %v5860, 1.0
        %v5882 = vadd.f32 %v5862, 1.0
        %v5883 = vadd.f32 %v5864, 1.0
        %v5884 = vadd.f32 %v5866, 1.0
        %v5885 = vadd.f32 %v5868, 1.0
        %v5886 = vadd.f32 %v5870, 1.0
        %v5887 = vrcp.pop %v5871
        %v5888 = vrcp.pop %v5872
        %v5889 = vrcp.pop %v5873
        %v5890 = vrcp.pop %v5874
        %v5891 = vrcp.pop %v5875
        %v5892 = vrcp.pop %v5876
        %v5893 = vrcp.pop %v5877
        %v5894 = vrcp.pop %v5878
        %v5895 = vrcp.pop %v5879
        %v5896 = vrcp.pop %v5880
        %v5897 = vrcp.pop %v5881
        %v5898 = vrcp.pop %v5882
        %v5899 = vrcp.pop %v5883
        %v5900 = vrcp.pop %v5884
        %v5901 = vrcp.pop %v5885
        %v5902 = vrcp.pop %v5886
        %v5919 = vrot.slane %v3058, 5
        %v5920 = vrot.slane %v3059, 5
        %v5921 = vrot.slane %v3060, 5
        %v5922 = vrot.slane %v3061, 5
        %v5923 = vrot.slane %v3062, 5
        %v5924 = vrot.slane %v3063, 5
        %v5925 = vrot.slane %v3064, 5
        %v5926 = vrot.slane %v3065, 5
        %v5927 = vrot.slane %v3066, 5
        %v5928 = vrot.slane %v3067, 5
        %v5929 = vrot.slane %v3068, 5
        %v5930 = vrot.slane %v3069, 5
        %v5931 = vrot.slane %v3070, 5
        %v5932 = vrot.slane %v3071, 5
        %v5933 = vrot.slane %v3072, 5
        %v5934 = vrot.slane %v3073, 5
        %vm5951 = vcmask 1042432
        %v5952 = vsel %vm5951, %v5887, %v5919
        %v5953 = vsel %vm5951, %v5888, %v5920
        %v5954 = vsel %vm5951, %v5889, %v5921
        %v5955 = vsel %vm5951, %v5890, %v5922
        %v5956 = vsel %vm5951, %v5891, %v5923
        %v5957 = vsel %vm5951, %v5892, %v5924
        %v5958 = vsel %vm5951, %v5893, %v5925
        %v5959 = vsel %vm5951, %v5894, %v5926
        %v5960 = vsel %vm5951, %v5895, %v5927
        %v5961 = vsel %vm5951, %v5896, %v5928
        %v5962 = vsel %vm5951, %v5897, %v5929
        %v5963 = vsel %vm5951, %v5898, %v5930
        %v5964 = vsel %vm5951, %v5899, %v5931
        %v5965 = vsel %vm5951, %v5900, %v5932
        %v5966 = vsel %vm5951, %v5901, %v5933
        %v5967 = vsel %vm5951, %v5902, %v5934
        %v5984 = vcombine.low %v5952, %v5953
        %v5985 = vcombine.low %v5954, %v5955
        %v5986 = vcombine.low %v5956, %v5957
        %v5987 = vcombine.low %v5958, %v5959
        %v5988 = vcombine.low %v5960, %v5961
        %v5989 = vcombine.low %v5962, %v5963
        %v5990 = vcombine.low %v5964, %v5965
        %v5991 = vcombine.low %v5966, %v5967
        %6000 = vst [vmem:[%s452] sm:$0xff] %v5984
        %6001 = vst [vmem:[%s452 + $0x8] sm:$0xff] %v5985
        %6002 = vst [vmem:[%s452 + $0x10] sm:$0xff] %v5986
        %6003 = vst [vmem:[%s452 + $0x18] sm:$0xff] %v5987
        %6004 = vst [vmem:[%s452 + $0x20] sm:$0xff] %v5988
        %6005 = vst [vmem:[%s452 + $0x28] sm:$0xff] %v5989
        %6006 = vst [vmem:[%s452 + $0x30] sm:$0xff] %v5990
        %6007 = vst [vmem:[%s452 + $0x38] sm:$0xff] %v5991
        %s6008 = smul.u32 16, %s19
        %p6009 = scmp.lt.s32.totalorder %s6008, 31
        %s6010 = scalar_select %p6009, %s6008, 31
        %s6011 = smul.addr %s6010, 4
        %s6012 = scalar_lea.vmem %s8, %s6011
        // Predicated region
        $region76: #{radiance_field_forward.1} parent=70 // pred_check
          %p6013 = pneg %p210
        $region77: #{radiance_field_forward.1} parent=70 // pred_check_branch
          %6015 = sbr.rel (%p6013) target = $region79
        $region78: #{radiance_field_forward.1} parent=70 // pred_region
          %s6016 = smul.u32 16, %s19
        $region79: #{radiance_field_forward.1} parent=70 // pred_fallthru
          _
      $region71: #{radiance_field_forward.1} parent=5 // pred_fallthru
        _
      %p6017 = scmp.le.s32.totalorder 2, %s14
      // Predicated region
      $region80: #{radiance_field_forward.1} parent=5 // pred_check
        %p6018 = pneg %p6017
      $region81: #{radiance_field_forward.1} parent=5 // pred_check_branch
        %6020 = sbr.rel (%p6018) target = $region83
      $region82: #{radiance_field_forward.1} parent=5 // pred_region
        %s6021 = ssub.s32 %s14, 2
        // Predicated region
        $region84: #{radiance_field_forward.1} parent=82 // pred_check
          %p6022 = pneg %p216
        $region85: #{radiance_field_forward.1} parent=82 // pred_check_branch
          %6024 = sbr.rel (%p6022) target = $region87
        $region86: #{radiance_field_forward.1} parent=82 // pred_region
          %s6025 = smul.u32 16, %s20
          %p6026 = scmp.lt.s32.totalorder %s6025, 31
          %s6027 = scalar_select %p6026, %s6025, 31
          %s6028 = smul.addr %s6027, 4
          %s6029 = scalar_lea.vmem %s8, %s6028
        $region87: #{radiance_field_forward.1} parent=82 // pred_fallthru
          _
      $region83: #{radiance_field_forward.1} parent=5 // pred_fallthru
        _
    $region6: #{radiance_field_forward.1} parent=1 // loop_footer
      %s18 = sadd.s32 1, %s14
    $region7: #{radiance_field_forward.1} parent=1 // loop_footer_branch
      %13 = sbr.rel target = $region3
    $region8: #{radiance_field_forward.1} parent=1 // loop_exit
      _

</llo_original>
